<compile_context>
chip_gen: v6e
topology: v6e:2x2x1
jax: 0.10.0
libtpu: 0.0.40
codegen_flags: <defaults>
</compile_context>

<pallas_src>
import functools

import jax
import jax.numpy as jnp
from jax.experimental import pallas as pl
from jax.experimental.pallas import tpu as pltpu


LANE = 128  # lane width / feature padding quantum


def _round_up(x, m):
    return (x + m - 1) // m * m


def _pick_tile(n):
    """Adjacency row/col tile. Large tiles amortize per-grid-step overhead; tiny
    graphs just use one tile == padded node count."""
    if n <= 512:
        return max(128, _round_up(n, 128))
    if n <= 4096:
        return 256
    return 512


def _vmem_limit_bytes():
    """Per-generation VMEM limit (v5e/v6e: 128 MiB physical, v7x: 64 MiB)."""
    try:
        cap = int(pltpu.get_tpu_info().vmem_capacity_bytes)
    except Exception:
        cap = 64 * 1024 * 1024          # conservative fallback (v7x-sized)
    return min(cap * 7 // 8, 112 * 1024 * 1024)


# ------------------------------- fused kernel ------------------------------ #

def _fused_residual_gc_kernel(
    # inputs
    a_ref,        # streamed: [tile_m, tile_k] int8 tile | resident: [Np, Np] bf16
    x0_ref,       # [Np, C]   bf16  padded input features            (VMEM resident)
    dis_ref,      # [Np, 1]   f32   (deg+1)^-1/2 for GCN sym-norm    (VMEM resident)
    dinv_ref,     # [Np, 1]   f32   1/deg (0 if isolated) for SAGE   (VMEM resident)
    w_gcn_ref,    # [Lg, C, C] bf16 stacked hidden-GCN weights       (VMEM resident)
    b_gcn_ref,    # [Lg, 1, C] f32  stacked hidden-GCN biases        (VMEM resident)
    w_sage_ref,   # [4, C, C]  bf16 (Wl_x, Wl_h, Wr_x, Wr_h)         (VMEM resident)
    b_sage_ref,   # [1, C]     f32
    w_out_ref,    # [C, C]     bf16
    b_out_ref,    # [1, C]     f32
    # output
    o_ref,        # [tile_m, C] f32 current output row tile (written on last layer)
    # scratch
    xw_ref,       # [2*Np, C] bf16  ping-pong pre-transformed features (cur / next layer)
    h_ref,        # [Np, C]   bf16  hidden-GCN activations (carried into the SAGE layer)
    acc_ref,      # [tile_m, C] f32 adjacency-matmul accumulator
    *,
    n_gcn_hidden, n_pad, tile_m, tile_k, adj_resident,
):
    l = pl.program_id(0)          # layer index (outer, strictly sequential)
    i = pl.program_id(1)          # output row tile
    k = pl.program_id(2)          # adjacency column (reduction) tile
    nk = pl.num_programs(2)

    sage_layer = n_gcn_hidden
    out_layer = n_gcn_hidden + 1

    cur = l % 2                   # xw ping-pong slot of the current layer
    nxt = 1 - cur

    row = pl.ds(pl.multiple_of(i * tile_m, tile_m), tile_m)
    col = pl.ds(pl.multiple_of(k * tile_k, tile_k), tile_k)
    xw_cur_col = pl.ds(pl.multiple_of(cur * n_pad + k * tile_k, tile_k), tile_k)
    xw_cur_row = pl.ds(pl.multiple_of(cur * n_pad + i * tile_m, tile_m), tile_m)
    xw_nxt_row = pl.ds(pl.multiple_of(nxt * n_pad + i * tile_m, tile_m), tile_m)

    # ---- layer-0 pre-transform: produced lazily one column tile at a time while
    #      the first row stripe is aggregated (no full-matrix serial bubble).
    @pl.when((l == 0) & (i == 0))
    def _seed():
        xw0 = jnp.dot(x0_ref[col, :], w_gcn_ref[0],
                      preferred_element_type=jnp.float32)
        xw_ref[xw_cur_col, :] = (dis_ref[col, :] * xw0).astype(jnp.bfloat16)

    # ---- adjacency tile accumulation (reduction over k) -----------------------
    @pl.when(k == 0)
    def _zero_acc():
        acc_ref[...] = jnp.zeros_like(acc_ref)

    if adj_resident:
        a_tile = a_ref[row, :]                       # bf16, resident; tile_k == Np
    else:
        a_tile = a_ref[...].astype(jnp.bfloat16)     # int8 0/1 -> bf16 is exact
    acc_ref[...] += jnp.dot(a_tile, xw_ref[xw_cur_col, :],
                            preferred_element_type=jnp.float32)

    # ---- finalize this row tile for this layer --------------------------------
    @pl.when(k == nk - 1)
    def _finalize():
        acc = acc_ref[...]
        dis_i = dis_ref[row, :]
        x0_i = x0_ref[row, :]

        # ---------------- hidden GCN layers ----------------
        @pl.when(l < sage_layer)
        def _():
            # acc = A @ (D^-1/2 X W); add self-loop term, left D^-1/2, bias, ReLU.
            xw_i = xw_ref[xw_cur_row, :].astype(jnp.float32)
            h_new = jnp.maximum(dis_i * (acc + xw_i) + b_gcn_ref[l], 0.0)
            # F.dropout(p=0.05) is identity in eval mode.
            h_bf = h_new.astype(jnp.bfloat16)
            h_ref[row, :] = h_bf

            # Pre-transform for the NEXT layer, folded into this finalize so it is
            # spread across row tiles and hidden behind the adjacency stream.
            @pl.when(l + 1 < sage_layer)             # next layer: hidden GCN
            def _():
                nw = jnp.dot(h_bf, w_gcn_ref[l + 1],
                             preferred_element_type=jnp.float32)
                xw_ref[xw_nxt_row, :] = (dis_i * nw).astype(jnp.bfloat16)

            @pl.when(l + 1 == sage_layer)            # next layer: SAGE compress
            def _():
                pre = jnp.dot(x0_i, w_sage_ref[0],
                              preferred_element_type=jnp.float32)
                pre = pre + jnp.dot(h_bf, w_sage_ref[1],
                                    preferred_element_type=jnp.float32)
                xw_ref[xw_nxt_row, :] = pre.astype(jnp.bfloat16)

        # ---------------- SAGE compress layer ----------------
        @pl.when(l == sage_layer)
        def _():
            # mean aggregation (1/deg) + root term split over [x0, h] + bias.
            dinv_i = dinv_ref[row, :]
            right = jnp.dot(x0_i, w_sage_ref[2],
                            preferred_element_type=jnp.float32)
            right = right + jnp.dot(h_ref[row, :], w_sage_ref[3],
                                    preferred_element_type=jnp.float32)
            h_sage = dinv_i * acc + right + b_sage_ref[...]
            # pre-transform for the output GCN layer
            nw = jnp.dot(h_sage.astype(jnp.bfloat16), w_out_ref[...],
                         preferred_element_type=jnp.float32)
            xw_ref[xw_nxt_row, :] = (dis_i * nw).astype(jnp.bfloat16)

        # ---------------- output GCN layer ----------------
        @pl.when(l == out_layer)
        def _():
            xw_i = xw_ref[xw_cur_row, :].astype(jnp.float32)
            o_ref[...] = dis_i * (acc + xw_i) + b_out_ref[...]


def _fused_call(adj_store, x0_bf16, dis, dinv, w_gcn, b_gcn, w_sage, b_sage,
                w_out, b_out, *, n_gcn_hidden, n_pad, c_pad, tile_m, tile_k,
                adj_resident, vmem_limit):
    n_i = n_pad // tile_m
    n_k = n_pad // tile_k
    n_layers = n_gcn_hidden + 2            # hidden GCN stack + SAGE + output GCN

    # Whole array placed in VMEM once, single-buffered (no pipeline double-buffering
    # for operands whose block never changes).
    vmem_full = pl.BlockSpec(memory_space=pltpu.MemorySpace.VMEM)

    if adj_resident:
        # small graph: the (bf16) adjacency is loaded into VMEM exactly once.
        adj_spec = vmem_full
    else:
        # large graph: stream int8 (tile_m, tile_k) tiles, double-buffered by Pallas.
        adj_spec = pl.BlockSpec((tile_m, tile_k), lambda l, i, k: (i, k))

    grid_spec = pltpu.PrefetchScalarGridSpec(
        num_scalar_prefetch=0,
        grid=(n_layers, n_i, n_k),
        in_specs=[adj_spec] + [vmem_full] * 9,
        # lane-dense output row tile; only written on the last layer (earlier
        # writebacks of the revisited block are overwritten later).
        out_specs=pl.BlockSpec((tile_m, c_pad), lambda l, i, k: (i, 0)),
        scratch_shapes=[
            pltpu.VMEM((2 * n_pad, c_pad), jnp.bfloat16),   # xw ping-pong (cur / next layer)
            pltpu.VMEM((n_pad, c_pad), jnp.bfloat16),       # last hidden-GCN activations
            pltpu.VMEM((tile_m, c_pad), jnp.float32),       # adjacency-matmul accumulator
        ],
    )

    kernel = functools.partial(
        _fused_residual_gc_kernel,
        n_gcn_hidden=n_gcn_hidden, n_pad=n_pad,
        tile_m=tile_m, tile_k=tile_k, adj_resident=adj_resident)

    return pl.pallas_call(
        kernel,
        out_shape=jax.ShapeDtypeStruct((n_pad, c_pad), jnp.float32),
        grid_spec=grid_spec,
        compiler_params=pltpu.CompilerParams(
            # The layer axis is strictly sequential and every row tile of layer l+1
            # depends on all row tiles of layer l through the VMEM-resident xw/h
            # scratch, so no axis is megacore-parallel in this fused form.
            dimension_semantics=("arbitrary", "arbitrary", "arbitrary"),
            vmem_limit_bytes=int(vmem_limit),
        ),
    )(adj_store, x0_bf16, dis, dinv, w_gcn, b_gcn, w_sage, b_sage, w_out, b_out)


# ------------------------------ JAX glue / wrapper -------------------------- #

def residual_gc_forward(x, adj, params):
    """Pallas forward for ResidualGC (eval mode; dropout == identity)."""
    n, in_c = x.shape
    hidden = params["gcn_hidden"][0][0].shape[1]
    out_c = params["gcn_out_w"].shape[1]
    n_gcn_hidden = len(params["gcn_hidden"])

    tile = _pick_tile(n)
    n_pad = _round_up(n, tile)
    c_pad = _round_up(max(in_c, hidden, out_c), LANE)
    vmem_limit = _vmem_limit_bytes()

    # pad adjacency / features; degree normalization from the padded adjacency
    adj_f = jnp.zeros((n_pad, n_pad), jnp.float32).at[:n, :n].set(adj)
    x_p = jnp.zeros((n_pad, c_pad), jnp.float32).at[:n, :in_c].set(x)
    deg = jnp.sum(adj_f, axis=1)
    dis = (1.0 / jnp.sqrt(deg + 1.0)).reshape(n_pad, 1)             # GCN: with self loop
    dinv = jnp.where(deg > 0.0, 1.0 / deg, 0.0).reshape(n_pad, 1)   # SAGE mean

    # Static residency decision: if the (bf16) adjacency + all other residents fit
    # comfortably in VMEM, load it once instead of re-streaming it every layer.
    weight_bytes = (n_gcn_hidden + 5) * c_pad * c_pad * 2 + (n_gcn_hidden + 4) * c_pad * 4
    per_node = 8 * c_pad + 2 * 512          # x0 + 2*xw + h (bf16) + lane-padded dis/dinv
    other_bytes = n_pad * per_node + weight_bytes + 3 * tile * c_pad * 4
    adj_resident = 2 * (2 * n_pad * n_pad + other_bytes) <= vmem_limit

    if adj_resident:
        adj_store = adj_f.astype(jnp.bfloat16)   # exact for 0/1 entries
        tile_k = n_pad                           # no reduction tiling when resident
    else:
        adj_store = adj_f.astype(jnp.int8)       # exact for 0/1; halves HBM traffic
        tile_k = tile
    # NOTE: weighted (non-0/1) adjacencies would need f32/bf16 streaming instead.

    def pad_w(w):
        return jnp.zeros((c_pad, c_pad), jnp.float32).at[:w.shape[0], :w.shape[1]].set(w)

    def pad_b(b):
        return jnp.zeros((1, c_pad), jnp.float32).at[:, :b.shape[-1]].set(b.reshape(1, -1))

    w_gcn = jnp.stack([pad_w(w) for w, _ in params["gcn_hidden"]]).astype(jnp.bfloat16)
    b_gcn = jnp.stack([pad_b(b) for _, b in params["gcn_hidden"]])        # (Lg, 1, C)

    # split SAGE weights row-wise instead of materializing cat([x, h], 1)
    wl, wr = params["sage_wl"], params["sage_wr"]
    w_sage = jnp.stack([pad_w(wl[:in_c]), pad_w(wl[in_c:]),
                        pad_w(wr[:in_c]), pad_w(wr[in_c:])]).astype(jnp.bfloat16)
    b_sage = pad_b(params["sage_b"])

    w_out = pad_w(params["gcn_out_w"]).astype(jnp.bfloat16)
    b_out = pad_b(params["gcn_out_b"])

    out_p = _fused_call(adj_store, x_p.astype(jnp.bfloat16), dis, dinv,
                        w_gcn, b_gcn, w_sage, b_sage, w_out, b_out,
                        n_gcn_hidden=n_gcn_hidden, n_pad=n_pad, c_pad=c_pad,
                        tile_m=tile, tile_k=tile_k,
                        adj_resident=adj_resident, vmem_limit=vmem_limit)
    return out_p[:n, :out_c]


def glorot(key, shape):
    fan_in, fan_out = shape
    limit = jnp.sqrt(6.0 / (fan_in + fan_out))
    return jax.random.uniform(key, shape, jnp.float32, -limit, limit)


def init_params(key, in_channels, hidden_channels, out_channels, skip_n_channels):
    """Deterministic parameter initialization mirroring ResidualGC.__init__."""
    dims = [(in_channels, hidden_channels)]
    dims += [(hidden_channels, hidden_channels)] * skip_n_channels
    keys = jax.random.split(key, len(dims) + 3)

    gcn_hidden = []
    for k, (ci, co) in zip(keys[:len(dims)], dims):
        gcn_hidden.append((glorot(k, (ci, co)), jnp.zeros((1, co), jnp.float32)))

    sage_in = hidden_channels + in_channels
    sage_wl = glorot(keys[len(dims)], (sage_in, hidden_channels))
    sage_wr = glorot(keys[len(dims) + 1], (sage_in, hidden_channels))
    sage_b = jnp.zeros((1, hidden_channels), jnp.float32)

    gcn_out_w = glorot(keys[len(dims) + 2], (hidden_channels, out_channels))
    gcn_out_b = jnp.zeros((1, out_channels), jnp.float32)

    return {
        "gcn_hidden": gcn_hidden,
        "sage_wl": sage_wl,
        "sage_wr": sage_wr,
        "sage_b": sage_b,
        "gcn_out_w": gcn_out_w,
        "gcn_out_b": gcn_out_b,
    }


def reference_forward(x, adj, params):
    """Pure-JAX f32 reference matching the PyTorch module (eval mode)."""
    n = adj.shape[0]
    a_hat = adj + jnp.eye(n, dtype=adj.dtype)
    dhat = jnp.sum(a_hat, axis=1)
    d_is = 1.0 / jnp.sqrt(dhat)
    a_gcn = a_hat * d_is[:, None] * d_is[None, :]
    deg = jnp.sum(adj, axis=1)
    dinv = jnp.where(deg > 0.0, 1.0 / deg, 0.0)
    a_mean = adj * dinv[:, None]

    h = x
    for w, b in params["gcn_hidden"]:
        h = jnp.maximum(a_gcn @ (h @ w) + b, 0.0)
    cat = jnp.concatenate([x, h], axis=1)
    h = (a_mean @ cat) @ params["sage_wl"] + cat @ params["sage_wr"] + params["sage_b"]
    return a_gcn @ (h @ params["gcn_out_w"]) + params["gcn_out_b"]


# --------------------------------- main ------------------------------------ #

if __name__ == "__main__":
    key = jax.random.PRNGKey(0)
    k_x, k_adj, k_params = jax.random.split(key, 3)

    num_nodes = 192          # exercises the pad-to-tile path (n_pad = 256)
    in_channels = 16
    hidden_channels = 32
    out_channels = 8
    skip_n_channels = 2

    # node features [N, C_in]
    x = jax.random.normal(k_x, (num_nodes, in_channels), jnp.float32)

    # random symmetric binary adjacency, no self-loops
    r = jax.random.uniform(k_adj, (num_nodes, num_nodes))
    upper = jnp.triu((r < 0.1).astype(jnp.float32), k=1)
    adj = upper + upper.T

    params = init_params(k_params, in_channels, hidden_channels,
                         out_channels, skip_n_channels)

    out = jax.jit(residual_gc_forward)(x, adj, params)
    out = jax.block_until_ready(out)
    assert out.shape == (num_nodes, out_channels), out.shape

    # bf16 matmuls with f32 accumulation vs f32 reference
    ref = reference_forward(x, adj, params)
    rel_err = float(jnp.max(jnp.abs(out - ref)) / (jnp.max(jnp.abs(ref)) + 1e-6))
    assert rel_err < 3e-2, f"mismatch vs f32 reference: rel_err={rel_err}"

    print("KERNEL_OK")
</pallas_src>

<mosaic_0001>
module attributes {stable_mosaic.version = 11 : i64} {
  func.func @_fused_residual_gc_kernel(%arg0: i32, %arg1: i32, %arg2: i32, %arg3: memref<256x256xbf16, #tpu.memory_space<vmem>>, %arg4: memref<256x128xbf16, #tpu.memory_space<vmem>>, %arg5: memref<256x1xf32, #tpu.memory_space<vmem>>, %arg6: memref<256x1xf32, #tpu.memory_space<vmem>>, %arg7: memref<3x128x128xbf16, #tpu.memory_space<vmem>>, %arg8: memref<3x1x128xf32, #tpu.memory_space<vmem>>, %arg9: memref<4x128x128xbf16, #tpu.memory_space<vmem>>, %arg10: memref<1x128xf32, #tpu.memory_space<vmem>>, %arg11: memref<128x128xbf16, #tpu.memory_space<vmem>>, %arg12: memref<1x128xf32, #tpu.memory_space<vmem>>, %arg13: memref<256x128xf32, #tpu.memory_space<vmem>>, %arg14: memref<512x128xbf16, #tpu.memory_space<vmem>>, %arg15: memref<256x128xbf16, #tpu.memory_space<vmem>>, %arg16: memref<256x128xf32, #tpu.memory_space<vmem>>) attributes {dimension_semantics = [#tpu.dimension_semantics<arbitrary>, #tpu.dimension_semantics<arbitrary>, #tpu.dimension_semantics<arbitrary>], iteration_bounds = array<i64: 5, 1, 1>, scalar_prefetch = 0 : i64, scratch_operands = 3 : i64, tpu.core_type = #tpu.core_type<tc>, window_params = [{pipeline_mode = #tpu.pipeline_mode<synchronous>, transform_indices = @transform_0, window_bounds = array<i64: 256, 256>}, {pipeline_mode = #tpu.pipeline_mode<synchronous>, transform_indices = @transform_1, window_bounds = array<i64: 256, 128>}, {pipeline_mode = #tpu.pipeline_mode<synchronous>, transform_indices = @transform_2, window_bounds = array<i64: 256, 1>}, {pipeline_mode = #tpu.pipeline_mode<synchronous>, transform_indices = @transform_3, window_bounds = array<i64: 256, 1>}, {pipeline_mode = #tpu.pipeline_mode<synchronous>, transform_indices = @transform_4, window_bounds = array<i64: 3, 128, 128>}, {pipeline_mode = #tpu.pipeline_mode<synchronous>, transform_indices = @transform_5, window_bounds = array<i64: 3, 1, 128>}, {pipeline_mode = #tpu.pipeline_mode<synchronous>, transform_indices = @transform_6, window_bounds = array<i64: 4, 128, 128>}, {pipeline_mode = #tpu.pipeline_mode<synchronous>, transform_indices = @transform_7, window_bounds = array<i64: 1, 128>}, {pipeline_mode = #tpu.pipeline_mode<synchronous>, transform_indices = @transform_8, window_bounds = array<i64: 128, 128>}, {pipeline_mode = #tpu.pipeline_mode<synchronous>, transform_indices = @transform_9, window_bounds = array<i64: 1, 128>}, {transform_indices = @transform_10, window_bounds = array<i64: 256, 128>}]} {
    %c2_i32 = arith.constant 2 : i32
    %c0_i32 = arith.constant 0 : i32
    %0 = arith.cmpi eq, %c2_i32, %c0_i32 : i32
    %c1_i32 = arith.constant 1 : i32
    %1 = arith.select %0, %c1_i32, %c2_i32 : i32
    %2 = arith.remsi %arg0, %1 : i32
    %c0_i32_0 = arith.constant 0 : i32
    %3 = arith.cmpi ne, %2, %c0_i32_0 : i32
    %c0_i32_1 = arith.constant 0 : i32
    %4 = arith.cmpi slt, %2, %c0_i32_1 : i32
    %c0_i32_2 = arith.constant 0 : i32
    %5 = arith.cmpi slt, %1, %c0_i32_2 : i32
    %6 = arith.xori %4, %5 : i1
    %7 = arith.andi %6, %3 : i1
    %8 = arith.addi %2, %1 : i32
    %9 = arith.select %7, %8, %2 : i32
    %c1_i32_3 = arith.constant 1 : i32
    %10 = arith.subi %c1_i32_3, %9 : i32
    %c256_i32 = arith.constant 256 : i32
    %11 = arith.muli %arg1, %c256_i32 : i32
    %12 = tpu.assume_multiple %11, 256 : i32
    %c256_i32_4 = arith.constant 256 : i32
    %13 = arith.muli %arg2, %c256_i32_4 : i32
    %14 = tpu.assume_multiple %13, 256 : i32
    %c256_i32_5 = arith.constant 256 : i32
    %15 = arith.muli %9, %c256_i32_5 : i32
    %c256_i32_6 = arith.constant 256 : i32
    %16 = arith.muli %arg2, %c256_i32_6 : i32
    %17 = arith.addi %15, %16 : i32
    %18 = tpu.assume_multiple %17, 256 : i32
    %c256_i32_7 = arith.constant 256 : i32
    %19 = arith.muli %9, %c256_i32_7 : i32
    %c256_i32_8 = arith.constant 256 : i32
    %20 = arith.muli %arg1, %c256_i32_8 : i32
    %21 = arith.addi %19, %20 : i32
    %22 = tpu.assume_multiple %21, 256 : i32
    %c256_i32_9 = arith.constant 256 : i32
    %23 = arith.muli %10, %c256_i32_9 : i32
    %c256_i32_10 = arith.constant 256 : i32
    %24 = arith.muli %arg1, %c256_i32_10 : i32
    %25 = arith.addi %23, %24 : i32
    %26 = tpu.assume_multiple %25, 256 : i32
    %c0_i32_11 = arith.constant 0 : i32
    %27 = arith.cmpi eq, %arg0, %c0_i32_11 : i32
    %c0_i32_12 = arith.constant 0 : i32
    %28 = arith.cmpi eq, %arg1, %c0_i32_12 : i32
    %29 = arith.andi %27, %28 : i1
    %30 = arith.extui %29 : i1 to i32
    %c0_i32_13 = arith.constant 0 : i32
    %31 = arith.cmpi ne, %30, %c0_i32_13 : i32
    scf.if %31 {
      %46 = arith.index_cast %14 : i32 to index
      %c0_23 = arith.constant 0 : index
      %47 = vector.load %arg4[%46, %c0_23] : memref<256x128xbf16, #tpu.memory_space<vmem>>, vector<256x128xbf16>
      %c0_24 = arith.constant 0 : index
      %c0_25 = arith.constant 0 : index
      %c0_26 = arith.constant 0 : index
      %48 = vector.load %arg7[%c0_24, %c0_25, %c0_26] : memref<3x128x128xbf16, #tpu.memory_space<vmem>>, vector<1x128x128xbf16>
      %49 = vector.shape_cast %48 : vector<1x128x128xbf16> to vector<128x128xbf16>
      %cst_27 = arith.constant dense<0.000000e+00> : vector<256x128xf32>
      %50 = tpu.matmul %47, %49, %cst_27 {dimension_numbers = #tpu.dot_dimension_numbers<[1], [0], [0], [1], [0, 0, 1, 1], [], []>} : vector<256x128xbf16>, vector<128x128xbf16>, vector<256x128xf32> -> vector<256x128xf32>
      %51 = arith.index_cast %14 : i32 to index
      %c0_28 = arith.constant 0 : index
      %52 = vector.load %arg5[%51, %c0_28] : memref<256x1xf32, #tpu.memory_space<vmem>>, vector<256x1xf32>
      %53 = vector.broadcast %52 : vector<256x1xf32> to vector<256x128xf32>
      %54 = arith.mulf %53, %50 : vector<256x128xf32>
      %55 = arith.truncf %54 : vector<256x128xf32> to vector<256x128xbf16>
      %56 = arith.index_cast %18 : i32 to index
      %c0_29 = arith.constant 0 : index
      %57 = vector.load %arg14[%56, %c0_29] : memref<512x128xbf16, #tpu.memory_space<vmem>>, vector<256x128xbf16>
      tpu.vector_store %arg14[%56, %c0_29], %55 {strides = array<i32>} : memref<512x128xbf16, #tpu.memory_space<vmem>>, vector<256x128xbf16>,
    } else {
    }
    %c0_i32_14 = arith.constant 0 : i32
    %32 = arith.cmpi eq, %arg2, %c0_i32_14 : i32
    %33 = arith.extui %32 : i1 to i32
    %c0_i32_15 = arith.constant 0 : i32
    %34 = arith.cmpi ne, %33, %c0_i32_15 : i32
    scf.if %34 {
      %cst_23 = arith.constant 0.000000e+00 : f32
      %46 = vector.broadcast %cst_23 : f32 to vector<256x128xf32>
      %c0_24 = arith.constant 0 : index
      %c0_25 = arith.constant 0 : index
      %47 = vector.load %arg16[%c0_24, %c0_25] : memref<256x128xf32, #tpu.memory_space<vmem>>, vector<256x128xf32>
      tpu.vector_store %arg16[%c0_24, %c0_25], %46 {strides = array<i32>} : memref<256x128xf32, #tpu.memory_space<vmem>>, vector<256x128xf32>,
    } else {
    }
    %35 = arith.index_cast %12 : i32 to index
    %c0 = arith.constant 0 : index
    %36 = vector.load %arg3[%35, %c0] : memref<256x256xbf16, #tpu.memory_space<vmem>>, vector<256x256xbf16>
    %c0_16 = arith.constant 0 : index
    %c0_17 = arith.constant 0 : index
    %37 = vector.load %arg16[%c0_16, %c0_17] : memref<256x128xf32, #tpu.memory_space<vmem>>, vector<256x128xf32>
    %38 = arith.index_cast %18 : i32 to index
    %c0_18 = arith.constant 0 : index
    %39 = vector.load %arg14[%38, %c0_18] : memref<512x128xbf16, #tpu.memory_space<vmem>>, vector<256x128xbf16>
    %cst = arith.constant dense<0.000000e+00> : vector<256x128xf32>
    %40 = tpu.matmul %36, %39, %cst {dimension_numbers = #tpu.dot_dimension_numbers<[1], [0], [0], [1], [0, 0, 1, 1], [], []>} : vector<256x256xbf16>, vector<256x128xbf16>, vector<256x128xf32> -> vector<256x128xf32>
    %41 = arith.addf %37, %40 : vector<256x128xf32>
    %c0_19 = arith.constant 0 : index
    %c0_20 = arith.constant 0 : index
    %42 = vector.load %arg16[%c0_19, %c0_20] : memref<256x128xf32, #tpu.memory_space<vmem>>, vector<256x128xf32>
    tpu.vector_store %arg16[%c0_19, %c0_20], %41 {strides = array<i32>} : memref<256x128xf32, #tpu.memory_space<vmem>>, vector<256x128xf32>,
    %c0_i32_21 = arith.constant 0 : i32
    %43 = arith.cmpi eq, %arg2, %c0_i32_21 : i32
    %44 = arith.extui %43 : i1 to i32
    %c0_i32_22 = arith.constant 0 : i32
    %45 = arith.cmpi ne, %44, %c0_i32_22 : i32
    scf.if %45 {
      %c0_23 = arith.constant 0 : index
      %c0_24 = arith.constant 0 : index
      %46 = vector.load %arg16[%c0_23, %c0_24] : memref<256x128xf32, #tpu.memory_space<vmem>>, vector<256x128xf32>
      %47 = arith.index_cast %12 : i32 to index
      %c0_25 = arith.constant 0 : index
      %48 = vector.load %arg5[%47, %c0_25] : memref<256x1xf32, #tpu.memory_space<vmem>>, vector<256x1xf32>
      %49 = arith.index_cast %12 : i32 to index
      %c0_26 = arith.constant 0 : index
      %50 = vector.load %arg4[%49, %c0_26] : memref<256x128xbf16, #tpu.memory_space<vmem>>, vector<256x128xbf16>
      %c3_i32 = arith.constant 3 : i32
      %51 = arith.cmpi slt, %arg0, %c3_i32 : i32
      %52 = arith.extui %51 : i1 to i32
      %c0_i32_27 = arith.constant 0 : i32
      %53 = arith.cmpi ne, %52, %c0_i32_27 : i32
      scf.if %53 {
        %60 = arith.index_cast %22 : i32 to index
        %c0_31 = arith.constant 0 : index
        %61 = vector.load %arg14[%60, %c0_31] : memref<512x128xbf16, #tpu.memory_space<vmem>>, vector<256x128xbf16>
        %62 = arith.extf %61 : vector<256x128xbf16> to vector<256x128xf32>
        %63 = arith.addf %46, %62 : vector<256x128xf32>
        %64 = vector.broadcast %48 : vector<256x1xf32> to vector<256x128xf32>
        %65 = arith.mulf %64, %63 : vector<256x128xf32>
        %66 = arith.index_cast %arg0 : i32 to index
        %c0_32 = arith.constant 0 : index
        %c0_33 = arith.constant 0 : index
        %67 = vector.load %arg8[%66, %c0_32, %c0_33] : memref<3x1x128xf32, #tpu.memory_space<vmem>>, vector<1x1x128xf32>
        %68 = vector.shape_cast %67 : vector<1x1x128xf32> to vector<1x128xf32>
        %69 = vector.broadcast %68 : vector<1x128xf32> to vector<256x128xf32>
        %70 = arith.addf %65, %69 : vector<256x128xf32>
        %cst_34 = arith.constant 0.000000e+00 : f32
        %71 = vector.broadcast %cst_34 : f32 to vector<256x128xf32>
        %72 = arith.maximumf %70, %71 : vector<256x128xf32>
        %73 = arith.truncf %72 : vector<256x128xf32> to vector<256x128xbf16>
        %74 = arith.index_cast %12 : i32 to index
        %c0_35 = arith.constant 0 : index
        %75 = vector.load %arg15[%74, %c0_35] : memref<256x128xbf16, #tpu.memory_space<vmem>>, vector<256x128xbf16>
        tpu.vector_store %arg15[%74, %c0_35], %73 {strides = array<i32>} : memref<256x128xbf16, #tpu.memory_space<vmem>>, vector<256x128xbf16>,
        %c1_i32_36 = arith.constant 1 : i32
        %76 = arith.addi %arg0, %c1_i32_36 : i32
        %c3_i32_37 = arith.constant 3 : i32
        %77 = arith.cmpi slt, %76, %c3_i32_37 : i32
        %78 = arith.extui %77 : i1 to i32
        %c0_i32_38 = arith.constant 0 : i32
        %79 = arith.cmpi ne, %78, %c0_i32_38 : i32
        scf.if %79 {
          %c1_i32_42 = arith.constant 1 : i32
          %84 = arith.addi %arg0, %c1_i32_42 : i32
          %85 = arith.index_cast %84 : i32 to index
          %c0_43 = arith.constant 0 : index
          %c0_44 = arith.constant 0 : index
          %86 = vector.load %arg7[%85, %c0_43, %c0_44] : memref<3x128x128xbf16, #tpu.memory_space<vmem>>, vector<1x128x128xbf16>
          %87 = vector.shape_cast %86 : vector<1x128x128xbf16> to vector<128x128xbf16>
          %cst_45 = arith.constant dense<0.000000e+00> : vector<256x128xf32>
          %88 = tpu.matmul %73, %87, %cst_45 {dimension_numbers = #tpu.dot_dimension_numbers<[1], [0], [0], [1], [0, 0, 1, 1], [], []>} : vector<256x128xbf16>, vector<128x128xbf16>, vector<256x128xf32> -> vector<256x128xf32>
          %89 = vector.broadcast %48 : vector<256x1xf32> to vector<256x128xf32>
          %90 = arith.mulf %89, %88 : vector<256x128xf32>
          %91 = arith.truncf %90 : vector<256x128xf32> to vector<256x128xbf16>
          %92 = arith.index_cast %26 : i32 to index
          %c0_46 = arith.constant 0 : index
          %93 = vector.load %arg14[%92, %c0_46] : memref<512x128xbf16, #tpu.memory_space<vmem>>, vector<256x128xbf16>
          tpu.vector_store %arg14[%92, %c0_46], %91 {strides = array<i32>} : memref<512x128xbf16, #tpu.memory_space<vmem>>, vector<256x128xbf16>,
        } else {
        }
        %c1_i32_39 = arith.constant 1 : i32
        %80 = arith.addi %arg0, %c1_i32_39 : i32
        %c3_i32_40 = arith.constant 3 : i32
        %81 = arith.cmpi eq, %80, %c3_i32_40 : i32
        %82 = arith.extui %81 : i1 to i32
        %c0_i32_41 = arith.constant 0 : i32
        %83 = arith.cmpi ne, %82, %c0_i32_41 : i32
        scf.if %83 {
          %c0_42 = arith.constant 0 : index
          %c0_43 = arith.constant 0 : index
          %c0_44 = arith.constant 0 : index
          %84 = vector.load %arg9[%c0_42, %c0_43, %c0_44] : memref<4x128x128xbf16, #tpu.memory_space<vmem>>, vector<1x128x128xbf16>
          %85 = vector.shape_cast %84 : vector<1x128x128xbf16> to vector<128x128xbf16>
          %cst_45 = arith.constant dense<0.000000e+00> : vector<256x128xf32>
          %86 = tpu.matmul %50, %85, %cst_45 {dimension_numbers = #tpu.dot_dimension_numbers<[1], [0], [0], [1], [0, 0, 1, 1], [], []>} : vector<256x128xbf16>, vector<128x128xbf16>, vector<256x128xf32> -> vector<256x128xf32>
          %c1 = arith.constant 1 : index
          %c0_46 = arith.constant 0 : index
          %c0_47 = arith.constant 0 : index
          %87 = vector.load %arg9[%c1, %c0_46, %c0_47] : memref<4x128x128xbf16, #tpu.memory_space<vmem>>, vector<1x128x128xbf16>
          %88 = vector.shape_cast %87 : vector<1x128x128xbf16> to vector<128x128xbf16>
          %cst_48 = arith.constant dense<0.000000e+00> : vector<256x128xf32>
          %89 = tpu.matmul %73, %88, %cst_48 {dimension_numbers = #tpu.dot_dimension_numbers<[1], [0], [0], [1], [0, 0, 1, 1], [], []>} : vector<256x128xbf16>, vector<128x128xbf16>, vector<256x128xf32> -> vector<256x128xf32>
          %90 = arith.addf %86, %89 : vector<256x128xf32>
          %91 = arith.truncf %90 : vector<256x128xf32> to vector<256x128xbf16>
          %92 = arith.index_cast %26 : i32 to index
          %c0_49 = arith.constant 0 : index
          %93 = vector.load %arg14[%92, %c0_49] : memref<512x128xbf16, #tpu.memory_space<vmem>>, vector<256x128xbf16>
          tpu.vector_store %arg14[%92, %c0_49], %91 {strides = array<i32>} : memref<512x128xbf16, #tpu.memory_space<vmem>>, vector<256x128xbf16>,
        } else {
        }
      } else {
      }
      %c3_i32_28 = arith.constant 3 : i32
      %54 = arith.cmpi eq, %arg0, %c3_i32_28 : i32
      %55 = arith.extui %54 : i1 to i32
      %c0_i32_29 = arith.constant 0 : i32
      %56 = arith.cmpi ne, %55, %c0_i32_29 : i32
      scf.if %56 {
        %60 = arith.index_cast %12 : i32 to index
        %c0_31 = arith.constant 0 : index
        %61 = vector.load %arg6[%60, %c0_31] : memref<256x1xf32, #tpu.memory_space<vmem>>, vector<256x1xf32>
        %c2 = arith.constant 2 : index
        %c0_32 = arith.constant 0 : index
        %c0_33 = arith.constant 0 : index
        %62 = vector.load %arg9[%c2, %c0_32, %c0_33] : memref<4x128x128xbf16, #tpu.memory_space<vmem>>, vector<1x128x128xbf16>
        %63 = vector.shape_cast %62 : vector<1x128x128xbf16> to vector<128x128xbf16>
        %cst_34 = arith.constant dense<0.000000e+00> : vector<256x128xf32>
        %64 = tpu.matmul %50, %63, %cst_34 {dimension_numbers = #tpu.dot_dimension_numbers<[1], [0], [0], [1], [0, 0, 1, 1], [], []>} : vector<256x128xbf16>, vector<128x128xbf16>, vector<256x128xf32> -> vector<256x128xf32>
        %65 = arith.index_cast %12 : i32 to index
        %c0_35 = arith.constant 0 : index
        %66 = vector.load %arg15[%65, %c0_35] : memref<256x128xbf16, #tpu.memory_space<vmem>>, vector<256x128xbf16>
        %c3 = arith.constant 3 : index
        %c0_36 = arith.constant 0 : index
        %c0_37 = arith.constant 0 : index
        %67 = vector.load %arg9[%c3, %c0_36, %c0_37] : memref<4x128x128xbf16, #tpu.memory_space<vmem>>, vector<1x128x128xbf16>
        %68 = vector.shape_cast %67 : vector<1x128x128xbf16> to vector<128x128xbf16>
        %cst_38 = arith.constant dense<0.000000e+00> : vector<256x128xf32>
        %69 = tpu.matmul %66, %68, %cst_38 {dimension_numbers = #tpu.dot_dimension_numbers<[1], [0], [0], [1], [0, 0, 1, 1], [], []>} : vector<256x128xbf16>, vector<128x128xbf16>, vector<256x128xf32> -> vector<256x128xf32>
        %70 = arith.addf %64, %69 : vector<256x128xf32>
        %71 = vector.broadcast %61 : vector<256x1xf32> to vector<256x128xf32>
        %72 = arith.mulf %71, %46 : vector<256x128xf32>
        %73 = arith.addf %72, %70 : vector<256x128xf32>
        %c0_39 = arith.constant 0 : index
        %c0_40 = arith.constant 0 : index
        %74 = vector.load %arg10[%c0_39, %c0_40] : memref<1x128xf32, #tpu.memory_space<vmem>>, vector<1x128xf32>
        %75 = vector.broadcast %74 : vector<1x128xf32> to vector<256x128xf32>
        %76 = arith.addf %73, %75 : vector<256x128xf32>
        %77 = arith.truncf %76 : vector<256x128xf32> to vector<256x128xbf16>
        %c0_41 = arith.constant 0 : index
        %c0_42 = arith.constant 0 : index
        %78 = vector.load %arg11[%c0_41, %c0_42] : memref<128x128xbf16, #tpu.memory_space<vmem>>, vector<128x128xbf16>
        %cst_43 = arith.constant dense<0.000000e+00> : vector<256x128xf32>
        %79 = tpu.matmul %77, %78, %cst_43 {dimension_numbers = #tpu.dot_dimension_numbers<[1], [0], [0], [1], [0, 0, 1, 1], [], []>} : vector<256x128xbf16>, vector<128x128xbf16>, vector<256x128xf32> -> vector<256x128xf32>
        %80 = vector.broadcast %48 : vector<256x1xf32> to vector<256x128xf32>
        %81 = arith.mulf %80, %79 : vector<256x128xf32>
        %82 = arith.truncf %81 : vector<256x128xf32> to vector<256x128xbf16>
        %83 = arith.index_cast %26 : i32 to index
        %c0_44 = arith.constant 0 : index
        %84 = vector.load %arg14[%83, %c0_44] : memref<512x128xbf16, #tpu.memory_space<vmem>>, vector<256x128xbf16>
        tpu.vector_store %arg14[%83, %c0_44], %82 {strides = array<i32>} : memref<512x128xbf16, #tpu.memory_space<vmem>>, vector<256x128xbf16>,
      } else {
      }
      %c4_i32 = arith.constant 4 : i32
      %57 = arith.cmpi eq, %arg0, %c4_i32 : i32
      %58 = arith.extui %57 : i1 to i32
      %c0_i32_30 = arith.constant 0 : i32
      %59 = arith.cmpi ne, %58, %c0_i32_30 : i32
      scf.if %59 {
        %60 = arith.index_cast %22 : i32 to index
        %c0_31 = arith.constant 0 : index
        %61 = vector.load %arg14[%60, %c0_31] : memref<512x128xbf16, #tpu.memory_space<vmem>>, vector<256x128xbf16>
        %62 = arith.extf %61 : vector<256x128xbf16> to vector<256x128xf32>
        %63 = arith.addf %46, %62 : vector<256x128xf32>
        %64 = vector.broadcast %48 : vector<256x1xf32> to vector<256x128xf32>
        %65 = arith.mulf %64, %63 : vector<256x128xf32>
        %c0_32 = arith.constant 0 : index
        %c0_33 = arith.constant 0 : index
        %66 = vector.load %arg12[%c0_32, %c0_33] : memref<1x128xf32, #tpu.memory_space<vmem>>, vector<1x128xf32>
        %67 = vector.broadcast %66 : vector<1x128xf32> to vector<256x128xf32>
        %68 = arith.addf %65, %67 : vector<256x128xf32>
        %c0_34 = arith.constant 0 : index
        %c0_35 = arith.constant 0 : index
        %69 = vector.load %arg13[%c0_34, %c0_35] : memref<256x128xf32, #tpu.memory_space<vmem>>, vector<256x128xf32>
        tpu.vector_store %arg13[%c0_34, %c0_35], %68 {strides = array<i32>} : memref<256x128xf32, #tpu.memory_space<vmem>>, vector<256x128xf32>,
      } else {
      }
    } else {
    }
    return
  }
  func.func @transform_0(%arg0: i32, %arg1: i32, %arg2: i32) -> (i32, i32) {
    %c0_i32 = arith.constant 0 : i32
    %c0_i32_0 = arith.constant 0 : i32
    %c0_i32_1 = arith.constant 0 : i32
    return %c0_i32, %c0_i32_0 : i32, i32
  }
  func.func @transform_1(%arg0: i32, %arg1: i32, %arg2: i32) -> (i32, i32) {
    %c0_i32 = arith.constant 0 : i32
    %c0_i32_0 = arith.constant 0 : i32
    %c0_i32_1 = arith.constant 0 : i32
    return %c0_i32, %c0_i32_0 : i32, i32
  }
  func.func @transform_2(%arg0: i32, %arg1: i32, %arg2: i32) -> (i32, i32) {
    %c0_i32 = arith.constant 0 : i32
    %c0_i32_0 = arith.constant 0 : i32
    %c0_i32_1 = arith.constant 0 : i32
    return %c0_i32, %c0_i32_0 : i32, i32
  }
  func.func @transform_3(%arg0: i32, %arg1: i32, %arg2: i32) -> (i32, i32) {
    %c0_i32 = arith.constant 0 : i32
    %c0_i32_0 = arith.constant 0 : i32
    %c0_i32_1 = arith.constant 0 : i32
    return %c0_i32, %c0_i32_0 : i32, i32
  }
  func.func @transform_4(%arg0: i32, %arg1: i32, %arg2: i32) -> (i32, i32, i32) {
    %c0_i32 = arith.constant 0 : i32
    %c0_i32_0 = arith.constant 0 : i32
    %c0_i32_1 = arith.constant 0 : i32
    %c0_i32_2 = arith.constant 0 : i32
    return %c0_i32, %c0_i32_0, %c0_i32_1 : i32, i32, i32
  }
  func.func @transform_5(%arg0: i32, %arg1: i32, %arg2: i32) -> (i32, i32, i32) {
    %c0_i32 = arith.constant 0 : i32
    %c0_i32_0 = arith.constant 0 : i32
    %c0_i32_1 = arith.constant 0 : i32
    %c0_i32_2 = arith.constant 0 : i32
    return %c0_i32, %c0_i32_0, %c0_i32_1 : i32, i32, i32
  }
  func.func @transform_6(%arg0: i32, %arg1: i32, %arg2: i32) -> (i32, i32, i32) {
    %c0_i32 = arith.constant 0 : i32
    %c0_i32_0 = arith.constant 0 : i32
    %c0_i32_1 = arith.constant 0 : i32
    %c0_i32_2 = arith.constant 0 : i32
    return %c0_i32, %c0_i32_0, %c0_i32_1 : i32, i32, i32
  }
  func.func @transform_7(%arg0: i32, %arg1: i32, %arg2: i32) -> (i32, i32) {
    %c0_i32 = arith.constant 0 : i32
    %c0_i32_0 = arith.constant 0 : i32
    %c0_i32_1 = arith.constant 0 : i32
    return %c0_i32, %c0_i32_0 : i32, i32
  }
  func.func @transform_8(%arg0: i32, %arg1: i32, %arg2: i32) -> (i32, i32) {
    %c0_i32 = arith.constant 0 : i32
    %c0_i32_0 = arith.constant 0 : i32
    %c0_i32_1 = arith.constant 0 : i32
    return %c0_i32, %c0_i32_0 : i32, i32
  }
  func.func @transform_9(%arg0: i32, %arg1: i32, %arg2: i32) -> (i32, i32) {
    %c0_i32 = arith.constant 0 : i32
    %c0_i32_0 = arith.constant 0 : i32
    %c0_i32_1 = arith.constant 0 : i32
    return %c0_i32, %c0_i32_0 : i32, i32
  }
  func.func @transform_10(%arg0: i32, %arg1: i32, %arg2: i32) -> (i32, i32) {
    %c0_i32 = arith.constant 0 : i32
    %c0_i32_0 = arith.constant 0 : i32
    return %arg1, %c0_i32 : i32, i32
  }
}

</mosaic_0001>

<llo_original>
// kernel: residual_gc_forward.1
$region0: #{residual_gc_forward.1}
  #allocation0 [shape = 'u32[]', space=smem, size = 0x4, offset = 0x4, fixed_abs, tag = 'smem constant byte address 0x4 - core index']
  #allocation1 [shape = 'u32[144,128]{1,0:T(1,128)}', space=vmem, size = 0x12000, scoped, tag = 'internal scratch']
  #allocation2 [shape = 'bf16[512,128]{1,0:T(8,128)(2,1)}', space=vmem, size = 0x20000, scoped, tag = 'scratch operand']
  #allocation3 [shape = 'bf16[256,128]{1,0:T(8,128)(2,1)}', space=vmem, size = 0x10000, scoped, tag = 'scratch operand']
  #allocation4 [shape = 'f32[256,128]{1,0:T(8,128)}', space=vmem, size = 0x20000, scoped, tag = 'scratch operand']
  %s0 = inlined_call_operand.vmem [shape: bf16[256,256], index: 0, kind: input, shape index: {}]
  %s1 = inlined_call_operand.vmem [shape: bf16[256,128], index: 1, kind: input, shape index: {}]
  %s2 = inlined_call_operand.vmem [shape: f32[256,1], index: 2, kind: input, shape index: {}]
  %s3 = inlined_call_operand.vmem [shape: f32[256,1], index: 3, kind: input, shape index: {}]
  %s4 = inlined_call_operand.vmem [shape: bf16[3,128,128], index: 4, kind: input, shape index: {}]
  %s5 = inlined_call_operand.vmem [shape: f32[3,1,128], index: 5, kind: input, shape index: {}]
  %s6 = inlined_call_operand.vmem [shape: bf16[4,128,128], index: 6, kind: input, shape index: {}]
  %s7 = inlined_call_operand.vmem [shape: f32[1,128], index: 7, kind: input, shape index: {}]
  %s8 = inlined_call_operand.vmem [shape: bf16[128,128], index: 8, kind: input, shape index: {}]
  %s9 = inlined_call_operand.vmem [shape: f32[1,128], index: 9, kind: input, shape index: {}]
  %s10 = inlined_call_operand.vmem [shape: f32[256,128], index: 10, kind: output, shape index: {}]
  %s11 = sld [smem:[#allocation0]]
  $region105: #{residual_gc_forward.1} parent=0
    _
  %s13 = ssub.s32 1, %s11
  %s14 = scalar_select 0, %s13, %s11
  loop: start=0, step=1, limit=7
  $region2: #{residual_gc_forward.1} parent=0 // loop_pre_header
    _
  $region3: #{residual_gc_forward.1} parent=0 // loop_header
    %s16 = sphi 0, %s20
    %p17 = scmp.ge.s32.totalorder %s16, 7
    %s23 = sphi 0, %s42
    %s24 = sphi 0, %s38
    %s25 = sphi 0, %s34
    %s26 = sphi 0, %s23
    %s27 = sphi 0, %s24
    %s28 = sphi 0, %s25
    %s29 = sphi 0, %s26
    %s30 = sphi 0, %s27
    %s31 = sphi 0, %s28
    %s43 = sphi 0, %s43
    %s45 = sphi 0, %s43
    %s46 = sphi 0, %s45
    %s60 = sphi 0, %s46
    %s64 = sphi 0, %s64
    %s66 = sphi 0, %s64
    %s67 = sphi 0, %s66
    %s81 = sphi 0, %s67
    %s85 = sphi 0, %s85
    %s87 = sphi 0, %s85
    %s88 = sphi 0, %s87
    %s102 = sphi 0, %s88
    %s106 = sphi 0, %s106
    %s108 = sphi 0, %s106
    %s109 = sphi 0, %s108
    %s123 = sphi 0, %s109
    %s127 = sphi 0, %s127
    %s129 = sphi 0, %s127
    %s130 = sphi 0, %s129
    %s144 = sphi 0, %s130
    %s148 = sphi 0, %s148
    %s150 = sphi 0, %s148
    %s151 = sphi 0, %s150
    %s165 = sphi 0, %s151
    %s169 = sphi 0, %s169
    %s171 = sphi 0, %s169
    %s172 = sphi 0, %s171
    %s186 = sphi 0, %s172
    %s190 = sphi 0, %s190
    %s192 = sphi 0, %s190
    %s193 = sphi 0, %s192
    %s207 = sphi 0, %s193
    %s211 = sphi 0, %s211
    %s213 = sphi 0, %s211
    %s214 = sphi 0, %s213
    %s228 = sphi 0, %s214
    %s232 = sphi 0, %s232
    %s234 = sphi 0, %s232
    %s235 = sphi 0, %s234
    %s249 = sphi 0, %s235
    %s255 = sphi 0, %s257
    %s258 = sphi 0, %s255
    %s259 = sphi 0, %s258
    %s275 = sphi 0, %s259
  $region4: #{residual_gc_forward.1} parent=0 // loop_header_branch
    %19 = sbr.rel (%p17) target = $region8
  $region5: #{residual_gc_forward.1} parent=0 // loop_body
    %s21 = ssub.s32 %s16, 1
    %s22 = ssub.s32 %s16, 2
    %s32 = sadd.s32 1, %s25
    %p33 = scmp.ge.s32.totalorder %s32, 1
    %s34 = scalar_select %p33, 0, %s32
    %s35 = sadd.s32 1, %s24
    %s36 = scalar_select %p33, %s35, %s24
    %p37 = scmp.ge.s32.totalorder %s36, 1
    %s38 = scalar_select %p37, 0, %s36
    %s39 = sadd.s32 1, %s23
    %s40 = scalar_select %p37, %s39, %s23
    %p41 = scmp.ge.s32.totalorder %s40, 5
    %s42 = scalar_select %p41, 0, %s40
    %s44 = sadd.s32 %s43, 1
    %p47 = scmp.eq.s32.totalorder %s16, 4
    %p48 = scmp.ne.s32.totalorder %s43, %s45
    %p49 = scmp.eq.s32.totalorder %s16, 0
    %p50 = por %p48, %p49
    %p51 = scmp.ne.s32.totalorder %s43, %s45
    %p52 = scmp.eq.s32.totalorder %s21, 4
    %p53 = por %p51, %p52
    %p54 = scmp.ne.s32.totalorder %s45, %s46
    %p55 = scmp.eq.s32.totalorder %s21, 0
    %p56 = por %p54, %p55
    %p57 = scmp.ne.s32.totalorder %s45, %s46
    %p58 = scmp.eq.s32.totalorder %s22, 4
    %p59 = por %p57, %p58
    %p61 = scmp.ne.s32.totalorder %s46, %s60
    %p62 = scmp.eq.s32.totalorder %s22, 0
    %p63 = por %p61, %p62
    %s65 = sadd.s32 %s64, 1
    %p68 = scmp.eq.s32.totalorder %s16, 4
    %p69 = scmp.ne.s32.totalorder %s64, %s66
    %p70 = scmp.eq.s32.totalorder %s16, 0
    %p71 = por %p69, %p70
    %p72 = scmp.ne.s32.totalorder %s64, %s66
    %p73 = scmp.eq.s32.totalorder %s21, 4
    %p74 = por %p72, %p73
    %p75 = scmp.ne.s32.totalorder %s66, %s67
    %p76 = scmp.eq.s32.totalorder %s21, 0
    %p77 = por %p75, %p76
    %p78 = scmp.ne.s32.totalorder %s66, %s67
    %p79 = scmp.eq.s32.totalorder %s22, 4
    %p80 = por %p78, %p79
    %p82 = scmp.ne.s32.totalorder %s67, %s81
    %p83 = scmp.eq.s32.totalorder %s22, 0
    %p84 = por %p82, %p83
    %s86 = sadd.s32 %s85, 1
    %p89 = scmp.eq.s32.totalorder %s16, 4
    %p90 = scmp.ne.s32.totalorder %s85, %s87
    %p91 = scmp.eq.s32.totalorder %s16, 0
    %p92 = por %p90, %p91
    %p93 = scmp.ne.s32.totalorder %s85, %s87
    %p94 = scmp.eq.s32.totalorder %s21, 4
    %p95 = por %p93, %p94
    %p96 = scmp.ne.s32.totalorder %s87, %s88
    %p97 = scmp.eq.s32.totalorder %s21, 0
    %p98 = por %p96, %p97
    %p99 = scmp.ne.s32.totalorder %s87, %s88
    %p100 = scmp.eq.s32.totalorder %s22, 4
    %p101 = por %p99, %p100
    %p103 = scmp.ne.s32.totalorder %s88, %s102
    %p104 = scmp.eq.s32.totalorder %s22, 0
    %p105 = por %p103, %p104
    %s107 = sadd.s32 %s106, 1
    %p110 = scmp.eq.s32.totalorder %s16, 4
    %p111 = scmp.ne.s32.totalorder %s106, %s108
    %p112 = scmp.eq.s32.totalorder %s16, 0
    %p113 = por %p111, %p112
    %p114 = scmp.ne.s32.totalorder %s106, %s108
    %p115 = scmp.eq.s32.totalorder %s21, 4
    %p116 = por %p114, %p115
    %p117 = scmp.ne.s32.totalorder %s108, %s109
    %p118 = scmp.eq.s32.totalorder %s21, 0
    %p119 = por %p117, %p118
    %p120 = scmp.ne.s32.totalorder %s108, %s109
    %p121 = scmp.eq.s32.totalorder %s22, 4
    %p122 = por %p120, %p121
    %p124 = scmp.ne.s32.totalorder %s109, %s123
    %p125 = scmp.eq.s32.totalorder %s22, 0
    %p126 = por %p124, %p125
    %s128 = sadd.s32 %s127, 1
    %p131 = scmp.eq.s32.totalorder %s16, 4
    %p132 = scmp.ne.s32.totalorder %s127, %s129
    %p133 = scmp.eq.s32.totalorder %s16, 0
    %p134 = por %p132, %p133
    %p135 = scmp.ne.s32.totalorder %s127, %s129
    %p136 = scmp.eq.s32.totalorder %s21, 4
    %p137 = por %p135, %p136
    %p138 = scmp.ne.s32.totalorder %s129, %s130
    %p139 = scmp.eq.s32.totalorder %s21, 0
    %p140 = por %p138, %p139
    %p141 = scmp.ne.s32.totalorder %s129, %s130
    %p142 = scmp.eq.s32.totalorder %s22, 4
    %p143 = por %p141, %p142
    %p145 = scmp.ne.s32.totalorder %s130, %s144
    %p146 = scmp.eq.s32.totalorder %s22, 0
    %p147 = por %p145, %p146
    %s149 = sadd.s32 %s148, 1
    %p152 = scmp.eq.s32.totalorder %s16, 4
    %p153 = scmp.ne.s32.totalorder %s148, %s150
    %p154 = scmp.eq.s32.totalorder %s16, 0
    %p155 = por %p153, %p154
    %p156 = scmp.ne.s32.totalorder %s148, %s150
    %p157 = scmp.eq.s32.totalorder %s21, 4
    %p158 = por %p156, %p157
    %p159 = scmp.ne.s32.totalorder %s150, %s151
    %p160 = scmp.eq.s32.totalorder %s21, 0
    %p161 = por %p159, %p160
    %p162 = scmp.ne.s32.totalorder %s150, %s151
    %p163 = scmp.eq.s32.totalorder %s22, 4
    %p164 = por %p162, %p163
    %p166 = scmp.ne.s32.totalorder %s151, %s165
    %p167 = scmp.eq.s32.totalorder %s22, 0
    %p168 = por %p166, %p167
    %s170 = sadd.s32 %s169, 1
    %p173 = scmp.eq.s32.totalorder %s16, 4
    %p174 = scmp.ne.s32.totalorder %s169, %s171
    %p175 = scmp.eq.s32.totalorder %s16, 0
    %p176 = por %p174, %p175
    %p177 = scmp.ne.s32.totalorder %s169, %s171
    %p178 = scmp.eq.s32.totalorder %s21, 4
    %p179 = por %p177, %p178
    %p180 = scmp.ne.s32.totalorder %s171, %s172
    %p181 = scmp.eq.s32.totalorder %s21, 0
    %p182 = por %p180, %p181
    %p183 = scmp.ne.s32.totalorder %s171, %s172
    %p184 = scmp.eq.s32.totalorder %s22, 4
    %p185 = por %p183, %p184
    %p187 = scmp.ne.s32.totalorder %s172, %s186
    %p188 = scmp.eq.s32.totalorder %s22, 0
    %p189 = por %p187, %p188
    %s191 = sadd.s32 %s190, 1
    %p194 = scmp.eq.s32.totalorder %s16, 4
    %p195 = scmp.ne.s32.totalorder %s190, %s192
    %p196 = scmp.eq.s32.totalorder %s16, 0
    %p197 = por %p195, %p196
    %p198 = scmp.ne.s32.totalorder %s190, %s192
    %p199 = scmp.eq.s32.totalorder %s21, 4
    %p200 = por %p198, %p199
    %p201 = scmp.ne.s32.totalorder %s192, %s193
    %p202 = scmp.eq.s32.totalorder %s21, 0
    %p203 = por %p201, %p202
    %p204 = scmp.ne.s32.totalorder %s192, %s193
    %p205 = scmp.eq.s32.totalorder %s22, 4
    %p206 = por %p204, %p205
    %p208 = scmp.ne.s32.totalorder %s193, %s207
    %p209 = scmp.eq.s32.totalorder %s22, 0
    %p210 = por %p208, %p209
    %s212 = sadd.s32 %s211, 1
    %p215 = scmp.eq.s32.totalorder %s16, 4
    %p216 = scmp.ne.s32.totalorder %s211, %s213
    %p217 = scmp.eq.s32.totalorder %s16, 0
    %p218 = por %p216, %p217
    %p219 = scmp.ne.s32.totalorder %s211, %s213
    %p220 = scmp.eq.s32.totalorder %s21, 4
    %p221 = por %p219, %p220
    %p222 = scmp.ne.s32.totalorder %s213, %s214
    %p223 = scmp.eq.s32.totalorder %s21, 0
    %p224 = por %p222, %p223
    %p225 = scmp.ne.s32.totalorder %s213, %s214
    %p226 = scmp.eq.s32.totalorder %s22, 4
    %p227 = por %p225, %p226
    %p229 = scmp.ne.s32.totalorder %s214, %s228
    %p230 = scmp.eq.s32.totalorder %s22, 0
    %p231 = por %p229, %p230
    %s233 = sadd.s32 %s232, 1
    %p236 = scmp.eq.s32.totalorder %s16, 4
    %p237 = scmp.ne.s32.totalorder %s232, %s234
    %p238 = scmp.eq.s32.totalorder %s16, 0
    %p239 = por %p237, %p238
    %p240 = scmp.ne.s32.totalorder %s232, %s234
    %p241 = scmp.eq.s32.totalorder %s21, 4
    %p242 = por %p240, %p241
    %p243 = scmp.ne.s32.totalorder %s234, %s235
    %p244 = scmp.eq.s32.totalorder %s21, 0
    %p245 = por %p243, %p244
    %p246 = scmp.ne.s32.totalorder %s234, %s235
    %p247 = scmp.eq.s32.totalorder %s22, 4
    %p248 = por %p246, %p247
    %p250 = scmp.ne.s32.totalorder %s235, %s249
    %p251 = scmp.eq.s32.totalorder %s22, 0
    %p252 = por %p250, %p251
    %s253 = ssub.s32 %s24, %s38
    %p254 = scmp.eq.s32.totalorder %s253, 0
    %s256 = sadd.s32 %s255, 1
    %s257 = scalar_select %p254, %s255, %s256
    %p260 = pneg %p254
    %p261 = scmp.eq.s32.totalorder %s16, 4
    %p262 = por %p260, %p261
    %p263 = scmp.ne.s32.totalorder %s255, %s258
    %p264 = scmp.eq.s32.totalorder %s16, 0
    %p265 = por %p263, %p264
    %p266 = scmp.ne.s32.totalorder %s255, %s258
    %p267 = scmp.eq.s32.totalorder %s21, 4
    %p268 = por %p266, %p267
    %p269 = scmp.ne.s32.totalorder %s258, %s259
    %p270 = scmp.eq.s32.totalorder %s21, 0
    %p271 = por %p269, %p270
    %p272 = scmp.ne.s32.totalorder %s258, %s259
    %p273 = scmp.eq.s32.totalorder %s22, 4
    %p274 = por %p272, %p273
    %p276 = scmp.ne.s32.totalorder %s259, %s275
    %p277 = scmp.eq.s32.totalorder %s22, 0
    %p278 = por %p276, %p277
    %p279 = scmp.le.s32.totalorder 1, %s16
    %p280 = scmp.lt.s32.totalorder %s16, 6
    %p281 = pnand %p279, %p280
    %p282 = pneg %p281
    // Predicated region
    $region9: #{residual_gc_forward.1} parent=5 // pred_check
      _
    $region10: #{residual_gc_forward.1} parent=5 // pred_check_branch
      %284 = sbr.rel (%p281) target = $region12
    $region11: #{residual_gc_forward.1} parent=5 // pred_region
      %s285 = ssub.s32 %s16, 1
      // Predicated region
      $region13: #{residual_gc_forward.1} parent=11 // pred_check
        %p286 = pneg %p56
      $region14: #{residual_gc_forward.1} parent=11 // pred_check_branch
        %288 = sbr.rel (%p286) target = $region16
      $region15: #{residual_gc_forward.1} parent=11 // pred_region
        _
      $region16: #{residual_gc_forward.1} parent=11 // pred_fallthru
        _
      // Predicated region
      $region17: #{residual_gc_forward.1} parent=11 // pred_check
        %p289 = pneg %p77
      $region18: #{residual_gc_forward.1} parent=11 // pred_check_branch
        %291 = sbr.rel (%p289) target = $region20
      $region19: #{residual_gc_forward.1} parent=11 // pred_region
        _
      $region20: #{residual_gc_forward.1} parent=11 // pred_fallthru
        _
      // Predicated region
      $region21: #{residual_gc_forward.1} parent=11 // pred_check
        %p292 = pneg %p98
      $region22: #{residual_gc_forward.1} parent=11 // pred_check_branch
        %294 = sbr.rel (%p292) target = $region24
      $region23: #{residual_gc_forward.1} parent=11 // pred_region
        _
      $region24: #{residual_gc_forward.1} parent=11 // pred_fallthru
        _
      // Predicated region
      $region25: #{residual_gc_forward.1} parent=11 // pred_check
        %p295 = pneg %p119
      $region26: #{residual_gc_forward.1} parent=11 // pred_check_branch
        %297 = sbr.rel (%p295) target = $region28
      $region27: #{residual_gc_forward.1} parent=11 // pred_region
        _
      $region28: #{residual_gc_forward.1} parent=11 // pred_fallthru
        _
      // Predicated region
      $region29: #{residual_gc_forward.1} parent=11 // pred_check
        %p298 = pneg %p140
      $region30: #{residual_gc_forward.1} parent=11 // pred_check_branch
        %300 = sbr.rel (%p298) target = $region32
      $region31: #{residual_gc_forward.1} parent=11 // pred_region
        _
      $region32: #{residual_gc_forward.1} parent=11 // pred_fallthru
        _
      // Predicated region
      $region33: #{residual_gc_forward.1} parent=11 // pred_check
        %p301 = pneg %p161
      $region34: #{residual_gc_forward.1} parent=11 // pred_check_branch
        %303 = sbr.rel (%p301) target = $region36
      $region35: #{residual_gc_forward.1} parent=11 // pred_region
        _
      $region36: #{residual_gc_forward.1} parent=11 // pred_fallthru
        _
      // Predicated region
      $region37: #{residual_gc_forward.1} parent=11 // pred_check
        %p304 = pneg %p182
      $region38: #{residual_gc_forward.1} parent=11 // pred_check_branch
        %306 = sbr.rel (%p304) target = $region40
      $region39: #{residual_gc_forward.1} parent=11 // pred_region
        _
      $region40: #{residual_gc_forward.1} parent=11 // pred_fallthru
        _
      // Predicated region
      $region41: #{residual_gc_forward.1} parent=11 // pred_check
        %p307 = pneg %p203
      $region42: #{residual_gc_forward.1} parent=11 // pred_check_branch
        %309 = sbr.rel (%p307) target = $region44
      $region43: #{residual_gc_forward.1} parent=11 // pred_region
        _
      $region44: #{residual_gc_forward.1} parent=11 // pred_fallthru
        _
      // Predicated region
      $region45: #{residual_gc_forward.1} parent=11 // pred_check
        %p310 = pneg %p224
      $region46: #{residual_gc_forward.1} parent=11 // pred_check_branch
        %312 = sbr.rel (%p310) target = $region48
      $region47: #{residual_gc_forward.1} parent=11 // pred_region
        _
      $region48: #{residual_gc_forward.1} parent=11 // pred_fallthru
        _
      // Predicated region
      $region49: #{residual_gc_forward.1} parent=11 // pred_check
        %p313 = pneg %p245
      $region50: #{residual_gc_forward.1} parent=11 // pred_check_branch
        %315 = sbr.rel (%p313) target = $region52
      $region51: #{residual_gc_forward.1} parent=11 // pred_region
        _
      $region52: #{residual_gc_forward.1} parent=11 // pred_fallthru
        _
    $region12: #{residual_gc_forward.1} parent=5 // pred_fallthru
      _
    %p316 = scmp.lt.s32.totalorder %s16, 5
    // Predicated region
    $region53: #{residual_gc_forward.1} parent=5 // pred_check
      %p317 = pneg %p316
    $region54: #{residual_gc_forward.1} parent=5 // pred_check_branch
      %319 = sbr.rel (%p317) target = $region56
    $region55: #{residual_gc_forward.1} parent=5 // pred_region
      _
    $region56: #{residual_gc_forward.1} parent=5 // pred_fallthru
      _
    %p320 = scmp.le.s32.totalorder 1, %s16
    %p321 = scmp.lt.s32.totalorder %s16, 6
    %p322 = pnand %p320, %p321
    %p323 = pneg %p322
    // Predicated region
    $region57: #{residual_gc_forward.1} parent=5 // pred_check
      _
    $region58: #{residual_gc_forward.1} parent=5 // pred_check_branch
      %325 = sbr.rel (%p322) target = $region60
    $region59: #{residual_gc_forward.1} parent=5 // pred_region
      %s326 = ssub.s32 %s16, 1
      %p327 = pneg %p56
      %p328 = pneg %p53
      %p329 = pneg %p77
      %p330 = pneg %p74
      %p331 = pneg %p98
      %p332 = pneg %p95
      %p333 = pneg %p119
      %p334 = pneg %p116
      %p335 = pneg %p140
      %p336 = pneg %p137
      %p337 = pneg %p161
      %p338 = pneg %p158
      %p339 = pneg %p182
      %p340 = pneg %p179
      %p341 = pneg %p203
      %p342 = pneg %p200
      %p343 = pneg %p224
      %p344 = pneg %p221
      %p345 = pneg %p245
      %p346 = pneg %p242
      %p347 = pneg %p271
      %p348 = pneg %p268
      %s349 = smul.u32 32, %s27
      %p350 = scmp.lt.s32.totalorder %s349, 31
      %s351 = scalar_select %p350, %s349, 31
      %s352 = smul.addr %s351, 8
      %s353 = scalar_lea.vmem %s10, %s352
      %s354 = smul.u32 32, %s27
      %p355 = scmp.lt.s32.totalorder %s354, 31
      %s356 = scalar_select %p355, %s354, 31
      %s357 = smul.addr %s356, 8
      %s358 = scalar_lea.vmem %s10, %s357
      %s359 = smul.u32 32, %s27
      %p361 = scmp.lt.s32.totalorder %s26, 0
      %s362 = ssub.s32 0, %s26
      %s363 = scalar_select %p361, %s362, %s26
      %s364 = sand.u32 %s363, 1
      %s365 = ssub.s32 0, %s364
      %s366 = scalar_select %p361, %s365, %s364
      %p367 = scmp.ne.s32.totalorder %s366, 0
      %p368 = scmp.lt.s32.totalorder %s366, 0
      %p369 = pnand %p368, %p367
      %p370 = pneg %p369
      %s371 = sadd.s32 %s366, 2
      %s372 = scalar_select %p370, %s371, %s366
      %s373 = ssub.s32 1, %s372
      %s374 = smul.u32 %s27, 256
      %s375 = smul.u32 %s28, 256
      %s376 = smul.u32 %s372, 256
      %s377 = sadd.s32 %s376, %s375
      %s378 = sadd.s32 %s376, %s374
      %s379 = smul.u32 %s373, 256
      %s380 = sadd.s32 %s379, %s374
      %p381 = scmp.eq.s32.totalorder %s26, 0
      %p382 = scmp.eq.s32.totalorder %s27, 0
      %p383 = pnand %p381, %p382
      %p384 = pneg %p383
      // Predicated region
      $region61: #{residual_gc_forward.1} parent=59 // pred_check
        _
      $region62: #{residual_gc_forward.1} parent=59 // pred_check_branch
        %386 = sbr.rel (%p383) target = $region64
      $region63: #{residual_gc_forward.1} parent=59 // pred_region
        %s387 = sshra.s32 %s375, 3
        %s388 = sand.u32 %s375, 7
        %s389 = smul.addr %s387, 4
        %s390 = scalar_lea.vmem %s1, %s389
        %v391 = vld [vmem:[%s390] sm:$0xf]
        %v392 = vld [vmem:[%s390 + $0x4] sm:$0xf]
        %v393 = vld [vmem:[%s390 + $0x8] sm:$0xf]
        %v394 = vld [vmem:[%s390 + $0xc] sm:$0xf]
        %v395 = vld [vmem:[%s390 + $0x10] sm:$0xf]
        %v396 = vld [vmem:[%s390 + $0x14] sm:$0xf]
        %v397 = vld [vmem:[%s390 + $0x18] sm:$0xf]
        %v398 = vld [vmem:[%s390 + $0x1c] sm:$0xf]
        %v399 = vld [vmem:[%s390 + $0x20] sm:$0xf]
        %v400 = vld [vmem:[%s390 + $0x24] sm:$0xf]
        %v401 = vld [vmem:[%s390 + $0x28] sm:$0xf]
        %v402 = vld [vmem:[%s390 + $0x2c] sm:$0xf]
        %v403 = vld [vmem:[%s390 + $0x30] sm:$0xf]
        %v404 = vld [vmem:[%s390 + $0x34] sm:$0xf]
        %v405 = vld [vmem:[%s390 + $0x38] sm:$0xf]
        %v406 = vld [vmem:[%s390 + $0x3c] sm:$0xf]
        %v407 = vld [vmem:[%s390 + $0x40] sm:$0xf]
        %v408 = vld [vmem:[%s390 + $0x44] sm:$0xf]
        %v409 = vld [vmem:[%s390 + $0x48] sm:$0xf]
        %v410 = vld [vmem:[%s390 + $0x4c] sm:$0xf]
        %v411 = vld [vmem:[%s390 + $0x50] sm:$0xf]
        %v412 = vld [vmem:[%s390 + $0x54] sm:$0xf]
        %v413 = vld [vmem:[%s390 + $0x58] sm:$0xf]
        %v414 = vld [vmem:[%s390 + $0x5c] sm:$0xf]
        %v415 = vld [vmem:[%s390 + $0x60] sm:$0xf]
        %v416 = vld [vmem:[%s390 + $0x64] sm:$0xf]
        %v417 = vld [vmem:[%s390 + $0x68] sm:$0xf]
        %v418 = vld [vmem:[%s390 + $0x6c] sm:$0xf]
        %v419 = vld [vmem:[%s390 + $0x70] sm:$0xf]
        %v420 = vld [vmem:[%s390 + $0x74] sm:$0xf]
        %v421 = vld [vmem:[%s390 + $0x78] sm:$0xf]
        %v422 = vld [vmem:[%s390 + $0x7c] sm:$0xf]
        %v423 = vld [vmem:[%s4] sm:$0xf]
        %v424 = vld [vmem:[%s4 + $0x4] sm:$0xf]
        %v425 = vld [vmem:[%s4 + $0x8] sm:$0xf]
        %v426 = vld [vmem:[%s4 + $0xc] sm:$0xf]
        %v427 = vld [vmem:[%s4 + $0x10] sm:$0xf]
        %v428 = vld [vmem:[%s4 + $0x14] sm:$0xf]
        %v429 = vld [vmem:[%s4 + $0x18] sm:$0xf]
        %v430 = vld [vmem:[%s4 + $0x1c] sm:$0xf]
        %v431 = vld [vmem:[%s4 + $0x20] sm:$0xf]
        %v432 = vld [vmem:[%s4 + $0x24] sm:$0xf]
        %v433 = vld [vmem:[%s4 + $0x28] sm:$0xf]
        %v434 = vld [vmem:[%s4 + $0x2c] sm:$0xf]
        %v435 = vld [vmem:[%s4 + $0x30] sm:$0xf]
        %v436 = vld [vmem:[%s4 + $0x34] sm:$0xf]
        %v437 = vld [vmem:[%s4 + $0x38] sm:$0xf]
        %v438 = vld [vmem:[%s4 + $0x3c] sm:$0xf]
        %v471 = vunpack.c.l.b16 %v391
        %v472 = vunpack.c.l.b16 %v392
        %v473 = vunpack.c.l.b16 %v393
        %v474 = vunpack.c.l.b16 %v394
        %v475 = vunpack.c.l.b16 %v395
        %v476 = vunpack.c.l.b16 %v396
        %v477 = vunpack.c.l.b16 %v397
        %v478 = vunpack.c.l.b16 %v398
        %v479 = vunpack.c.l.b16 %v399
        %v480 = vunpack.c.l.b16 %v400
        %v481 = vunpack.c.l.b16 %v401
        %v482 = vunpack.c.l.b16 %v402
        %v483 = vunpack.c.l.b16 %v403
        %v484 = vunpack.c.l.b16 %v404
        %v485 = vunpack.c.l.b16 %v405
        %v486 = vunpack.c.l.b16 %v406
        %v487 = vunpack.c.l.b16 %v407
        %v488 = vunpack.c.l.b16 %v408
        %v489 = vunpack.c.l.b16 %v409
        %v490 = vunpack.c.l.b16 %v410
        %v491 = vunpack.c.l.b16 %v411
        %v492 = vunpack.c.l.b16 %v412
        %v493 = vunpack.c.l.b16 %v413
        %v494 = vunpack.c.l.b16 %v414
        %v495 = vunpack.c.l.b16 %v415
        %v496 = vunpack.c.l.b16 %v416
        %v497 = vunpack.c.l.b16 %v417
        %v498 = vunpack.c.l.b16 %v418
        %v499 = vunpack.c.l.b16 %v419
        %v500 = vunpack.c.l.b16 %v420
        %v501 = vunpack.c.l.b16 %v421
        %v502 = vunpack.c.l.b16 %v422
        %v503 = vpack.c.b16 %v472, %v471
        %v504 = vpack.c.b16 %v474, %v473
        %v505 = vpack.c.b16 %v476, %v475
        %v506 = vpack.c.b16 %v478, %v477
        %v507 = vpack.c.b16 %v480, %v479
        %v508 = vpack.c.b16 %v482, %v481
        %v509 = vpack.c.b16 %v484, %v483
        %v510 = vpack.c.b16 %v486, %v485
        %v511 = vpack.c.b16 %v488, %v487
        %v512 = vpack.c.b16 %v490, %v489
        %v513 = vpack.c.b16 %v492, %v491
        %v514 = vpack.c.b16 %v494, %v493
        %v515 = vpack.c.b16 %v496, %v495
        %v516 = vpack.c.b16 %v498, %v497
        %v517 = vpack.c.b16 %v500, %v499
        %v518 = vpack.c.b16 %v502, %v501
        %v551 = vunpack.c.l.b16 %v423
        %v552 = vunpack.c.l.b16 %v424
        %v553 = vunpack.c.l.b16 %v425
        %v554 = vunpack.c.l.b16 %v426
        %v555 = vunpack.c.l.b16 %v427
        %v556 = vunpack.c.l.b16 %v428
        %v557 = vunpack.c.l.b16 %v429
        %v558 = vunpack.c.l.b16 %v430
        %v559 = vunpack.c.l.b16 %v431
        %v560 = vunpack.c.l.b16 %v432
        %v561 = vunpack.c.l.b16 %v433
        %v562 = vunpack.c.l.b16 %v434
        %v563 = vunpack.c.l.b16 %v435
        %v564 = vunpack.c.l.b16 %v436
        %v565 = vunpack.c.l.b16 %v437
        %v566 = vunpack.c.l.b16 %v438
        %v567 = vpack.c.b16 %v552, %v551
        %v568 = vpack.c.b16 %v554, %v553
        %v569 = vpack.c.b16 %v556, %v555
        %v570 = vpack.c.b16 %v558, %v557
        %v571 = vpack.c.b16 %v560, %v559
        %v572 = vpack.c.b16 %v562, %v561
        %v573 = vpack.c.b16 %v564, %v563
        %v574 = vpack.c.b16 %v566, %v565
        %583 = vmatprep.subr.bf16.mxu0 0
        %584 = vmatpush1.bf16.msra.mxu0 %v574
        %585 = vmatprep.subr.bf16.mxu0 0
        %586 = vmatpush1.bf16.msra.mxu0 %v573
        %587 = vmatprep.subr.bf16.mxu0 0
        %588 = vmatpush1.bf16.msra.mxu0 %v572
        %589 = vmatprep.subr.bf16.mxu0 0
        %590 = vmatpush1.bf16.msra.mxu0 %v571
        %591 = vmatprep.subr.bf16.mxu0 0
        %592 = vmatpush1.bf16.msra.mxu0 %v570
        %593 = vmatprep.subr.bf16.mxu0 0
        %594 = vmatpush1.bf16.msra.mxu0 %v569
        %595 = vmatprep.subr.bf16.mxu0 0
        %596 = vmatpush1.bf16.msra.mxu0 %v568
        %597 = vmatprep.subr.bf16.mxu0 0
        %598 = vmatpush1.bf16.msra.mxu0 %v567
        %599 = vmatprep.subr.bf16.mxu0 0
        %600 = vmatpush2.bf16.msra.mxu0 0
        %601 = vmatprep.subr.bf16.mxu0 0
        %602 = vmatpush2.bf16.msra.mxu0 0
        %603 = vmatprep.subr.bf16.mxu0 0
        %604 = vmatpush2.bf16.msra.mxu0 0
        %605 = vmatprep.subr.bf16.mxu0 0
        %606 = vmatpush2.bf16.msra.mxu0 0
        %607 = vmatprep.subr.bf16.mxu0 0
        %608 = vmatpush2.bf16.msra.mxu0 0
        %609 = vmatprep.subr.bf16.mxu0 0
        %610 = vmatpush2.bf16.msra.mxu0 0
        %611 = vmatprep.subr.bf16.mxu0 0
        %612 = vmatpush2.bf16.msra.mxu0 0
        %613 = vmatprep.subr.bf16.mxu0 0
        %614 = vmatpush2.bf16.msra.mxu0 0
        %615 = vmatprep.mubr.bf16.mxu0 0
        %616 = vmatmul.mubr.bf16.gmra.mxu0 %v503
        %v617 = vpop.f32.mrf.mxu0
        %v618 = vadd.f32 0.0, %v617
        %v619 = vpop.f32.mrf.mxu0
        %v620 = vpop.f32.mrf.mxu0
        %v621 = vadd.f32 0.0, %v620
        %v622 = vpop.f32.mrf.mxu0
        %623 = vmatprep.mubr.bf16.mxu0 0
        %624 = vmatmul.mubr.bf16.gmra.mxu0 %v504
        %v625 = vpop.f32.mrf.mxu0
        %v626 = vadd.f32 0.0, %v625
        %v627 = vpop.f32.mrf.mxu0
        %v628 = vpop.f32.mrf.mxu0
        %v629 = vadd.f32 0.0, %v628
        %v630 = vpop.f32.mrf.mxu0
        %631 = vmatprep.mubr.bf16.mxu0 0
        %632 = vmatmul.mubr.bf16.gmra.mxu0 %v505
        %v633 = vpop.f32.mrf.mxu0
        %v634 = vadd.f32 0.0, %v633
        %v635 = vpop.f32.mrf.mxu0
        %v636 = vpop.f32.mrf.mxu0
        %v637 = vadd.f32 0.0, %v636
        %v638 = vpop.f32.mrf.mxu0
        %639 = vmatprep.mubr.bf16.mxu0 0
        %640 = vmatmul.mubr.bf16.gmra.mxu0 %v506
        %v641 = vpop.f32.mrf.mxu0
        %v642 = vadd.f32 0.0, %v641
        %v643 = vpop.f32.mrf.mxu0
        %v644 = vpop.f32.mrf.mxu0
        %v645 = vadd.f32 0.0, %v644
        %v646 = vpop.f32.mrf.mxu0
        %647 = vmatprep.mubr.bf16.mxu0 0
        %648 = vmatmul.mubr.bf16.gmra.mxu0 %v507
        %v649 = vpop.f32.mrf.mxu0
        %v650 = vadd.f32 0.0, %v649
        %v651 = vpop.f32.mrf.mxu0
        %v652 = vpop.f32.mrf.mxu0
        %v653 = vadd.f32 0.0, %v652
        %v654 = vpop.f32.mrf.mxu0
        %655 = vmatprep.mubr.bf16.mxu0 0
        %656 = vmatmul.mubr.bf16.gmra.mxu0 %v508
        %v657 = vpop.f32.mrf.mxu0
        %v658 = vadd.f32 0.0, %v657
        %v659 = vpop.f32.mrf.mxu0
        %v660 = vpop.f32.mrf.mxu0
        %v661 = vadd.f32 0.0, %v660
        %v662 = vpop.f32.mrf.mxu0
        %663 = vmatprep.mubr.bf16.mxu0 0
        %664 = vmatmul.mubr.bf16.gmra.mxu0 %v509
        %v665 = vpop.f32.mrf.mxu0
        %v666 = vadd.f32 0.0, %v665
        %v667 = vpop.f32.mrf.mxu0
        %v668 = vpop.f32.mrf.mxu0
        %v669 = vadd.f32 0.0, %v668
        %v670 = vpop.f32.mrf.mxu0
        %671 = vmatprep.mubr.bf16.mxu0 0
        %672 = vmatmul.mubr.bf16.gmra.mxu0 %v510
        %v673 = vpop.f32.mrf.mxu0
        %v674 = vadd.f32 0.0, %v673
        %v675 = vpop.f32.mrf.mxu0
        %v676 = vpop.f32.mrf.mxu0
        %v677 = vadd.f32 0.0, %v676
        %v678 = vpop.f32.mrf.mxu0
        %679 = vmatprep.mubr.bf16.mxu0 0
        %680 = vmatmul.mubr.bf16.gmra.mxu0 %v511
        %v681 = vpop.f32.mrf.mxu0
        %v682 = vadd.f32 0.0, %v681
        %v683 = vpop.f32.mrf.mxu0
        %v684 = vpop.f32.mrf.mxu0
        %v685 = vadd.f32 0.0, %v684
        %v686 = vpop.f32.mrf.mxu0
        %687 = vmatprep.mubr.bf16.mxu0 0
        %688 = vmatmul.mubr.bf16.gmra.mxu0 %v512
        %v689 = vpop.f32.mrf.mxu0
        %v690 = vadd.f32 0.0, %v689
        %v691 = vpop.f32.mrf.mxu0
        %v692 = vpop.f32.mrf.mxu0
        %v693 = vadd.f32 0.0, %v692
        %v694 = vpop.f32.mrf.mxu0
        %695 = vmatprep.mubr.bf16.mxu0 0
        %696 = vmatmul.mubr.bf16.gmra.mxu0 %v513
        %v697 = vpop.f32.mrf.mxu0
        %v698 = vadd.f32 0.0, %v697
        %v699 = vpop.f32.mrf.mxu0
        %v700 = vpop.f32.mrf.mxu0
        %v701 = vadd.f32 0.0, %v700
        %v702 = vpop.f32.mrf.mxu0
        %703 = vmatprep.mubr.bf16.mxu0 0
        %704 = vmatmul.mubr.bf16.gmra.mxu0 %v514
        %v705 = vpop.f32.mrf.mxu0
        %v706 = vadd.f32 0.0, %v705
        %v707 = vpop.f32.mrf.mxu0
        %v708 = vpop.f32.mrf.mxu0
        %v709 = vadd.f32 0.0, %v708
        %v710 = vpop.f32.mrf.mxu0
        %711 = vmatprep.mubr.bf16.mxu0 0
        %712 = vmatmul.mubr.bf16.gmra.mxu0 %v515
        %v713 = vpop.f32.mrf.mxu0
        %v714 = vadd.f32 0.0, %v713
        %v715 = vpop.f32.mrf.mxu0
        %v716 = vpop.f32.mrf.mxu0
        %v717 = vadd.f32 0.0, %v716
        %v718 = vpop.f32.mrf.mxu0
        %719 = vmatprep.mubr.bf16.mxu0 0
        %720 = vmatmul.mubr.bf16.gmra.mxu0 %v516
        %v721 = vpop.f32.mrf.mxu0
        %v722 = vadd.f32 0.0, %v721
        %v723 = vpop.f32.mrf.mxu0
        %v724 = vpop.f32.mrf.mxu0
        %v725 = vadd.f32 0.0, %v724
        %v726 = vpop.f32.mrf.mxu0
        %727 = vmatprep.mubr.bf16.mxu0 0
        %728 = vmatmul.mubr.bf16.gmra.mxu0 %v517
        %v729 = vpop.f32.mrf.mxu0
        %v730 = vadd.f32 0.0, %v729
        %v731 = vpop.f32.mrf.mxu0
        %v732 = vpop.f32.mrf.mxu0
        %v733 = vadd.f32 0.0, %v732
        %v734 = vpop.f32.mrf.mxu0
        %735 = vmatprep.mubr.bf16.mxu0 0
        %736 = vmatmul.mubr.bf16.gmra.mxu0 %v518
        %v737 = vpop.f32.mrf.mxu0
        %v738 = vadd.f32 0.0, %v737
        %v739 = vpop.f32.mrf.mxu0
        %v740 = vpop.f32.mrf.mxu0
        %v741 = vadd.f32 0.0, %v740
        %v742 = vpop.f32.mrf.mxu0
        %743 = vdwg.mxu0
        %s744 = scalar_lea.vmem %s2, %s375
        %v745 = vld [vmem:[%s744] sm:$0xff]
        %v746 = vld [vmem:[%s744 + $0x8] sm:$0xff]
        %v747 = vld [vmem:[%s744 + $0x10] sm:$0xff]
        %v748 = vld [vmem:[%s744 + $0x18] sm:$0xff]
        %v749 = vld [vmem:[%s744 + $0x20] sm:$0xff]
        %v750 = vld [vmem:[%s744 + $0x28] sm:$0xff]
        %v751 = vld [vmem:[%s744 + $0x30] sm:$0xff]
        %v752 = vld [vmem:[%s744 + $0x38] sm:$0xff]
        %v753 = vld [vmem:[%s744 + $0x40] sm:$0xff]
        %v754 = vld [vmem:[%s744 + $0x48] sm:$0xff]
        %v755 = vld [vmem:[%s744 + $0x50] sm:$0xff]
        %v756 = vld [vmem:[%s744 + $0x58] sm:$0xff]
        %v757 = vld [vmem:[%s744 + $0x60] sm:$0xff]
        %v758 = vld [vmem:[%s744 + $0x68] sm:$0xff]
        %v759 = vld [vmem:[%s744 + $0x70] sm:$0xff]
        %v760 = vld [vmem:[%s744 + $0x78] sm:$0xff]
        %v761 = vld [vmem:[%s744 + $0x80] sm:$0xff]
        %v762 = vld [vmem:[%s744 + $0x88] sm:$0xff]
        %v763 = vld [vmem:[%s744 + $0x90] sm:$0xff]
        %v764 = vld [vmem:[%s744 + $0x98] sm:$0xff]
        %v765 = vld [vmem:[%s744 + $0xa0] sm:$0xff]
        %v766 = vld [vmem:[%s744 + $0xa8] sm:$0xff]
        %v767 = vld [vmem:[%s744 + $0xb0] sm:$0xff]
        %v768 = vld [vmem:[%s744 + $0xb8] sm:$0xff]
        %v769 = vld [vmem:[%s744 + $0xc0] sm:$0xff]
        %v770 = vld [vmem:[%s744 + $0xc8] sm:$0xff]
        %v771 = vld [vmem:[%s744 + $0xd0] sm:$0xff]
        %v772 = vld [vmem:[%s744 + $0xd8] sm:$0xff]
        %v773 = vld [vmem:[%s744 + $0xe0] sm:$0xff]
        %v774 = vld [vmem:[%s744 + $0xe8] sm:$0xff]
        %v775 = vld [vmem:[%s744 + $0xf0] sm:$0xff]
        %v776 = vld [vmem:[%s744 + $0xf8] sm:$0xff]
        %778 = vset.pattern.permute.xlu0 0
        %779 = vperm.xlu0 %778, %v745
        %v780 = vpop.permute.xlu0 %779
        %783 = vset.pattern.permute.xlu0 0
        %784 = vperm.xlu0 %783, %v746
        %v785 = vpop.permute.xlu0 %784
        %788 = vset.pattern.permute.xlu0 0
        %789 = vperm.xlu0 %788, %v747
        %v790 = vpop.permute.xlu0 %789
        %793 = vset.pattern.permute.xlu0 0
        %794 = vperm.xlu0 %793, %v748
        %v795 = vpop.permute.xlu0 %794
        %798 = vset.pattern.permute.xlu0 0
        %799 = vperm.xlu0 %798, %v749
        %v800 = vpop.permute.xlu0 %799
        %803 = vset.pattern.permute.xlu0 0
        %804 = vperm.xlu0 %803, %v750
        %v805 = vpop.permute.xlu0 %804
        %808 = vset.pattern.permute.xlu0 0
        %809 = vperm.xlu0 %808, %v751
        %v810 = vpop.permute.xlu0 %809
        %813 = vset.pattern.permute.xlu0 0
        %814 = vperm.xlu0 %813, %v752
        %v815 = vpop.permute.xlu0 %814
        %818 = vset.pattern.permute.xlu0 0
        %819 = vperm.xlu0 %818, %v753
        %v820 = vpop.permute.xlu0 %819
        %823 = vset.pattern.permute.xlu0 0
        %824 = vperm.xlu0 %823, %v754
        %v825 = vpop.permute.xlu0 %824
        %828 = vset.pattern.permute.xlu0 0
        %829 = vperm.xlu0 %828, %v755
        %v830 = vpop.permute.xlu0 %829
        %833 = vset.pattern.permute.xlu0 0
        %834 = vperm.xlu0 %833, %v756
        %v835 = vpop.permute.xlu0 %834
        %838 = vset.pattern.permute.xlu0 0
        %839 = vperm.xlu0 %838, %v757
        %v840 = vpop.permute.xlu0 %839
        %843 = vset.pattern.permute.xlu0 0
        %844 = vperm.xlu0 %843, %v758
        %v845 = vpop.permute.xlu0 %844
        %848 = vset.pattern.permute.xlu0 0
        %849 = vperm.xlu0 %848, %v759
        %v850 = vpop.permute.xlu0 %849
        %853 = vset.pattern.permute.xlu0 0
        %854 = vperm.xlu0 %853, %v760
        %v855 = vpop.permute.xlu0 %854
        %858 = vset.pattern.permute.xlu0 0
        %859 = vperm.xlu0 %858, %v761
        %v860 = vpop.permute.xlu0 %859
        %863 = vset.pattern.permute.xlu0 0
        %864 = vperm.xlu0 %863, %v762
        %v865 = vpop.permute.xlu0 %864
        %868 = vset.pattern.permute.xlu0 0
        %869 = vperm.xlu0 %868, %v763
        %v870 = vpop.permute.xlu0 %869
        %873 = vset.pattern.permute.xlu0 0
        %874 = vperm.xlu0 %873, %v764
        %v875 = vpop.permute.xlu0 %874
        %878 = vset.pattern.permute.xlu0 0
        %879 = vperm.xlu0 %878, %v765
        %v880 = vpop.permute.xlu0 %879
        %883 = vset.pattern.permute.xlu0 0
        %884 = vperm.xlu0 %883, %v766
        %v885 = vpop.permute.xlu0 %884
        %888 = vset.pattern.permute.xlu0 0
        %889 = vperm.xlu0 %888, %v767
        %v890 = vpop.permute.xlu0 %889
        %893 = vset.pattern.permute.xlu0 0
        %894 = vperm.xlu0 %893, %v768
        %v895 = vpop.permute.xlu0 %894
        %898 = vset.pattern.permute.xlu0 0
        %899 = vperm.xlu0 %898, %v769
        %v900 = vpop.permute.xlu0 %899
        %903 = vset.pattern.permute.xlu0 0
        %904 = vperm.xlu0 %903, %v770
        %v905 = vpop.permute.xlu0 %904
        %908 = vset.pattern.permute.xlu0 0
        %909 = vperm.xlu0 %908, %v771
        %v910 = vpop.permute.xlu0 %909
        %913 = vset.pattern.permute.xlu0 0
        %914 = vperm.xlu0 %913, %v772
        %v915 = vpop.permute.xlu0 %914
        %918 = vset.pattern.permute.xlu0 0
        %919 = vperm.xlu0 %918, %v773
        %v920 = vpop.permute.xlu0 %919
        %923 = vset.pattern.permute.xlu0 0
        %924 = vperm.xlu0 %923, %v774
        %v925 = vpop.permute.xlu0 %924
        %928 = vset.pattern.permute.xlu0 0
        %929 = vperm.xlu0 %928, %v775
        %v930 = vpop.permute.xlu0 %929
        %933 = vset.pattern.permute.xlu0 0
        %934 = vperm.xlu0 %933, %v776
        %v935 = vpop.permute.xlu0 %934
        %v937 = vmul.f32 %v780, %v618
        %v938 = vmul.f32 %v785, %v621
        %v939 = vmul.f32 %v790, %v626
        %v940 = vmul.f32 %v795, %v629
        %v941 = vmul.f32 %v800, %v634
        %v942 = vmul.f32 %v805, %v637
        %v943 = vmul.f32 %v810, %v642
        %v944 = vmul.f32 %v815, %v645
        %v945 = vmul.f32 %v820, %v650
        %v946 = vmul.f32 %v825, %v653
        %v947 = vmul.f32 %v830, %v658
        %v948 = vmul.f32 %v835, %v661
        %v949 = vmul.f32 %v840, %v666
        %v950 = vmul.f32 %v845, %v669
        %v951 = vmul.f32 %v850, %v674
        %v952 = vmul.f32 %v855, %v677
        %v953 = vmul.f32 %v860, %v682
        %v954 = vmul.f32 %v865, %v685
        %v955 = vmul.f32 %v870, %v690
        %v956 = vmul.f32 %v875, %v693
        %v957 = vmul.f32 %v880, %v698
        %v958 = vmul.f32 %v885, %v701
        %v959 = vmul.f32 %v890, %v706
        %v960 = vmul.f32 %v895, %v709
        %v961 = vmul.f32 %v900, %v714
        %v962 = vmul.f32 %v905, %v717
        %v963 = vmul.f32 %v910, %v722
        %v964 = vmul.f32 %v915, %v725
        %v965 = vmul.f32 %v920, %v730
        %v966 = vmul.f32 %v925, %v733
        %v967 = vmul.f32 %v930, %v738
        %v968 = vmul.f32 %v935, %v741
        %v969 = vpack.c.bf16 %v938, %v937
        %v970 = vpack.c.bf16 %v940, %v939
        %v971 = vpack.c.bf16 %v942, %v941
        %v972 = vpack.c.bf16 %v944, %v943
        %v973 = vpack.c.bf16 %v946, %v945
        %v974 = vpack.c.bf16 %v948, %v947
        %v975 = vpack.c.bf16 %v950, %v949
        %v976 = vpack.c.bf16 %v952, %v951
        %v977 = vpack.c.bf16 %v954, %v953
        %v978 = vpack.c.bf16 %v956, %v955
        %v979 = vpack.c.bf16 %v958, %v957
        %v980 = vpack.c.bf16 %v960, %v959
        %v981 = vpack.c.bf16 %v962, %v961
        %v982 = vpack.c.bf16 %v964, %v963
        %v983 = vpack.c.bf16 %v966, %v965
        %v984 = vpack.c.bf16 %v968, %v967
        %v1001 = vunpack.c.l.b16 %v969
        %v1002 = vunpack.c.h.b16 %v969
        %v1003 = vunpack.c.l.b16 %v970
        %v1004 = vunpack.c.h.b16 %v970
        %v1005 = vunpack.c.l.b16 %v971
        %v1006 = vunpack.c.h.b16 %v971
        %v1007 = vunpack.c.l.b16 %v972
        %v1008 = vunpack.c.h.b16 %v972
        %v1009 = vunpack.c.l.b16 %v973
        %v1010 = vunpack.c.h.b16 %v973
        %v1011 = vunpack.c.l.b16 %v974
        %v1012 = vunpack.c.h.b16 %v974
        %v1013 = vunpack.c.l.b16 %v975
        %v1014 = vunpack.c.h.b16 %v975
        %v1015 = vunpack.c.l.b16 %v976
        %v1016 = vunpack.c.h.b16 %v976
        %v1017 = vunpack.c.l.b16 %v977
        %v1018 = vunpack.c.h.b16 %v977
        %v1019 = vunpack.c.l.b16 %v978
        %v1020 = vunpack.c.h.b16 %v978
        %v1021 = vunpack.c.l.b16 %v979
        %v1022 = vunpack.c.h.b16 %v979
        %v1023 = vunpack.c.l.b16 %v980
        %v1024 = vunpack.c.h.b16 %v980
        %v1025 = vunpack.c.l.b16 %v981
        %v1026 = vunpack.c.h.b16 %v981
        %v1027 = vunpack.c.l.b16 %v982
        %v1028 = vunpack.c.h.b16 %v982
        %v1029 = vunpack.c.l.b16 %v983
        %v1030 = vunpack.c.h.b16 %v983
        %v1031 = vunpack.c.l.b16 %v984
        %v1032 = vunpack.c.h.b16 %v984
        %v1033 = vpack.c.b16 %v1001, %v1001
        %v1034 = vpack.c.b16 %v1002, %v1002
        %v1035 = vpack.c.b16 %v1003, %v1003
        %v1036 = vpack.c.b16 %v1004, %v1004
        %v1037 = vpack.c.b16 %v1005, %v1005
        %v1038 = vpack.c.b16 %v1006, %v1006
        %v1039 = vpack.c.b16 %v1007, %v1007
        %v1040 = vpack.c.b16 %v1008, %v1008
        %v1041 = vpack.c.b16 %v1009, %v1009
        %v1042 = vpack.c.b16 %v1010, %v1010
        %v1043 = vpack.c.b16 %v1011, %v1011
        %v1044 = vpack.c.b16 %v1012, %v1012
        %v1045 = vpack.c.b16 %v1013, %v1013
        %v1046 = vpack.c.b16 %v1014, %v1014
        %v1047 = vpack.c.b16 %v1015, %v1015
        %v1048 = vpack.c.b16 %v1016, %v1016
        %v1049 = vpack.c.b16 %v1017, %v1017
        %v1050 = vpack.c.b16 %v1018, %v1018
        %v1051 = vpack.c.b16 %v1019, %v1019
        %v1052 = vpack.c.b16 %v1020, %v1020
        %v1053 = vpack.c.b16 %v1021, %v1021
        %v1054 = vpack.c.b16 %v1022, %v1022
        %v1055 = vpack.c.b16 %v1023, %v1023
        %v1056 = vpack.c.b16 %v1024, %v1024
        %v1057 = vpack.c.b16 %v1025, %v1025
        %v1058 = vpack.c.b16 %v1026, %v1026
        %v1059 = vpack.c.b16 %v1027, %v1027
        %v1060 = vpack.c.b16 %v1028, %v1028
        %v1061 = vpack.c.b16 %v1029, %v1029
        %v1062 = vpack.c.b16 %v1030, %v1030
        %v1063 = vpack.c.b16 %v1031, %v1031
        %v1064 = vpack.c.b16 %v1032, %v1032
        %s1097 = sshra.s32 %s377, 3
        %s1098 = sand.u32 %s377, 7
        %s1099 = smul.addr %s1097, 4
        %s1100 = scalar_lea.vmem [#allocation2], %s1099
        %1101 = vst [vmem:[%s1100] sm:$0xf] %v1033
        %1102 = vst [vmem:[%s1100 + $0x4] sm:$0xf] %v1034
        %1103 = vst [vmem:[%s1100 + $0x8] sm:$0xf] %v1035
        %1104 = vst [vmem:[%s1100 + $0xc] sm:$0xf] %v1036
        %1105 = vst [vmem:[%s1100 + $0x10] sm:$0xf] %v1037
        %1106 = vst [vmem:[%s1100 + $0x14] sm:$0xf] %v1038
        %1107 = vst [vmem:[%s1100 + $0x18] sm:$0xf] %v1039
        %1108 = vst [vmem:[%s1100 + $0x1c] sm:$0xf] %v1040
        %1109 = vst [vmem:[%s1100 + $0x20] sm:$0xf] %v1041
        %1110 = vst [vmem:[%s1100 + $0x24] sm:$0xf] %v1042
        %1111 = vst [vmem:[%s1100 + $0x28] sm:$0xf] %v1043
        %1112 = vst [vmem:[%s1100 + $0x2c] sm:$0xf] %v1044
        %1113 = vst [vmem:[%s1100 + $0x30] sm:$0xf] %v1045
        %1114 = vst [vmem:[%s1100 + $0x34] sm:$0xf] %v1046
        %1115 = vst [vmem:[%s1100 + $0x38] sm:$0xf] %v1047
        %1116 = vst [vmem:[%s1100 + $0x3c] sm:$0xf] %v1048
        %1117 = vst [vmem:[%s1100 + $0x40] sm:$0xf] %v1049
        %1118 = vst [vmem:[%s1100 + $0x44] sm:$0xf] %v1050
        %1119 = vst [vmem:[%s1100 + $0x48] sm:$0xf] %v1051
        %1120 = vst [vmem:[%s1100 + $0x4c] sm:$0xf] %v1052
        %1121 = vst [vmem:[%s1100 + $0x50] sm:$0xf] %v1053
        %1122 = vst [vmem:[%s1100 + $0x54] sm:$0xf] %v1054
        %1123 = vst [vmem:[%s1100 + $0x58] sm:$0xf] %v1055
        %1124 = vst [vmem:[%s1100 + $0x5c] sm:$0xf] %v1056
        %1125 = vst [vmem:[%s1100 + $0x60] sm:$0xf] %v1057
        %1126 = vst [vmem:[%s1100 + $0x64] sm:$0xf] %v1058
        %1127 = vst [vmem:[%s1100 + $0x68] sm:$0xf] %v1059
        %1128 = vst [vmem:[%s1100 + $0x6c] sm:$0xf] %v1060
        %1129 = vst [vmem:[%s1100 + $0x70] sm:$0xf] %v1061
        %1130 = vst [vmem:[%s1100 + $0x74] sm:$0xf] %v1062
        %1131 = vst [vmem:[%s1100 + $0x78] sm:$0xf] %v1063
        %1132 = vst [vmem:[%s1100 + $0x7c] sm:$0xf] %v1064
      $region64: #{residual_gc_forward.1} parent=59 // pred_fallthru
        _
      %p1133 = scmp.eq.s32.totalorder %s28, 0
      // Predicated region
      $region65: #{residual_gc_forward.1} parent=59 // pred_check
        %p1134 = pneg %p1133
      $region66: #{residual_gc_forward.1} parent=59 // pred_check_branch
        %1136 = sbr.rel (%p1134) target = $region68
      $region67: #{residual_gc_forward.1} parent=59 // pred_region
        %1137 = vst [vmem:[#allocation4] sm:$0xff] 0.0
        %1138 = vst [vmem:[#allocation4 + $0x8] sm:$0xff] 0.0
        %1139 = vst [vmem:[#allocation4 + $0x10] sm:$0xff] 0.0
        %1140 = vst [vmem:[#allocation4 + $0x18] sm:$0xff] 0.0
        %1141 = vst [vmem:[#allocation4 + $0x20] sm:$0xff] 0.0
        %1142 = vst [vmem:[#allocation4 + $0x28] sm:$0xff] 0.0
        %1143 = vst [vmem:[#allocation4 + $0x30] sm:$0xff] 0.0
        %1144 = vst [vmem:[#allocation4 + $0x38] sm:$0xff] 0.0
        %1145 = vst [vmem:[#allocation4 + $0x40] sm:$0xff] 0.0
        %1146 = vst [vmem:[#allocation4 + $0x48] sm:$0xff] 0.0
        %1147 = vst [vmem:[#allocation4 + $0x50] sm:$0xff] 0.0
        %1148 = vst [vmem:[#allocation4 + $0x58] sm:$0xff] 0.0
        %1149 = vst [vmem:[#allocation4 + $0x60] sm:$0xff] 0.0
        %1150 = vst [vmem:[#allocation4 + $0x68] sm:$0xff] 0.0
        %1151 = vst [vmem:[#allocation4 + $0x70] sm:$0xff] 0.0
        %1152 = vst [vmem:[#allocation4 + $0x78] sm:$0xff] 0.0
        %1153 = vst [vmem:[#allocation4 + $0x80] sm:$0xff] 0.0
        %1154 = vst [vmem:[#allocation4 + $0x88] sm:$0xff] 0.0
        %1155 = vst [vmem:[#allocation4 + $0x90] sm:$0xff] 0.0
        %1156 = vst [vmem:[#allocation4 + $0x98] sm:$0xff] 0.0
        %1157 = vst [vmem:[#allocation4 + $0xa0] sm:$0xff] 0.0
        %1158 = vst [vmem:[#allocation4 + $0xa8] sm:$0xff] 0.0
        %1159 = vst [vmem:[#allocation4 + $0xb0] sm:$0xff] 0.0
        %1160 = vst [vmem:[#allocation4 + $0xb8] sm:$0xff] 0.0
        %1161 = vst [vmem:[#allocation4 + $0xc0] sm:$0xff] 0.0
        %1162 = vst [vmem:[#allocation4 + $0xc8] sm:$0xff] 0.0
        %1163 = vst [vmem:[#allocation4 + $0xd0] sm:$0xff] 0.0
        %1164 = vst [vmem:[#allocation4 + $0xd8] sm:$0xff] 0.0
        %1165 = vst [vmem:[#allocation4 + $0xe0] sm:$0xff] 0.0
        %1166 = vst [vmem:[#allocation4 + $0xe8] sm:$0xff] 0.0
        %1167 = vst [vmem:[#allocation4 + $0xf0] sm:$0xff] 0.0
        %1168 = vst [vmem:[#allocation4 + $0xf8] sm:$0xff] 0.0
      $region68: #{residual_gc_forward.1} parent=59 // pred_fallthru
        _
      %s1169 = sshra.s32 %s374, 3
      %s1170 = sand.u32 %s374, 7
      %s1171 = smul.u32 %s1169, 2
      %s1172 = smul.addr %s1171, 4
      %s1173 = scalar_lea.vmem %s0, %s1172
      %v1174 = vld [vmem:[%s1173] sm:$0xff]
      %v1175 = vld [vmem:[%s1173 + $0x8] sm:$0xff]
      %v1176 = vld [vmem:[%s1173 + $0x10] sm:$0xff]
      %v1177 = vld [vmem:[%s1173 + $0x18] sm:$0xff]
      %v1178 = vld [vmem:[%s1173 + $0x20] sm:$0xff]
      %v1179 = vld [vmem:[%s1173 + $0x28] sm:$0xff]
      %v1180 = vld [vmem:[%s1173 + $0x30] sm:$0xff]
      %v1181 = vld [vmem:[%s1173 + $0x38] sm:$0xff]
      %v1182 = vld [vmem:[%s1173 + $0x40] sm:$0xff]
      %v1183 = vld [vmem:[%s1173 + $0x48] sm:$0xff]
      %v1184 = vld [vmem:[%s1173 + $0x50] sm:$0xff]
      %v1185 = vld [vmem:[%s1173 + $0x58] sm:$0xff]
      %v1186 = vld [vmem:[%s1173 + $0x60] sm:$0xff]
      %v1187 = vld [vmem:[%s1173 + $0x68] sm:$0xff]
      %v1188 = vld [vmem:[%s1173 + $0x70] sm:$0xff]
      %v1189 = vld [vmem:[%s1173 + $0x78] sm:$0xff]
      %v1190 = vld [vmem:[%s1173 + $0x80] sm:$0xff]
      %v1191 = vld [vmem:[%s1173 + $0x88] sm:$0xff]
      %v1192 = vld [vmem:[%s1173 + $0x90] sm:$0xff]
      %v1193 = vld [vmem:[%s1173 + $0x98] sm:$0xff]
      %v1194 = vld [vmem:[%s1173 + $0xa0] sm:$0xff]
      %v1195 = vld [vmem:[%s1173 + $0xa8] sm:$0xff]
      %v1196 = vld [vmem:[%s1173 + $0xb0] sm:$0xff]
      %v1197 = vld [vmem:[%s1173 + $0xb8] sm:$0xff]
      %v1198 = vld [vmem:[%s1173 + $0xc0] sm:$0xff]
      %v1199 = vld [vmem:[%s1173 + $0xc8] sm:$0xff]
      %v1200 = vld [vmem:[%s1173 + $0xd0] sm:$0xff]
      %v1201 = vld [vmem:[%s1173 + $0xd8] sm:$0xff]
      %v1202 = vld [vmem:[%s1173 + $0xe0] sm:$0xff]
      %v1203 = vld [vmem:[%s1173 + $0xe8] sm:$0xff]
      %v1204 = vld [vmem:[%s1173 + $0xf0] sm:$0xff]
      %v1205 = vld [vmem:[%s1173 + $0xf8] sm:$0xff]
      %v1206 = vld [vmem:[#allocation4] sm:$0xff]
      %v1207 = vld [vmem:[#allocation4 + $0x8] sm:$0xff]
      %v1208 = vld [vmem:[#allocation4 + $0x10] sm:$0xff]
      %v1209 = vld [vmem:[#allocation4 + $0x18] sm:$0xff]
      %v1210 = vld [vmem:[#allocation4 + $0x20] sm:$0xff]
      %v1211 = vld [vmem:[#allocation4 + $0x28] sm:$0xff]
      %v1212 = vld [vmem:[#allocation4 + $0x30] sm:$0xff]
      %v1213 = vld [vmem:[#allocation4 + $0x38] sm:$0xff]
      %v1214 = vld [vmem:[#allocation4 + $0x40] sm:$0xff]
      %v1215 = vld [vmem:[#allocation4 + $0x48] sm:$0xff]
      %v1216 = vld [vmem:[#allocation4 + $0x50] sm:$0xff]
      %v1217 = vld [vmem:[#allocation4 + $0x58] sm:$0xff]
      %v1218 = vld [vmem:[#allocation4 + $0x60] sm:$0xff]
      %v1219 = vld [vmem:[#allocation4 + $0x68] sm:$0xff]
      %v1220 = vld [vmem:[#allocation4 + $0x70] sm:$0xff]
      %v1221 = vld [vmem:[#allocation4 + $0x78] sm:$0xff]
      %v1222 = vld [vmem:[#allocation4 + $0x80] sm:$0xff]
      %v1223 = vld [vmem:[#allocation4 + $0x88] sm:$0xff]
      %v1224 = vld [vmem:[#allocation4 + $0x90] sm:$0xff]
      %v1225 = vld [vmem:[#allocation4 + $0x98] sm:$0xff]
      %v1226 = vld [vmem:[#allocation4 + $0xa0] sm:$0xff]
      %v1227 = vld [vmem:[#allocation4 + $0xa8] sm:$0xff]
      %v1228 = vld [vmem:[#allocation4 + $0xb0] sm:$0xff]
      %v1229 = vld [vmem:[#allocation4 + $0xb8] sm:$0xff]
      %v1230 = vld [vmem:[#allocation4 + $0xc0] sm:$0xff]
      %v1231 = vld [vmem:[#allocation4 + $0xc8] sm:$0xff]
      %v1232 = vld [vmem:[#allocation4 + $0xd0] sm:$0xff]
      %v1233 = vld [vmem:[#allocation4 + $0xd8] sm:$0xff]
      %v1234 = vld [vmem:[#allocation4 + $0xe0] sm:$0xff]
      %v1235 = vld [vmem:[#allocation4 + $0xe8] sm:$0xff]
      %v1236 = vld [vmem:[#allocation4 + $0xf0] sm:$0xff]
      %v1237 = vld [vmem:[#allocation4 + $0xf8] sm:$0xff]
      %s1238 = sshra.s32 %s377, 3
      %s1239 = sand.u32 %s377, 7
      %s1240 = smul.addr %s1238, 4
      %s1241 = scalar_lea.vmem [#allocation2], %s1240
      %v1242 = vld [vmem:[%s1241] sm:$0xf]
      %v1243 = vld [vmem:[%s1241 + $0x4] sm:$0xf]
      %v1244 = vld [vmem:[%s1241 + $0x8] sm:$0xf]
      %v1245 = vld [vmem:[%s1241 + $0xc] sm:$0xf]
      %v1246 = vld [vmem:[%s1241 + $0x10] sm:$0xf]
      %v1247 = vld [vmem:[%s1241 + $0x14] sm:$0xf]
      %v1248 = vld [vmem:[%s1241 + $0x18] sm:$0xf]
      %v1249 = vld [vmem:[%s1241 + $0x1c] sm:$0xf]
      %v1250 = vld [vmem:[%s1241 + $0x20] sm:$0xf]
      %v1251 = vld [vmem:[%s1241 + $0x24] sm:$0xf]
      %v1252 = vld [vmem:[%s1241 + $0x28] sm:$0xf]
      %v1253 = vld [vmem:[%s1241 + $0x2c] sm:$0xf]
      %v1254 = vld [vmem:[%s1241 + $0x30] sm:$0xf]
      %v1255 = vld [vmem:[%s1241 + $0x34] sm:$0xf]
      %v1256 = vld [vmem:[%s1241 + $0x38] sm:$0xf]
      %v1257 = vld [vmem:[%s1241 + $0x3c] sm:$0xf]
      %v1258 = vld [vmem:[%s1241 + $0x40] sm:$0xf]
      %v1259 = vld [vmem:[%s1241 + $0x44] sm:$0xf]
      %v1260 = vld [vmem:[%s1241 + $0x48] sm:$0xf]
      %v1261 = vld [vmem:[%s1241 + $0x4c] sm:$0xf]
      %v1262 = vld [vmem:[%s1241 + $0x50] sm:$0xf]
      %v1263 = vld [vmem:[%s1241 + $0x54] sm:$0xf]
      %v1264 = vld [vmem:[%s1241 + $0x58] sm:$0xf]
      %v1265 = vld [vmem:[%s1241 + $0x5c] sm:$0xf]
      %v1266 = vld [vmem:[%s1241 + $0x60] sm:$0xf]
      %v1267 = vld [vmem:[%s1241 + $0x64] sm:$0xf]
      %v1268 = vld [vmem:[%s1241 + $0x68] sm:$0xf]
      %v1269 = vld [vmem:[%s1241 + $0x6c] sm:$0xf]
      %v1270 = vld [vmem:[%s1241 + $0x70] sm:$0xf]
      %v1271 = vld [vmem:[%s1241 + $0x74] sm:$0xf]
      %v1272 = vld [vmem:[%s1241 + $0x78] sm:$0xf]
      %v1273 = vld [vmem:[%s1241 + $0x7c] sm:$0xf]
      %v1306 = vunpack.c.l.b16 %v1174
      %v1307 = vunpack.c.h.b16 %v1174
      %v1308 = vunpack.c.l.b16 %v1175
      %v1309 = vunpack.c.h.b16 %v1175
      %v1310 = vunpack.c.l.b16 %v1176
      %v1311 = vunpack.c.h.b16 %v1176
      %v1312 = vunpack.c.l.b16 %v1177
      %v1313 = vunpack.c.h.b16 %v1177
      %v1314 = vunpack.c.l.b16 %v1178
      %v1315 = vunpack.c.h.b16 %v1178
      %v1316 = vunpack.c.l.b16 %v1179
      %v1317 = vunpack.c.h.b16 %v1179
      %v1318 = vunpack.c.l.b16 %v1180
      %v1319 = vunpack.c.h.b16 %v1180
      %v1320 = vunpack.c.l.b16 %v1181
      %v1321 = vunpack.c.h.b16 %v1181
      %v1322 = vunpack.c.l.b16 %v1182
      %v1323 = vunpack.c.h.b16 %v1182
      %v1324 = vunpack.c.l.b16 %v1183
      %v1325 = vunpack.c.h.b16 %v1183
      %v1326 = vunpack.c.l.b16 %v1184
      %v1327 = vunpack.c.h.b16 %v1184
      %v1328 = vunpack.c.l.b16 %v1185
      %v1329 = vunpack.c.h.b16 %v1185
      %v1330 = vunpack.c.l.b16 %v1186
      %v1331 = vunpack.c.h.b16 %v1186
      %v1332 = vunpack.c.l.b16 %v1187
      %v1333 = vunpack.c.h.b16 %v1187
      %v1334 = vunpack.c.l.b16 %v1188
      %v1335 = vunpack.c.h.b16 %v1188
      %v1336 = vunpack.c.l.b16 %v1189
      %v1337 = vunpack.c.h.b16 %v1189
      %v1338 = vunpack.c.l.b16 %v1190
      %v1339 = vunpack.c.h.b16 %v1190
      %v1340 = vunpack.c.l.b16 %v1191
      %v1341 = vunpack.c.h.b16 %v1191
      %v1342 = vunpack.c.l.b16 %v1192
      %v1343 = vunpack.c.h.b16 %v1192
      %v1344 = vunpack.c.l.b16 %v1193
      %v1345 = vunpack.c.h.b16 %v1193
      %v1346 = vunpack.c.l.b16 %v1194
      %v1347 = vunpack.c.h.b16 %v1194
      %v1348 = vunpack.c.l.b16 %v1195
      %v1349 = vunpack.c.h.b16 %v1195
      %v1350 = vunpack.c.l.b16 %v1196
      %v1351 = vunpack.c.h.b16 %v1196
      %v1352 = vunpack.c.l.b16 %v1197
      %v1353 = vunpack.c.h.b16 %v1197
      %v1354 = vunpack.c.l.b16 %v1198
      %v1355 = vunpack.c.h.b16 %v1198
      %v1356 = vunpack.c.l.b16 %v1199
      %v1357 = vunpack.c.h.b16 %v1199
      %v1358 = vunpack.c.l.b16 %v1200
      %v1359 = vunpack.c.h.b16 %v1200
      %v1360 = vunpack.c.l.b16 %v1201
      %v1361 = vunpack.c.h.b16 %v1201
      %v1362 = vunpack.c.l.b16 %v1202
      %v1363 = vunpack.c.h.b16 %v1202
      %v1364 = vunpack.c.l.b16 %v1203
      %v1365 = vunpack.c.h.b16 %v1203
      %v1366 = vunpack.c.l.b16 %v1204
      %v1367 = vunpack.c.h.b16 %v1204
      %v1368 = vunpack.c.l.b16 %v1205
      %v1369 = vunpack.c.h.b16 %v1205
      %v1370 = vpack.c.b16 %v1308, %v1306
      %v1371 = vpack.c.b16 %v1309, %v1307
      %v1372 = vpack.c.b16 %v1312, %v1310
      %v1373 = vpack.c.b16 %v1313, %v1311
      %v1374 = vpack.c.b16 %v1316, %v1314
      %v1375 = vpack.c.b16 %v1317, %v1315
      %v1376 = vpack.c.b16 %v1320, %v1318
      %v1377 = vpack.c.b16 %v1321, %v1319
      %v1378 = vpack.c.b16 %v1324, %v1322
      %v1379 = vpack.c.b16 %v1325, %v1323
      %v1380 = vpack.c.b16 %v1328, %v1326
      %v1381 = vpack.c.b16 %v1329, %v1327
      %v1382 = vpack.c.b16 %v1332, %v1330
      %v1383 = vpack.c.b16 %v1333, %v1331
      %v1384 = vpack.c.b16 %v1336, %v1334
      %v1385 = vpack.c.b16 %v1337, %v1335
      %v1386 = vpack.c.b16 %v1340, %v1338
      %v1387 = vpack.c.b16 %v1341, %v1339
      %v1388 = vpack.c.b16 %v1344, %v1342
      %v1389 = vpack.c.b16 %v1345, %v1343
      %v1390 = vpack.c.b16 %v1348, %v1346
      %v1391 = vpack.c.b16 %v1349, %v1347
      %v1392 = vpack.c.b16 %v1352, %v1350
      %v1393 = vpack.c.b16 %v1353, %v1351
      %v1394 = vpack.c.b16 %v1356, %v1354
      %v1395 = vpack.c.b16 %v1357, %v1355
      %v1396 = vpack.c.b16 %v1360, %v1358
      %v1397 = vpack.c.b16 %v1361, %v1359
      %v1398 = vpack.c.b16 %v1364, %v1362
      %v1399 = vpack.c.b16 %v1365, %v1363
      %v1400 = vpack.c.b16 %v1368, %v1366
      %v1401 = vpack.c.b16 %v1369, %v1367
      %v1466 = vunpack.c.l.b16 %v1242
      %v1467 = vunpack.c.l.b16 %v1243
      %v1468 = vunpack.c.l.b16 %v1244
      %v1469 = vunpack.c.l.b16 %v1245
      %v1470 = vunpack.c.l.b16 %v1246
      %v1471 = vunpack.c.l.b16 %v1247
      %v1472 = vunpack.c.l.b16 %v1248
      %v1473 = vunpack.c.l.b16 %v1249
      %v1474 = vunpack.c.l.b16 %v1250
      %v1475 = vunpack.c.l.b16 %v1251
      %v1476 = vunpack.c.l.b16 %v1252
      %v1477 = vunpack.c.l.b16 %v1253
      %v1478 = vunpack.c.l.b16 %v1254
      %v1479 = vunpack.c.l.b16 %v1255
      %v1480 = vunpack.c.l.b16 %v1256
      %v1481 = vunpack.c.l.b16 %v1257
      %v1482 = vunpack.c.l.b16 %v1258
      %v1483 = vunpack.c.l.b16 %v1259
      %v1484 = vunpack.c.l.b16 %v1260
      %v1485 = vunpack.c.l.b16 %v1261
      %v1486 = vunpack.c.l.b16 %v1262
      %v1487 = vunpack.c.l.b16 %v1263
      %v1488 = vunpack.c.l.b16 %v1264
      %v1489 = vunpack.c.l.b16 %v1265
      %v1490 = vunpack.c.l.b16 %v1266
      %v1491 = vunpack.c.l.b16 %v1267
      %v1492 = vunpack.c.l.b16 %v1268
      %v1493 = vunpack.c.l.b16 %v1269
      %v1494 = vunpack.c.l.b16 %v1270
      %v1495 = vunpack.c.l.b16 %v1271
      %v1496 = vunpack.c.l.b16 %v1272
      %v1497 = vunpack.c.l.b16 %v1273
      %v1498 = vpack.c.b16 %v1467, %v1466
      %v1499 = vpack.c.b16 %v1469, %v1468
      %v1500 = vpack.c.b16 %v1471, %v1470
      %v1501 = vpack.c.b16 %v1473, %v1472
      %v1502 = vpack.c.b16 %v1475, %v1474
      %v1503 = vpack.c.b16 %v1477, %v1476
      %v1504 = vpack.c.b16 %v1479, %v1478
      %v1505 = vpack.c.b16 %v1481, %v1480
      %v1506 = vpack.c.b16 %v1483, %v1482
      %v1507 = vpack.c.b16 %v1485, %v1484
      %v1508 = vpack.c.b16 %v1487, %v1486
      %v1509 = vpack.c.b16 %v1489, %v1488
      %v1510 = vpack.c.b16 %v1491, %v1490
      %v1511 = vpack.c.b16 %v1493, %v1492
      %v1512 = vpack.c.b16 %v1495, %v1494
      %v1513 = vpack.c.b16 %v1497, %v1496
      %1530 = vmatprep.subr.bf16.mxu0 0
      %1531 = vmatpush1.bf16.msra.mxu0 %v1505
      %1532 = vmatprep.subr.bf16.mxu0 0
      %1533 = vmatpush1.bf16.msra.mxu0 %v1504
      %1534 = vmatprep.subr.bf16.mxu0 0
      %1535 = vmatpush1.bf16.msra.mxu0 %v1503
      %1536 = vmatprep.subr.bf16.mxu0 0
      %1537 = vmatpush1.bf16.msra.mxu0 %v1502
      %1538 = vmatprep.subr.bf16.mxu0 0
      %1539 = vmatpush1.bf16.msra.mxu0 %v1501
      %1540 = vmatprep.subr.bf16.mxu0 0
      %1541 = vmatpush1.bf16.msra.mxu0 %v1500
      %1542 = vmatprep.subr.bf16.mxu0 0
      %1543 = vmatpush1.bf16.msra.mxu0 %v1499
      %1544 = vmatprep.subr.bf16.mxu0 0
      %1545 = vmatpush1.bf16.msra.mxu0 %v1498
      %1546 = vmatprep.subr.bf16.mxu0 0
      %1547 = vmatpush2.bf16.msra.mxu0 %v1513
      %1548 = vmatprep.subr.bf16.mxu0 0
      %1549 = vmatpush2.bf16.msra.mxu0 %v1512
      %1550 = vmatprep.subr.bf16.mxu0 0
      %1551 = vmatpush2.bf16.msra.mxu0 %v1511
      %1552 = vmatprep.subr.bf16.mxu0 0
      %1553 = vmatpush2.bf16.msra.mxu0 %v1510
      %1554 = vmatprep.subr.bf16.mxu0 0
      %1555 = vmatpush2.bf16.msra.mxu0 %v1509
      %1556 = vmatprep.subr.bf16.mxu0 0
      %1557 = vmatpush2.bf16.msra.mxu0 %v1508
      %1558 = vmatprep.subr.bf16.mxu0 0
      %1559 = vmatpush2.bf16.msra.mxu0 %v1507
      %1560 = vmatprep.subr.bf16.mxu0 0
      %1561 = vmatpush2.bf16.msra.mxu0 %v1506
      %1562 = vmatprep.mubr.bf16.mxu0 %v1371
      %1563 = vmatmul.mubr.bf16.gmra.mxu0 %v1370
      %v1564 = vpop.f32.mrf.mxu0
      %v1565 = vadd.f32 0.0, %v1564
      %v1566 = vpop.f32.mrf.mxu0
      %v1567 = vpop.f32.mrf.mxu0
      %v1568 = vadd.f32 0.0, %v1567
      %v1569 = vpop.f32.mrf.mxu0
      %1570 = vmatprep.mubr.bf16.mxu0 %v1373
      %1571 = vmatmul.mubr.bf16.gmra.mxu0 %v1372
      %v1572 = vpop.f32.mrf.mxu0
      %v1573 = vadd.f32 0.0, %v1572
      %v1574 = vpop.f32.mrf.mxu0
      %v1575 = vpop.f32.mrf.mxu0
      %v1576 = vadd.f32 0.0, %v1575
      %v1577 = vpop.f32.mrf.mxu0
      %1578 = vmatprep.mubr.bf16.mxu0 %v1375
      %1579 = vmatmul.mubr.bf16.gmra.mxu0 %v1374
      %v1580 = vpop.f32.mrf.mxu0
      %v1581 = vadd.f32 0.0, %v1580
      %v1582 = vpop.f32.mrf.mxu0
      %v1583 = vpop.f32.mrf.mxu0
      %v1584 = vadd.f32 0.0, %v1583
      %v1585 = vpop.f32.mrf.mxu0
      %1586 = vmatprep.mubr.bf16.mxu0 %v1377
      %1587 = vmatmul.mubr.bf16.gmra.mxu0 %v1376
      %v1588 = vpop.f32.mrf.mxu0
      %v1589 = vadd.f32 0.0, %v1588
      %v1590 = vpop.f32.mrf.mxu0
      %v1591 = vpop.f32.mrf.mxu0
      %v1592 = vadd.f32 0.0, %v1591
      %v1593 = vpop.f32.mrf.mxu0
      %1594 = vmatprep.mubr.bf16.mxu0 %v1379
      %1595 = vmatmul.mubr.bf16.gmra.mxu0 %v1378
      %v1596 = vpop.f32.mrf.mxu0
      %v1597 = vadd.f32 0.0, %v1596
      %v1598 = vpop.f32.mrf.mxu0
      %v1599 = vpop.f32.mrf.mxu0
      %v1600 = vadd.f32 0.0, %v1599
      %v1601 = vpop.f32.mrf.mxu0
      %1602 = vmatprep.mubr.bf16.mxu0 %v1381
      %1603 = vmatmul.mubr.bf16.gmra.mxu0 %v1380
      %v1604 = vpop.f32.mrf.mxu0
      %v1605 = vadd.f32 0.0, %v1604
      %v1606 = vpop.f32.mrf.mxu0
      %v1607 = vpop.f32.mrf.mxu0
      %v1608 = vadd.f32 0.0, %v1607
      %v1609 = vpop.f32.mrf.mxu0
      %1610 = vmatprep.mubr.bf16.mxu0 %v1383
      %1611 = vmatmul.mubr.bf16.gmra.mxu0 %v1382
      %v1612 = vpop.f32.mrf.mxu0
      %v1613 = vadd.f32 0.0, %v1612
      %v1614 = vpop.f32.mrf.mxu0
      %v1615 = vpop.f32.mrf.mxu0
      %v1616 = vadd.f32 0.0, %v1615
      %v1617 = vpop.f32.mrf.mxu0
      %1618 = vmatprep.mubr.bf16.mxu0 %v1385
      %1619 = vmatmul.mubr.bf16.gmra.mxu0 %v1384
      %v1620 = vpop.f32.mrf.mxu0
      %v1621 = vadd.f32 0.0, %v1620
      %v1622 = vpop.f32.mrf.mxu0
      %v1623 = vpop.f32.mrf.mxu0
      %v1624 = vadd.f32 0.0, %v1623
      %v1625 = vpop.f32.mrf.mxu0
      %1626 = vmatprep.mubr.bf16.mxu0 %v1387
      %1627 = vmatmul.mubr.bf16.gmra.mxu0 %v1386
      %v1628 = vpop.f32.mrf.mxu0
      %v1629 = vadd.f32 0.0, %v1628
      %v1630 = vpop.f32.mrf.mxu0
      %v1631 = vpop.f32.mrf.mxu0
      %v1632 = vadd.f32 0.0, %v1631
      %v1633 = vpop.f32.mrf.mxu0
      %1634 = vmatprep.mubr.bf16.mxu0 %v1389
      %1635 = vmatmul.mubr.bf16.gmra.mxu0 %v1388
      %v1636 = vpop.f32.mrf.mxu0
      %v1637 = vadd.f32 0.0, %v1636
      %v1638 = vpop.f32.mrf.mxu0
      %v1639 = vpop.f32.mrf.mxu0
      %v1640 = vadd.f32 0.0, %v1639
      %v1641 = vpop.f32.mrf.mxu0
      %1642 = vmatprep.mubr.bf16.mxu0 %v1391
      %1643 = vmatmul.mubr.bf16.gmra.mxu0 %v1390
      %v1644 = vpop.f32.mrf.mxu0
      %v1645 = vadd.f32 0.0, %v1644
      %v1646 = vpop.f32.mrf.mxu0
      %v1647 = vpop.f32.mrf.mxu0
      %v1648 = vadd.f32 0.0, %v1647
      %v1649 = vpop.f32.mrf.mxu0
      %1650 = vmatprep.mubr.bf16.mxu0 %v1393
      %1651 = vmatmul.mubr.bf16.gmra.mxu0 %v1392
      %v1652 = vpop.f32.mrf.mxu0
      %v1653 = vadd.f32 0.0, %v1652
      %v1654 = vpop.f32.mrf.mxu0
      %v1655 = vpop.f32.mrf.mxu0
      %v1656 = vadd.f32 0.0, %v1655
      %v1657 = vpop.f32.mrf.mxu0
      %1658 = vmatprep.mubr.bf16.mxu0 %v1395
      %1659 = vmatmul.mubr.bf16.gmra.mxu0 %v1394
      %v1660 = vpop.f32.mrf.mxu0
      %v1661 = vadd.f32 0.0, %v1660
      %v1662 = vpop.f32.mrf.mxu0
      %v1663 = vpop.f32.mrf.mxu0
      %v1664 = vadd.f32 0.0, %v1663
      %v1665 = vpop.f32.mrf.mxu0
      %1666 = vmatprep.mubr.bf16.mxu0 %v1397
      %1667 = vmatmul.mubr.bf16.gmra.mxu0 %v1396
      %v1668 = vpop.f32.mrf.mxu0
      %v1669 = vadd.f32 0.0, %v1668
      %v1670 = vpop.f32.mrf.mxu0
      %v1671 = vpop.f32.mrf.mxu0
      %v1672 = vadd.f32 0.0, %v1671
      %v1673 = vpop.f32.mrf.mxu0
      %1674 = vmatprep.mubr.bf16.mxu0 %v1399
      %1675 = vmatmul.mubr.bf16.gmra.mxu0 %v1398
      %v1676 = vpop.f32.mrf.mxu0
      %v1677 = vadd.f32 0.0, %v1676
      %v1678 = vpop.f32.mrf.mxu0
      %v1679 = vpop.f32.mrf.mxu0
      %v1680 = vadd.f32 0.0, %v1679
      %v1681 = vpop.f32.mrf.mxu0
      %1682 = vmatprep.mubr.bf16.mxu0 %v1401
      %1683 = vmatmul.mubr.bf16.gmra.mxu0 %v1400
      %v1684 = vpop.f32.mrf.mxu0
      %v1685 = vadd.f32 0.0, %v1684
      %v1686 = vpop.f32.mrf.mxu0
      %v1687 = vpop.f32.mrf.mxu0
      %v1688 = vadd.f32 0.0, %v1687
      %v1689 = vpop.f32.mrf.mxu0
      %1690 = vdwg.mxu0
      %v1691 = vadd.f32 %v1206, %v1565
      %v1692 = vadd.f32 %v1207, %v1568
      %v1693 = vadd.f32 %v1208, %v1573
      %v1694 = vadd.f32 %v1209, %v1576
      %v1695 = vadd.f32 %v1210, %v1581
      %v1696 = vadd.f32 %v1211, %v1584
      %v1697 = vadd.f32 %v1212, %v1589
      %v1698 = vadd.f32 %v1213, %v1592
      %v1699 = vadd.f32 %v1214, %v1597
      %v1700 = vadd.f32 %v1215, %v1600
      %v1701 = vadd.f32 %v1216, %v1605
      %v1702 = vadd.f32 %v1217, %v1608
      %v1703 = vadd.f32 %v1218, %v1613
      %v1704 = vadd.f32 %v1219, %v1616
      %v1705 = vadd.f32 %v1220, %v1621
      %v1706 = vadd.f32 %v1221, %v1624
      %v1707 = vadd.f32 %v1222, %v1629
      %v1708 = vadd.f32 %v1223, %v1632
      %v1709 = vadd.f32 %v1224, %v1637
      %v1710 = vadd.f32 %v1225, %v1640
      %v1711 = vadd.f32 %v1226, %v1645
      %v1712 = vadd.f32 %v1227, %v1648
      %v1713 = vadd.f32 %v1228, %v1653
      %v1714 = vadd.f32 %v1229, %v1656
      %v1715 = vadd.f32 %v1230, %v1661
      %v1716 = vadd.f32 %v1231, %v1664
      %v1717 = vadd.f32 %v1232, %v1669
      %v1718 = vadd.f32 %v1233, %v1672
      %v1719 = vadd.f32 %v1234, %v1677
      %v1720 = vadd.f32 %v1235, %v1680
      %v1721 = vadd.f32 %v1236, %v1685
      %v1722 = vadd.f32 %v1237, %v1688
      %1723 = vst [vmem:[#allocation4] sm:$0xff] %v1691
      %1724 = vst [vmem:[#allocation4 + $0x8] sm:$0xff] %v1692
      %1725 = vst [vmem:[#allocation4 + $0x10] sm:$0xff] %v1693
      %1726 = vst [vmem:[#allocation4 + $0x18] sm:$0xff] %v1694
      %1727 = vst [vmem:[#allocation4 + $0x20] sm:$0xff] %v1695
      %1728 = vst [vmem:[#allocation4 + $0x28] sm:$0xff] %v1696
      %1729 = vst [vmem:[#allocation4 + $0x30] sm:$0xff] %v1697
      %1730 = vst [vmem:[#allocation4 + $0x38] sm:$0xff] %v1698
      %1731 = vst [vmem:[#allocation4 + $0x40] sm:$0xff] %v1699
      %1732 = vst [vmem:[#allocation4 + $0x48] sm:$0xff] %v1700
      %1733 = vst [vmem:[#allocation4 + $0x50] sm:$0xff] %v1701
      %1734 = vst [vmem:[#allocation4 + $0x58] sm:$0xff] %v1702
      %1735 = vst [vmem:[#allocation4 + $0x60] sm:$0xff] %v1703
      %1736 = vst [vmem:[#allocation4 + $0x68] sm:$0xff] %v1704
      %1737 = vst [vmem:[#allocation4 + $0x70] sm:$0xff] %v1705
      %1738 = vst [vmem:[#allocation4 + $0x78] sm:$0xff] %v1706
      %1739 = vst [vmem:[#allocation4 + $0x80] sm:$0xff] %v1707
      %1740 = vst [vmem:[#allocation4 + $0x88] sm:$0xff] %v1708
      %1741 = vst [vmem:[#allocation4 + $0x90] sm:$0xff] %v1709
      %1742 = vst [vmem:[#allocation4 + $0x98] sm:$0xff] %v1710
      %1743 = vst [vmem:[#allocation4 + $0xa0] sm:$0xff] %v1711
      %1744 = vst [vmem:[#allocation4 + $0xa8] sm:$0xff] %v1712
      %1745 = vst [vmem:[#allocation4 + $0xb0] sm:$0xff] %v1713
      %1746 = vst [vmem:[#allocation4 + $0xb8] sm:$0xff] %v1714
      %1747 = vst [vmem:[#allocation4 + $0xc0] sm:$0xff] %v1715
      %1748 = vst [vmem:[#allocation4 + $0xc8] sm:$0xff] %v1716
      %1749 = vst [vmem:[#allocation4 + $0xd0] sm:$0xff] %v1717
      %1750 = vst [vmem:[#allocation4 + $0xd8] sm:$0xff] %v1718
      %1751 = vst [vmem:[#allocation4 + $0xe0] sm:$0xff] %v1719
      %1752 = vst [vmem:[#allocation4 + $0xe8] sm:$0xff] %v1720
      %1753 = vst [vmem:[#allocation4 + $0xf0] sm:$0xff] %v1721
      %1754 = vst [vmem:[#allocation4 + $0xf8] sm:$0xff] %v1722
      // Predicated region
      $region69: #{residual_gc_forward.1} parent=59 // pred_check
        %p1755 = pneg %p1133
      $region70: #{residual_gc_forward.1} parent=59 // pred_check_branch
        %1757 = sbr.rel (%p1755) target = $region72
      $region71: #{residual_gc_forward.1} parent=59 // pred_region
        %v1758 = vld [vmem:[#allocation4] sm:$0xff]
        %v1759 = vld [vmem:[#allocation4 + $0x8] sm:$0xff]
        %v1760 = vld [vmem:[#allocation4 + $0x10] sm:$0xff]
        %v1761 = vld [vmem:[#allocation4 + $0x18] sm:$0xff]
        %v1762 = vld [vmem:[#allocation4 + $0x20] sm:$0xff]
        %v1763 = vld [vmem:[#allocation4 + $0x28] sm:$0xff]
        %v1764 = vld [vmem:[#allocation4 + $0x30] sm:$0xff]
        %v1765 = vld [vmem:[#allocation4 + $0x38] sm:$0xff]
        %v1766 = vld [vmem:[#allocation4 + $0x40] sm:$0xff]
        %v1767 = vld [vmem:[#allocation4 + $0x48] sm:$0xff]
        %v1768 = vld [vmem:[#allocation4 + $0x50] sm:$0xff]
        %v1769 = vld [vmem:[#allocation4 + $0x58] sm:$0xff]
        %v1770 = vld [vmem:[#allocation4 + $0x60] sm:$0xff]
        %v1771 = vld [vmem:[#allocation4 + $0x68] sm:$0xff]
        %v1772 = vld [vmem:[#allocation4 + $0x70] sm:$0xff]
        %v1773 = vld [vmem:[#allocation4 + $0x78] sm:$0xff]
        %v1774 = vld [vmem:[#allocation4 + $0x80] sm:$0xff]
        %v1775 = vld [vmem:[#allocation4 + $0x88] sm:$0xff]
        %v1776 = vld [vmem:[#allocation4 + $0x90] sm:$0xff]
        %v1777 = vld [vmem:[#allocation4 + $0x98] sm:$0xff]
        %v1778 = vld [vmem:[#allocation4 + $0xa0] sm:$0xff]
        %v1779 = vld [vmem:[#allocation4 + $0xa8] sm:$0xff]
        %v1780 = vld [vmem:[#allocation4 + $0xb0] sm:$0xff]
        %v1781 = vld [vmem:[#allocation4 + $0xb8] sm:$0xff]
        %v1782 = vld [vmem:[#allocation4 + $0xc0] sm:$0xff]
        %v1783 = vld [vmem:[#allocation4 + $0xc8] sm:$0xff]
        %v1784 = vld [vmem:[#allocation4 + $0xd0] sm:$0xff]
        %v1785 = vld [vmem:[#allocation4 + $0xd8] sm:$0xff]
        %v1786 = vld [vmem:[#allocation4 + $0xe0] sm:$0xff]
        %v1787 = vld [vmem:[#allocation4 + $0xe8] sm:$0xff]
        %v1788 = vld [vmem:[#allocation4 + $0xf0] sm:$0xff]
        %v1789 = vld [vmem:[#allocation4 + $0xf8] sm:$0xff]
        %s1790 = scalar_lea.vmem %s2, %s374
        %v1791 = vld [vmem:[%s1790] sm:$0xff]
        %v1792 = vld [vmem:[%s1790 + $0x8] sm:$0xff]
        %v1793 = vld [vmem:[%s1790 + $0x10] sm:$0xff]
        %v1794 = vld [vmem:[%s1790 + $0x18] sm:$0xff]
        %v1795 = vld [vmem:[%s1790 + $0x20] sm:$0xff]
        %v1796 = vld [vmem:[%s1790 + $0x28] sm:$0xff]
        %v1797 = vld [vmem:[%s1790 + $0x30] sm:$0xff]
        %v1798 = vld [vmem:[%s1790 + $0x38] sm:$0xff]
        %v1799 = vld [vmem:[%s1790 + $0x40] sm:$0xff]
        %v1800 = vld [vmem:[%s1790 + $0x48] sm:$0xff]
        %v1801 = vld [vmem:[%s1790 + $0x50] sm:$0xff]
        %v1802 = vld [vmem:[%s1790 + $0x58] sm:$0xff]
        %v1803 = vld [vmem:[%s1790 + $0x60] sm:$0xff]
        %v1804 = vld [vmem:[%s1790 + $0x68] sm:$0xff]
        %v1805 = vld [vmem:[%s1790 + $0x70] sm:$0xff]
        %v1806 = vld [vmem:[%s1790 + $0x78] sm:$0xff]
        %v1807 = vld [vmem:[%s1790 + $0x80] sm:$0xff]
        %v1808 = vld [vmem:[%s1790 + $0x88] sm:$0xff]
        %v1809 = vld [vmem:[%s1790 + $0x90] sm:$0xff]
        %v1810 = vld [vmem:[%s1790 + $0x98] sm:$0xff]
        %v1811 = vld [vmem:[%s1790 + $0xa0] sm:$0xff]
        %v1812 = vld [vmem:[%s1790 + $0xa8] sm:$0xff]
        %v1813 = vld [vmem:[%s1790 + $0xb0] sm:$0xff]
        %v1814 = vld [vmem:[%s1790 + $0xb8] sm:$0xff]
        %v1815 = vld [vmem:[%s1790 + $0xc0] sm:$0xff]
        %v1816 = vld [vmem:[%s1790 + $0xc8] sm:$0xff]
        %v1817 = vld [vmem:[%s1790 + $0xd0] sm:$0xff]
        %v1818 = vld [vmem:[%s1790 + $0xd8] sm:$0xff]
        %v1819 = vld [vmem:[%s1790 + $0xe0] sm:$0xff]
        %v1820 = vld [vmem:[%s1790 + $0xe8] sm:$0xff]
        %v1821 = vld [vmem:[%s1790 + $0xf0] sm:$0xff]
        %v1822 = vld [vmem:[%s1790 + $0xf8] sm:$0xff]
        %s1823 = smul.addr %s1169, 4
        %s1824 = scalar_lea.vmem %s1, %s1823
        %v1825 = vld [vmem:[%s1824] sm:$0xf]
        %v1826 = vld [vmem:[%s1824 + $0x4] sm:$0xf]
        %v1827 = vld [vmem:[%s1824 + $0x8] sm:$0xf]
        %v1828 = vld [vmem:[%s1824 + $0xc] sm:$0xf]
        %v1829 = vld [vmem:[%s1824 + $0x10] sm:$0xf]
        %v1830 = vld [vmem:[%s1824 + $0x14] sm:$0xf]
        %v1831 = vld [vmem:[%s1824 + $0x18] sm:$0xf]
        %v1832 = vld [vmem:[%s1824 + $0x1c] sm:$0xf]
        %v1833 = vld [vmem:[%s1824 + $0x20] sm:$0xf]
        %v1834 = vld [vmem:[%s1824 + $0x24] sm:$0xf]
        %v1835 = vld [vmem:[%s1824 + $0x28] sm:$0xf]
        %v1836 = vld [vmem:[%s1824 + $0x2c] sm:$0xf]
        %v1837 = vld [vmem:[%s1824 + $0x30] sm:$0xf]
        %v1838 = vld [vmem:[%s1824 + $0x34] sm:$0xf]
        %v1839 = vld [vmem:[%s1824 + $0x38] sm:$0xf]
        %v1840 = vld [vmem:[%s1824 + $0x3c] sm:$0xf]
        %v1841 = vld [vmem:[%s1824 + $0x40] sm:$0xf]
        %v1842 = vld [vmem:[%s1824 + $0x44] sm:$0xf]
        %v1843 = vld [vmem:[%s1824 + $0x48] sm:$0xf]
        %v1844 = vld [vmem:[%s1824 + $0x4c] sm:$0xf]
        %v1845 = vld [vmem:[%s1824 + $0x50] sm:$0xf]
        %v1846 = vld [vmem:[%s1824 + $0x54] sm:$0xf]
        %v1847 = vld [vmem:[%s1824 + $0x58] sm:$0xf]
        %v1848 = vld [vmem:[%s1824 + $0x5c] sm:$0xf]
        %v1849 = vld [vmem:[%s1824 + $0x60] sm:$0xf]
        %v1850 = vld [vmem:[%s1824 + $0x64] sm:$0xf]
        %v1851 = vld [vmem:[%s1824 + $0x68] sm:$0xf]
        %v1852 = vld [vmem:[%s1824 + $0x6c] sm:$0xf]
        %v1853 = vld [vmem:[%s1824 + $0x70] sm:$0xf]
        %v1854 = vld [vmem:[%s1824 + $0x74] sm:$0xf]
        %v1855 = vld [vmem:[%s1824 + $0x78] sm:$0xf]
        %v1856 = vld [vmem:[%s1824 + $0x7c] sm:$0xf]
        %p1857 = scmp.lt.s32.totalorder %s26, 3
        // Predicated region
        $region73: #{residual_gc_forward.1} parent=71 // pred_check
          %p1858 = pneg %p1857
        $region74: #{residual_gc_forward.1} parent=71 // pred_check_branch
          %1860 = sbr.rel (%p1858) target = $region76
        $region75: #{residual_gc_forward.1} parent=71 // pred_region
          %s1861 = sshra.s32 %s378, 3
          %s1862 = sand.u32 %s378, 7
          %s1863 = smul.addr %s1861, 4
          %s1864 = scalar_lea.vmem [#allocation2], %s1863
          %v1865 = vld [vmem:[%s1864] sm:$0xf]
          %v1866 = vld [vmem:[%s1864 + $0x4] sm:$0xf]
          %v1867 = vld [vmem:[%s1864 + $0x8] sm:$0xf]
          %v1868 = vld [vmem:[%s1864 + $0xc] sm:$0xf]
          %v1869 = vld [vmem:[%s1864 + $0x10] sm:$0xf]
          %v1870 = vld [vmem:[%s1864 + $0x14] sm:$0xf]
          %v1871 = vld [vmem:[%s1864 + $0x18] sm:$0xf]
          %v1872 = vld [vmem:[%s1864 + $0x1c] sm:$0xf]
          %v1873 = vld [vmem:[%s1864 + $0x20] sm:$0xf]
          %v1874 = vld [vmem:[%s1864 + $0x24] sm:$0xf]
          %v1875 = vld [vmem:[%s1864 + $0x28] sm:$0xf]
          %v1876 = vld [vmem:[%s1864 + $0x2c] sm:$0xf]
          %v1877 = vld [vmem:[%s1864 + $0x30] sm:$0xf]
          %v1878 = vld [vmem:[%s1864 + $0x34] sm:$0xf]
          %v1879 = vld [vmem:[%s1864 + $0x38] sm:$0xf]
          %v1880 = vld [vmem:[%s1864 + $0x3c] sm:$0xf]
          %v1881 = vld [vmem:[%s1864 + $0x40] sm:$0xf]
          %v1882 = vld [vmem:[%s1864 + $0x44] sm:$0xf]
          %v1883 = vld [vmem:[%s1864 + $0x48] sm:$0xf]
          %v1884 = vld [vmem:[%s1864 + $0x4c] sm:$0xf]
          %v1885 = vld [vmem:[%s1864 + $0x50] sm:$0xf]
          %v1886 = vld [vmem:[%s1864 + $0x54] sm:$0xf]
          %v1887 = vld [vmem:[%s1864 + $0x58] sm:$0xf]
          %v1888 = vld [vmem:[%s1864 + $0x5c] sm:$0xf]
          %v1889 = vld [vmem:[%s1864 + $0x60] sm:$0xf]
          %v1890 = vld [vmem:[%s1864 + $0x64] sm:$0xf]
          %v1891 = vld [vmem:[%s1864 + $0x68] sm:$0xf]
          %v1892 = vld [vmem:[%s1864 + $0x6c] sm:$0xf]
          %v1893 = vld [vmem:[%s1864 + $0x70] sm:$0xf]
          %v1894 = vld [vmem:[%s1864 + $0x74] sm:$0xf]
          %v1895 = vld [vmem:[%s1864 + $0x78] sm:$0xf]
          %v1896 = vld [vmem:[%s1864 + $0x7c] sm:$0xf]
          %v1897 = vunpack.c.l.bf16 %v1865
          %v1898 = vunpack.c.l.bf16 %v1866
          %v1899 = vunpack.c.l.bf16 %v1867
          %v1900 = vunpack.c.l.bf16 %v1868
          %v1901 = vunpack.c.l.bf16 %v1869
          %v1902 = vunpack.c.l.bf16 %v1870
          %v1903 = vunpack.c.l.bf16 %v1871
          %v1904 = vunpack.c.l.bf16 %v1872
          %v1905 = vunpack.c.l.bf16 %v1873
          %v1906 = vunpack.c.l.bf16 %v1874
          %v1907 = vunpack.c.l.bf16 %v1875
          %v1908 = vunpack.c.l.bf16 %v1876
          %v1909 = vunpack.c.l.bf16 %v1877
          %v1910 = vunpack.c.l.bf16 %v1878
          %v1911 = vunpack.c.l.bf16 %v1879
          %v1912 = vunpack.c.l.bf16 %v1880
          %v1913 = vunpack.c.l.bf16 %v1881
          %v1914 = vunpack.c.l.bf16 %v1882
          %v1915 = vunpack.c.l.bf16 %v1883
          %v1916 = vunpack.c.l.bf16 %v1884
          %v1917 = vunpack.c.l.bf16 %v1885
          %v1918 = vunpack.c.l.bf16 %v1886
          %v1919 = vunpack.c.l.bf16 %v1887
          %v1920 = vunpack.c.l.bf16 %v1888
          %v1921 = vunpack.c.l.bf16 %v1889
          %v1922 = vunpack.c.l.bf16 %v1890
          %v1923 = vunpack.c.l.bf16 %v1891
          %v1924 = vunpack.c.l.bf16 %v1892
          %v1925 = vunpack.c.l.bf16 %v1893
          %v1926 = vunpack.c.l.bf16 %v1894
          %v1927 = vunpack.c.l.bf16 %v1895
          %v1928 = vunpack.c.l.bf16 %v1896
          %v1929 = vadd.f32 %v1758, %v1897
          %v1930 = vadd.f32 %v1759, %v1898
          %v1931 = vadd.f32 %v1760, %v1899
          %v1932 = vadd.f32 %v1761, %v1900
          %v1933 = vadd.f32 %v1762, %v1901
          %v1934 = vadd.f32 %v1763, %v1902
          %v1935 = vadd.f32 %v1764, %v1903
          %v1936 = vadd.f32 %v1765, %v1904
          %v1937 = vadd.f32 %v1766, %v1905
          %v1938 = vadd.f32 %v1767, %v1906
          %v1939 = vadd.f32 %v1768, %v1907
          %v1940 = vadd.f32 %v1769, %v1908
          %v1941 = vadd.f32 %v1770, %v1909
          %v1942 = vadd.f32 %v1771, %v1910
          %v1943 = vadd.f32 %v1772, %v1911
          %v1944 = vadd.f32 %v1773, %v1912
          %v1945 = vadd.f32 %v1774, %v1913
          %v1946 = vadd.f32 %v1775, %v1914
          %v1947 = vadd.f32 %v1776, %v1915
          %v1948 = vadd.f32 %v1777, %v1916
          %v1949 = vadd.f32 %v1778, %v1917
          %v1950 = vadd.f32 %v1779, %v1918
          %v1951 = vadd.f32 %v1780, %v1919
          %v1952 = vadd.f32 %v1781, %v1920
          %v1953 = vadd.f32 %v1782, %v1921
          %v1954 = vadd.f32 %v1783, %v1922
          %v1955 = vadd.f32 %v1784, %v1923
          %v1956 = vadd.f32 %v1785, %v1924
          %v1957 = vadd.f32 %v1786, %v1925
          %v1958 = vadd.f32 %v1787, %v1926
          %v1959 = vadd.f32 %v1788, %v1927
          %v1960 = vadd.f32 %v1789, %v1928
          %1962 = vset.pattern.permute.xlu0 0
          %1963 = vperm.xlu0 %1962, %v1791
          %v1964 = vpop.permute.xlu0 %1963
          %1967 = vset.pattern.permute.xlu0 0
          %1968 = vperm.xlu0 %1967, %v1792
          %v1969 = vpop.permute.xlu0 %1968
          %1972 = vset.pattern.permute.xlu0 0
          %1973 = vperm.xlu0 %1972, %v1793
          %v1974 = vpop.permute.xlu0 %1973
          %1977 = vset.pattern.permute.xlu0 0
          %1978 = vperm.xlu0 %1977, %v1794
          %v1979 = vpop.permute.xlu0 %1978
          %1982 = vset.pattern.permute.xlu0 0
          %1983 = vperm.xlu0 %1982, %v1795
          %v1984 = vpop.permute.xlu0 %1983
          %1987 = vset.pattern.permute.xlu0 0
          %1988 = vperm.xlu0 %1987, %v1796
          %v1989 = vpop.permute.xlu0 %1988
          %1992 = vset.pattern.permute.xlu0 0
          %1993 = vperm.xlu0 %1992, %v1797
          %v1994 = vpop.permute.xlu0 %1993
          %1997 = vset.pattern.permute.xlu0 0
          %1998 = vperm.xlu0 %1997, %v1798
          %v1999 = vpop.permute.xlu0 %1998
          %2002 = vset.pattern.permute.xlu0 0
          %2003 = vperm.xlu0 %2002, %v1799
          %v2004 = vpop.permute.xlu0 %2003
          %2007 = vset.pattern.permute.xlu0 0
          %2008 = vperm.xlu0 %2007, %v1800
          %v2009 = vpop.permute.xlu0 %2008
          %2012 = vset.pattern.permute.xlu0 0
          %2013 = vperm.xlu0 %2012, %v1801
          %v2014 = vpop.permute.xlu0 %2013
          %2017 = vset.pattern.permute.xlu0 0
          %2018 = vperm.xlu0 %2017, %v1802
          %v2019 = vpop.permute.xlu0 %2018
          %2022 = vset.pattern.permute.xlu0 0
          %2023 = vperm.xlu0 %2022, %v1803
          %v2024 = vpop.permute.xlu0 %2023
          %2027 = vset.pattern.permute.xlu0 0
          %2028 = vperm.xlu0 %2027, %v1804
          %v2029 = vpop.permute.xlu0 %2028
          %2032 = vset.pattern.permute.xlu0 0
          %2033 = vperm.xlu0 %2032, %v1805
          %v2034 = vpop.permute.xlu0 %2033
          %2037 = vset.pattern.permute.xlu0 0
          %2038 = vperm.xlu0 %2037, %v1806
          %v2039 = vpop.permute.xlu0 %2038
          %2042 = vset.pattern.permute.xlu0 0
          %2043 = vperm.xlu0 %2042, %v1807
          %v2044 = vpop.permute.xlu0 %2043
          %2047 = vset.pattern.permute.xlu0 0
          %2048 = vperm.xlu0 %2047, %v1808
          %v2049 = vpop.permute.xlu0 %2048
          %2052 = vset.pattern.permute.xlu0 0
          %2053 = vperm.xlu0 %2052, %v1809
          %v2054 = vpop.permute.xlu0 %2053
          %2057 = vset.pattern.permute.xlu0 0
          %2058 = vperm.xlu0 %2057, %v1810
          %v2059 = vpop.permute.xlu0 %2058
          %2062 = vset.pattern.permute.xlu0 0
          %2063 = vperm.xlu0 %2062, %v1811
          %v2064 = vpop.permute.xlu0 %2063
          %2067 = vset.pattern.permute.xlu0 0
          %2068 = vperm.xlu0 %2067, %v1812
          %v2069 = vpop.permute.xlu0 %2068
          %2072 = vset.pattern.permute.xlu0 0
          %2073 = vperm.xlu0 %2072, %v1813
          %v2074 = vpop.permute.xlu0 %2073
          %2077 = vset.pattern.permute.xlu0 0
          %2078 = vperm.xlu0 %2077, %v1814
          %v2079 = vpop.permute.xlu0 %2078
          %2082 = vset.pattern.permute.xlu0 0
          %2083 = vperm.xlu0 %2082, %v1815
          %v2084 = vpop.permute.xlu0 %2083
          %2087 = vset.pattern.permute.xlu0 0
          %2088 = vperm.xlu0 %2087, %v1816
          %v2089 = vpop.permute.xlu0 %2088
          %2092 = vset.pattern.permute.xlu0 0
          %2093 = vperm.xlu0 %2092, %v1817
          %v2094 = vpop.permute.xlu0 %2093
          %2097 = vset.pattern.permute.xlu0 0
          %2098 = vperm.xlu0 %2097, %v1818
          %v2099 = vpop.permute.xlu0 %2098
          %2102 = vset.pattern.permute.xlu0 0
          %2103 = vperm.xlu0 %2102, %v1819
          %v2104 = vpop.permute.xlu0 %2103
          %2107 = vset.pattern.permute.xlu0 0
          %2108 = vperm.xlu0 %2107, %v1820
          %v2109 = vpop.permute.xlu0 %2108
          %2112 = vset.pattern.permute.xlu0 0
          %2113 = vperm.xlu0 %2112, %v1821
          %v2114 = vpop.permute.xlu0 %2113
          %2117 = vset.pattern.permute.xlu0 0
          %2118 = vperm.xlu0 %2117, %v1822
          %v2119 = vpop.permute.xlu0 %2118
          %v2121 = vmul.f32 %v1964, %v1929
          %v2122 = vmul.f32 %v1969, %v1930
          %v2123 = vmul.f32 %v1974, %v1931
          %v2124 = vmul.f32 %v1979, %v1932
          %v2125 = vmul.f32 %v1984, %v1933
          %v2126 = vmul.f32 %v1989, %v1934
          %v2127 = vmul.f32 %v1994, %v1935
          %v2128 = vmul.f32 %v1999, %v1936
          %v2129 = vmul.f32 %v2004, %v1937
          %v2130 = vmul.f32 %v2009, %v1938
          %v2131 = vmul.f32 %v2014, %v1939
          %v2132 = vmul.f32 %v2019, %v1940
          %v2133 = vmul.f32 %v2024, %v1941
          %v2134 = vmul.f32 %v2029, %v1942
          %v2135 = vmul.f32 %v2034, %v1943
          %v2136 = vmul.f32 %v2039, %v1944
          %v2137 = vmul.f32 %v2044, %v1945
          %v2138 = vmul.f32 %v2049, %v1946
          %v2139 = vmul.f32 %v2054, %v1947
          %v2140 = vmul.f32 %v2059, %v1948
          %v2141 = vmul.f32 %v2064, %v1949
          %v2142 = vmul.f32 %v2069, %v1950
          %v2143 = vmul.f32 %v2074, %v1951
          %v2144 = vmul.f32 %v2079, %v1952
          %v2145 = vmul.f32 %v2084, %v1953
          %v2146 = vmul.f32 %v2089, %v1954
          %v2147 = vmul.f32 %v2094, %v1955
          %v2148 = vmul.f32 %v2099, %v1956
          %v2149 = vmul.f32 %v2104, %v1957
          %v2150 = vmul.f32 %v2109, %v1958
          %v2151 = vmul.f32 %v2114, %v1959
          %v2152 = vmul.f32 %v2119, %v1960
          %s2153 = scalar_lea.vmem %s5, %s26
          %v2154 = vld [vmem:[%s2153] sm:$0x1]
          %v2156 = vlaneseq
          %v2157 = vshrl.u32 %v2156, 7
          %v2158 = vsub.s32 0, %v2157
          %v2159 = vrot.slane %v2154, %v2158
          %v2161 = vadd.f32 %v2121, %v2159
          %v2162 = vadd.f32 %v2122, %v2159
          %v2163 = vadd.f32 %v2123, %v2159
          %v2164 = vadd.f32 %v2124, %v2159
          %v2165 = vadd.f32 %v2125, %v2159
          %v2166 = vadd.f32 %v2126, %v2159
          %v2167 = vadd.f32 %v2127, %v2159
          %v2168 = vadd.f32 %v2128, %v2159
          %v2169 = vadd.f32 %v2129, %v2159
          %v2170 = vadd.f32 %v2130, %v2159
          %v2171 = vadd.f32 %v2131, %v2159
          %v2172 = vadd.f32 %v2132, %v2159
          %v2173 = vadd.f32 %v2133, %v2159
          %v2174 = vadd.f32 %v2134, %v2159
          %v2175 = vadd.f32 %v2135, %v2159
          %v2176 = vadd.f32 %v2136, %v2159
          %v2177 = vadd.f32 %v2137, %v2159
          %v2178 = vadd.f32 %v2138, %v2159
          %v2179 = vadd.f32 %v2139, %v2159
          %v2180 = vadd.f32 %v2140, %v2159
          %v2181 = vadd.f32 %v2141, %v2159
          %v2182 = vadd.f32 %v2142, %v2159
          %v2183 = vadd.f32 %v2143, %v2159
          %v2184 = vadd.f32 %v2144, %v2159
          %v2185 = vadd.f32 %v2145, %v2159
          %v2186 = vadd.f32 %v2146, %v2159
          %v2187 = vadd.f32 %v2147, %v2159
          %v2188 = vadd.f32 %v2148, %v2159
          %v2189 = vadd.f32 %v2149, %v2159
          %v2190 = vadd.f32 %v2150, %v2159
          %v2191 = vadd.f32 %v2151, %v2159
          %v2192 = vadd.f32 %v2152, %v2159
          %v2193 = vmax.f32 %v2161, 0.0
          %v2194 = vmax.f32 %v2162, 0.0
          %v2195 = vmax.f32 %v2163, 0.0
          %v2196 = vmax.f32 %v2164, 0.0
          %v2197 = vmax.f32 %v2165, 0.0
          %v2198 = vmax.f32 %v2166, 0.0
          %v2199 = vmax.f32 %v2167, 0.0
          %v2200 = vmax.f32 %v2168, 0.0
          %v2201 = vmax.f32 %v2169, 0.0
          %v2202 = vmax.f32 %v2170, 0.0
          %v2203 = vmax.f32 %v2171, 0.0
          %v2204 = vmax.f32 %v2172, 0.0
          %v2205 = vmax.f32 %v2173, 0.0
          %v2206 = vmax.f32 %v2174, 0.0
          %v2207 = vmax.f32 %v2175, 0.0
          %v2208 = vmax.f32 %v2176, 0.0
          %v2209 = vmax.f32 %v2177, 0.0
          %v2210 = vmax.f32 %v2178, 0.0
          %v2211 = vmax.f32 %v2179, 0.0
          %v2212 = vmax.f32 %v2180, 0.0
          %v2213 = vmax.f32 %v2181, 0.0
          %v2214 = vmax.f32 %v2182, 0.0
          %v2215 = vmax.f32 %v2183, 0.0
          %v2216 = vmax.f32 %v2184, 0.0
          %v2217 = vmax.f32 %v2185, 0.0
          %v2218 = vmax.f32 %v2186, 0.0
          %v2219 = vmax.f32 %v2187, 0.0
          %v2220 = vmax.f32 %v2188, 0.0
          %v2221 = vmax.f32 %v2189, 0.0
          %v2222 = vmax.f32 %v2190, 0.0
          %v2223 = vmax.f32 %v2191, 0.0
          %v2224 = vmax.f32 %v2192, 0.0
          %v2225 = vpack.c.bf16 %v2194, %v2193
          %v2226 = vpack.c.bf16 %v2196, %v2195
          %v2227 = vpack.c.bf16 %v2198, %v2197
          %v2228 = vpack.c.bf16 %v2200, %v2199
          %v2229 = vpack.c.bf16 %v2202, %v2201
          %v2230 = vpack.c.bf16 %v2204, %v2203
          %v2231 = vpack.c.bf16 %v2206, %v2205
          %v2232 = vpack.c.bf16 %v2208, %v2207
          %v2233 = vpack.c.bf16 %v2210, %v2209
          %v2234 = vpack.c.bf16 %v2212, %v2211
          %v2235 = vpack.c.bf16 %v2214, %v2213
          %v2236 = vpack.c.bf16 %v2216, %v2215
          %v2237 = vpack.c.bf16 %v2218, %v2217
          %v2238 = vpack.c.bf16 %v2220, %v2219
          %v2239 = vpack.c.bf16 %v2222, %v2221
          %v2240 = vpack.c.bf16 %v2224, %v2223
          %v2257 = vunpack.c.l.b16 %v2225
          %v2258 = vunpack.c.h.b16 %v2225
          %v2259 = vunpack.c.l.b16 %v2226
          %v2260 = vunpack.c.h.b16 %v2226
          %v2261 = vunpack.c.l.b16 %v2227
          %v2262 = vunpack.c.h.b16 %v2227
          %v2263 = vunpack.c.l.b16 %v2228
          %v2264 = vunpack.c.h.b16 %v2228
          %v2265 = vunpack.c.l.b16 %v2229
          %v2266 = vunpack.c.h.b16 %v2229
          %v2267 = vunpack.c.l.b16 %v2230
          %v2268 = vunpack.c.h.b16 %v2230
          %v2269 = vunpack.c.l.b16 %v2231
          %v2270 = vunpack.c.h.b16 %v2231
          %v2271 = vunpack.c.l.b16 %v2232
          %v2272 = vunpack.c.h.b16 %v2232
          %v2273 = vunpack.c.l.b16 %v2233
          %v2274 = vunpack.c.h.b16 %v2233
          %v2275 = vunpack.c.l.b16 %v2234
          %v2276 = vunpack.c.h.b16 %v2234
          %v2277 = vunpack.c.l.b16 %v2235
          %v2278 = vunpack.c.h.b16 %v2235
          %v2279 = vunpack.c.l.b16 %v2236
          %v2280 = vunpack.c.h.b16 %v2236
          %v2281 = vunpack.c.l.b16 %v2237
          %v2282 = vunpack.c.h.b16 %v2237
          %v2283 = vunpack.c.l.b16 %v2238
          %v2284 = vunpack.c.h.b16 %v2238
          %v2285 = vunpack.c.l.b16 %v2239
          %v2286 = vunpack.c.h.b16 %v2239
          %v2287 = vunpack.c.l.b16 %v2240
          %v2288 = vunpack.c.h.b16 %v2240
          %v2289 = vpack.c.b16 %v2257, %v2257
          %v2290 = vpack.c.b16 %v2258, %v2258
          %v2291 = vpack.c.b16 %v2259, %v2259
          %v2292 = vpack.c.b16 %v2260, %v2260
          %v2293 = vpack.c.b16 %v2261, %v2261
          %v2294 = vpack.c.b16 %v2262, %v2262
          %v2295 = vpack.c.b16 %v2263, %v2263
          %v2296 = vpack.c.b16 %v2264, %v2264
          %v2297 = vpack.c.b16 %v2265, %v2265
          %v2298 = vpack.c.b16 %v2266, %v2266
          %v2299 = vpack.c.b16 %v2267, %v2267
          %v2300 = vpack.c.b16 %v2268, %v2268
          %v2301 = vpack.c.b16 %v2269, %v2269
          %v2302 = vpack.c.b16 %v2270, %v2270
          %v2303 = vpack.c.b16 %v2271, %v2271
          %v2304 = vpack.c.b16 %v2272, %v2272
          %v2305 = vpack.c.b16 %v2273, %v2273
          %v2306 = vpack.c.b16 %v2274, %v2274
          %v2307 = vpack.c.b16 %v2275, %v2275
          %v2308 = vpack.c.b16 %v2276, %v2276
          %v2309 = vpack.c.b16 %v2277, %v2277
          %v2310 = vpack.c.b16 %v2278, %v2278
          %v2311 = vpack.c.b16 %v2279, %v2279
          %v2312 = vpack.c.b16 %v2280, %v2280
          %v2313 = vpack.c.b16 %v2281, %v2281
          %v2314 = vpack.c.b16 %v2282, %v2282
          %v2315 = vpack.c.b16 %v2283, %v2283
          %v2316 = vpack.c.b16 %v2284, %v2284
          %v2317 = vpack.c.b16 %v2285, %v2285
          %v2318 = vpack.c.b16 %v2286, %v2286
          %v2319 = vpack.c.b16 %v2287, %v2287
          %v2320 = vpack.c.b16 %v2288, %v2288
          %s2353 = smul.addr %s1169, 4
          %s2354 = scalar_lea.vmem [#allocation3], %s2353
          %2355 = vst [vmem:[%s2354] sm:$0xf] %v2289
          %2356 = vst [vmem:[%s2354 + $0x4] sm:$0xf] %v2290
          %2357 = vst [vmem:[%s2354 + $0x8] sm:$0xf] %v2291
          %2358 = vst [vmem:[%s2354 + $0xc] sm:$0xf] %v2292
          %2359 = vst [vmem:[%s2354 + $0x10] sm:$0xf] %v2293
          %2360 = vst [vmem:[%s2354 + $0x14] sm:$0xf] %v2294
          %2361 = vst [vmem:[%s2354 + $0x18] sm:$0xf] %v2295
          %2362 = vst [vmem:[%s2354 + $0x1c] sm:$0xf] %v2296
          %2363 = vst [vmem:[%s2354 + $0x20] sm:$0xf] %v2297
          %2364 = vst [vmem:[%s2354 + $0x24] sm:$0xf] %v2298
          %2365 = vst [vmem:[%s2354 + $0x28] sm:$0xf] %v2299
          %2366 = vst [vmem:[%s2354 + $0x2c] sm:$0xf] %v2300
          %2367 = vst [vmem:[%s2354 + $0x30] sm:$0xf] %v2301
          %2368 = vst [vmem:[%s2354 + $0x34] sm:$0xf] %v2302
          %2369 = vst [vmem:[%s2354 + $0x38] sm:$0xf] %v2303
          %2370 = vst [vmem:[%s2354 + $0x3c] sm:$0xf] %v2304
          %2371 = vst [vmem:[%s2354 + $0x40] sm:$0xf] %v2305
          %2372 = vst [vmem:[%s2354 + $0x44] sm:$0xf] %v2306
          %2373 = vst [vmem:[%s2354 + $0x48] sm:$0xf] %v2307
          %2374 = vst [vmem:[%s2354 + $0x4c] sm:$0xf] %v2308
          %2375 = vst [vmem:[%s2354 + $0x50] sm:$0xf] %v2309
          %2376 = vst [vmem:[%s2354 + $0x54] sm:$0xf] %v2310
          %2377 = vst [vmem:[%s2354 + $0x58] sm:$0xf] %v2311
          %2378 = vst [vmem:[%s2354 + $0x5c] sm:$0xf] %v2312
          %2379 = vst [vmem:[%s2354 + $0x60] sm:$0xf] %v2313
          %2380 = vst [vmem:[%s2354 + $0x64] sm:$0xf] %v2314
          %2381 = vst [vmem:[%s2354 + $0x68] sm:$0xf] %v2315
          %2382 = vst [vmem:[%s2354 + $0x6c] sm:$0xf] %v2316
          %2383 = vst [vmem:[%s2354 + $0x70] sm:$0xf] %v2317
          %2384 = vst [vmem:[%s2354 + $0x74] sm:$0xf] %v2318
          %2385 = vst [vmem:[%s2354 + $0x78] sm:$0xf] %v2319
          %2386 = vst [vmem:[%s2354 + $0x7c] sm:$0xf] %v2320
          %s2387 = sadd.s32 %s26, 1
          %p2388 = scmp.lt.s32.totalorder %s2387, 3
          // Predicated region
          $region77: #{residual_gc_forward.1} parent=75 // pred_check
            %p2389 = pneg %p2388
          $region78: #{residual_gc_forward.1} parent=75 // pred_check_branch
            %2391 = sbr.rel (%p2389) target = $region80
          $region79: #{residual_gc_forward.1} parent=75 // pred_region
            %s2392 = smul.u32 %s2387, 16
            %s2393 = smul.addr %s2392, 4
            %s2394 = scalar_lea.vmem %s4, %s2393
            %v2395 = vld [vmem:[%s2394] sm:$0xf]
            %v2396 = vld [vmem:[%s2394 + $0x4] sm:$0xf]
            %v2397 = vld [vmem:[%s2394 + $0x8] sm:$0xf]
            %v2398 = vld [vmem:[%s2394 + $0xc] sm:$0xf]
            %v2399 = vld [vmem:[%s2394 + $0x10] sm:$0xf]
            %v2400 = vld [vmem:[%s2394 + $0x14] sm:$0xf]
            %v2401 = vld [vmem:[%s2394 + $0x18] sm:$0xf]
            %v2402 = vld [vmem:[%s2394 + $0x1c] sm:$0xf]
            %v2403 = vld [vmem:[%s2394 + $0x20] sm:$0xf]
            %v2404 = vld [vmem:[%s2394 + $0x24] sm:$0xf]
            %v2405 = vld [vmem:[%s2394 + $0x28] sm:$0xf]
            %v2406 = vld [vmem:[%s2394 + $0x2c] sm:$0xf]
            %v2407 = vld [vmem:[%s2394 + $0x30] sm:$0xf]
            %v2408 = vld [vmem:[%s2394 + $0x34] sm:$0xf]
            %v2409 = vld [vmem:[%s2394 + $0x38] sm:$0xf]
            %v2410 = vld [vmem:[%s2394 + $0x3c] sm:$0xf]
            %v2427 = vunpack.c.l.b16 %v2395
            %v2428 = vunpack.c.l.b16 %v2396
            %v2429 = vunpack.c.l.b16 %v2397
            %v2430 = vunpack.c.l.b16 %v2398
            %v2431 = vunpack.c.l.b16 %v2399
            %v2432 = vunpack.c.l.b16 %v2400
            %v2433 = vunpack.c.l.b16 %v2401
            %v2434 = vunpack.c.l.b16 %v2402
            %v2435 = vunpack.c.l.b16 %v2403
            %v2436 = vunpack.c.l.b16 %v2404
            %v2437 = vunpack.c.l.b16 %v2405
            %v2438 = vunpack.c.l.b16 %v2406
            %v2439 = vunpack.c.l.b16 %v2407
            %v2440 = vunpack.c.l.b16 %v2408
            %v2441 = vunpack.c.l.b16 %v2409
            %v2442 = vunpack.c.l.b16 %v2410
            %v2443 = vpack.c.b16 %v2428, %v2427
            %v2444 = vpack.c.b16 %v2430, %v2429
            %v2445 = vpack.c.b16 %v2432, %v2431
            %v2446 = vpack.c.b16 %v2434, %v2433
            %v2447 = vpack.c.b16 %v2436, %v2435
            %v2448 = vpack.c.b16 %v2438, %v2437
            %v2449 = vpack.c.b16 %v2440, %v2439
            %v2450 = vpack.c.b16 %v2442, %v2441
            %2459 = vmatprep.subr.bf16.mxu0 0
            %2460 = vmatpush1.bf16.msra.mxu0 %v2450
            %2461 = vmatprep.subr.bf16.mxu0 0
            %2462 = vmatpush1.bf16.msra.mxu0 %v2449
            %2463 = vmatprep.subr.bf16.mxu0 0
            %2464 = vmatpush1.bf16.msra.mxu0 %v2448
            %2465 = vmatprep.subr.bf16.mxu0 0
            %2466 = vmatpush1.bf16.msra.mxu0 %v2447
            %2467 = vmatprep.subr.bf16.mxu0 0
            %2468 = vmatpush1.bf16.msra.mxu0 %v2446
            %2469 = vmatprep.subr.bf16.mxu0 0
            %2470 = vmatpush1.bf16.msra.mxu0 %v2445
            %2471 = vmatprep.subr.bf16.mxu0 0
            %2472 = vmatpush1.bf16.msra.mxu0 %v2444
            %2473 = vmatprep.subr.bf16.mxu0 0
            %2474 = vmatpush1.bf16.msra.mxu0 %v2443
            %2475 = vmatprep.subr.bf16.mxu0 0
            %2476 = vmatpush2.bf16.msra.mxu0 0
            %2477 = vmatprep.subr.bf16.mxu0 0
            %2478 = vmatpush2.bf16.msra.mxu0 0
            %2479 = vmatprep.subr.bf16.mxu0 0
            %2480 = vmatpush2.bf16.msra.mxu0 0
            %2481 = vmatprep.subr.bf16.mxu0 0
            %2482 = vmatpush2.bf16.msra.mxu0 0
            %2483 = vmatprep.subr.bf16.mxu0 0
            %2484 = vmatpush2.bf16.msra.mxu0 0
            %2485 = vmatprep.subr.bf16.mxu0 0
            %2486 = vmatpush2.bf16.msra.mxu0 0
            %2487 = vmatprep.subr.bf16.mxu0 0
            %2488 = vmatpush2.bf16.msra.mxu0 0
            %2489 = vmatprep.subr.bf16.mxu0 0
            %2490 = vmatpush2.bf16.msra.mxu0 0
            %2491 = vmatprep.mubr.bf16.mxu0 0
            %2492 = vmatmul.mubr.bf16.gmra.mxu0 %v2225
            %v2493 = vpop.f32.mrf.mxu0
            %v2494 = vadd.f32 0.0, %v2493
            %v2495 = vpop.f32.mrf.mxu0
            %v2496 = vpop.f32.mrf.mxu0
            %v2497 = vadd.f32 0.0, %v2496
            %v2498 = vpop.f32.mrf.mxu0
            %2499 = vmatprep.mubr.bf16.mxu0 0
            %2500 = vmatmul.mubr.bf16.gmra.mxu0 %v2226
            %v2501 = vpop.f32.mrf.mxu0
            %v2502 = vadd.f32 0.0, %v2501
            %v2503 = vpop.f32.mrf.mxu0
            %v2504 = vpop.f32.mrf.mxu0
            %v2505 = vadd.f32 0.0, %v2504
            %v2506 = vpop.f32.mrf.mxu0
            %2507 = vmatprep.mubr.bf16.mxu0 0
            %2508 = vmatmul.mubr.bf16.gmra.mxu0 %v2227
            %v2509 = vpop.f32.mrf.mxu0
            %v2510 = vadd.f32 0.0, %v2509
            %v2511 = vpop.f32.mrf.mxu0
            %v2512 = vpop.f32.mrf.mxu0
            %v2513 = vadd.f32 0.0, %v2512
            %v2514 = vpop.f32.mrf.mxu0
            %2515 = vmatprep.mubr.bf16.mxu0 0
            %2516 = vmatmul.mubr.bf16.gmra.mxu0 %v2228
            %v2517 = vpop.f32.mrf.mxu0
            %v2518 = vadd.f32 0.0, %v2517
            %v2519 = vpop.f32.mrf.mxu0
            %v2520 = vpop.f32.mrf.mxu0
            %v2521 = vadd.f32 0.0, %v2520
            %v2522 = vpop.f32.mrf.mxu0
            %2523 = vmatprep.mubr.bf16.mxu0 0
            %2524 = vmatmul.mubr.bf16.gmra.mxu0 %v2229
            %v2525 = vpop.f32.mrf.mxu0
            %v2526 = vadd.f32 0.0, %v2525
            %v2527 = vpop.f32.mrf.mxu0
            %v2528 = vpop.f32.mrf.mxu0
            %v2529 = vadd.f32 0.0, %v2528
            %v2530 = vpop.f32.mrf.mxu0
            %2531 = vmatprep.mubr.bf16.mxu0 0
            %2532 = vmatmul.mubr.bf16.gmra.mxu0 %v2230
            %v2533 = vpop.f32.mrf.mxu0
            %v2534 = vadd.f32 0.0, %v2533
            %v2535 = vpop.f32.mrf.mxu0
            %v2536 = vpop.f32.mrf.mxu0
            %v2537 = vadd.f32 0.0, %v2536
            %v2538 = vpop.f32.mrf.mxu0
            %2539 = vmatprep.mubr.bf16.mxu0 0
            %2540 = vmatmul.mubr.bf16.gmra.mxu0 %v2231
            %v2541 = vpop.f32.mrf.mxu0
            %v2542 = vadd.f32 0.0, %v2541
            %v2543 = vpop.f32.mrf.mxu0
            %v2544 = vpop.f32.mrf.mxu0
            %v2545 = vadd.f32 0.0, %v2544
            %v2546 = vpop.f32.mrf.mxu0
            %2547 = vmatprep.mubr.bf16.mxu0 0
            %2548 = vmatmul.mubr.bf16.gmra.mxu0 %v2232
            %v2549 = vpop.f32.mrf.mxu0
            %v2550 = vadd.f32 0.0, %v2549
            %v2551 = vpop.f32.mrf.mxu0
            %v2552 = vpop.f32.mrf.mxu0
            %v2553 = vadd.f32 0.0, %v2552
            %v2554 = vpop.f32.mrf.mxu0
            %2555 = vmatprep.mubr.bf16.mxu0 0
            %2556 = vmatmul.mubr.bf16.gmra.mxu0 %v2233
            %v2557 = vpop.f32.mrf.mxu0
            %v2558 = vadd.f32 0.0, %v2557
            %v2559 = vpop.f32.mrf.mxu0
            %v2560 = vpop.f32.mrf.mxu0
            %v2561 = vadd.f32 0.0, %v2560
            %v2562 = vpop.f32.mrf.mxu0
            %2563 = vmatprep.mubr.bf16.mxu0 0
            %2564 = vmatmul.mubr.bf16.gmra.mxu0 %v2234
            %v2565 = vpop.f32.mrf.mxu0
            %v2566 = vadd.f32 0.0, %v2565
            %v2567 = vpop.f32.mrf.mxu0
            %v2568 = vpop.f32.mrf.mxu0
            %v2569 = vadd.f32 0.0, %v2568
            %v2570 = vpop.f32.mrf.mxu0
            %2571 = vmatprep.mubr.bf16.mxu0 0
            %2572 = vmatmul.mubr.bf16.gmra.mxu0 %v2235
            %v2573 = vpop.f32.mrf.mxu0
            %v2574 = vadd.f32 0.0, %v2573
            %v2575 = vpop.f32.mrf.mxu0
            %v2576 = vpop.f32.mrf.mxu0
            %v2577 = vadd.f32 0.0, %v2576
            %v2578 = vpop.f32.mrf.mxu0
            %2579 = vmatprep.mubr.bf16.mxu0 0
            %2580 = vmatmul.mubr.bf16.gmra.mxu0 %v2236
            %v2581 = vpop.f32.mrf.mxu0
            %v2582 = vadd.f32 0.0, %v2581
            %v2583 = vpop.f32.mrf.mxu0
            %v2584 = vpop.f32.mrf.mxu0
            %v2585 = vadd.f32 0.0, %v2584
            %v2586 = vpop.f32.mrf.mxu0
            %2587 = vmatprep.mubr.bf16.mxu0 0
            %2588 = vmatmul.mubr.bf16.gmra.mxu0 %v2237
            %v2589 = vpop.f32.mrf.mxu0
            %v2590 = vadd.f32 0.0, %v2589
            %v2591 = vpop.f32.mrf.mxu0
            %v2592 = vpop.f32.mrf.mxu0
            %v2593 = vadd.f32 0.0, %v2592
            %v2594 = vpop.f32.mrf.mxu0
            %2595 = vmatprep.mubr.bf16.mxu0 0
            %2596 = vmatmul.mubr.bf16.gmra.mxu0 %v2238
            %v2597 = vpop.f32.mrf.mxu0
            %v2598 = vadd.f32 0.0, %v2597
            %v2599 = vpop.f32.mrf.mxu0
            %v2600 = vpop.f32.mrf.mxu0
            %v2601 = vadd.f32 0.0, %v2600
            %v2602 = vpop.f32.mrf.mxu0
            %2603 = vmatprep.mubr.bf16.mxu0 0
            %2604 = vmatmul.mubr.bf16.gmra.mxu0 %v2239
            %v2605 = vpop.f32.mrf.mxu0
            %v2606 = vadd.f32 0.0, %v2605
            %v2607 = vpop.f32.mrf.mxu0
            %v2608 = vpop.f32.mrf.mxu0
            %v2609 = vadd.f32 0.0, %v2608
            %v2610 = vpop.f32.mrf.mxu0
            %2611 = vmatprep.mubr.bf16.mxu0 0
            %2612 = vmatmul.mubr.bf16.gmra.mxu0 %v2240
            %v2613 = vpop.f32.mrf.mxu0
            %v2614 = vadd.f32 0.0, %v2613
            %v2615 = vpop.f32.mrf.mxu0
            %v2616 = vpop.f32.mrf.mxu0
            %v2617 = vadd.f32 0.0, %v2616
            %v2618 = vpop.f32.mrf.mxu0
            %2619 = vdwg.mxu0
            %v2620 = vmul.f32 %v1964, %v2494
            %v2621 = vmul.f32 %v1969, %v2497
            %v2622 = vmul.f32 %v1974, %v2502
            %v2623 = vmul.f32 %v1979, %v2505
            %v2624 = vmul.f32 %v1984, %v2510
            %v2625 = vmul.f32 %v1989, %v2513
            %v2626 = vmul.f32 %v1994, %v2518
            %v2627 = vmul.f32 %v1999, %v2521
            %v2628 = vmul.f32 %v2004, %v2526
            %v2629 = vmul.f32 %v2009, %v2529
            %v2630 = vmul.f32 %v2014, %v2534
            %v2631 = vmul.f32 %v2019, %v2537
            %v2632 = vmul.f32 %v2024, %v2542
            %v2633 = vmul.f32 %v2029, %v2545
            %v2634 = vmul.f32 %v2034, %v2550
            %v2635 = vmul.f32 %v2039, %v2553
            %v2636 = vmul.f32 %v2044, %v2558
            %v2637 = vmul.f32 %v2049, %v2561
            %v2638 = vmul.f32 %v2054, %v2566
            %v2639 = vmul.f32 %v2059, %v2569
            %v2640 = vmul.f32 %v2064, %v2574
            %v2641 = vmul.f32 %v2069, %v2577
            %v2642 = vmul.f32 %v2074, %v2582
            %v2643 = vmul.f32 %v2079, %v2585
            %v2644 = vmul.f32 %v2084, %v2590
            %v2645 = vmul.f32 %v2089, %v2593
            %v2646 = vmul.f32 %v2094, %v2598
            %v2647 = vmul.f32 %v2099, %v2601
            %v2648 = vmul.f32 %v2104, %v2606
            %v2649 = vmul.f32 %v2109, %v2609
            %v2650 = vmul.f32 %v2114, %v2614
            %v2651 = vmul.f32 %v2119, %v2617
            %v2652 = vpack.c.bf16 %v2621, %v2620
            %v2653 = vpack.c.bf16 %v2623, %v2622
            %v2654 = vpack.c.bf16 %v2625, %v2624
            %v2655 = vpack.c.bf16 %v2627, %v2626
            %v2656 = vpack.c.bf16 %v2629, %v2628
            %v2657 = vpack.c.bf16 %v2631, %v2630
            %v2658 = vpack.c.bf16 %v2633, %v2632
            %v2659 = vpack.c.bf16 %v2635, %v2634
            %v2660 = vpack.c.bf16 %v2637, %v2636
            %v2661 = vpack.c.bf16 %v2639, %v2638
            %v2662 = vpack.c.bf16 %v2641, %v2640
            %v2663 = vpack.c.bf16 %v2643, %v2642
            %v2664 = vpack.c.bf16 %v2645, %v2644
            %v2665 = vpack.c.bf16 %v2647, %v2646
            %v2666 = vpack.c.bf16 %v2649, %v2648
            %v2667 = vpack.c.bf16 %v2651, %v2650
            %v2684 = vunpack.c.l.b16 %v2652
            %v2685 = vunpack.c.h.b16 %v2652
            %v2686 = vunpack.c.l.b16 %v2653
            %v2687 = vunpack.c.h.b16 %v2653
            %v2688 = vunpack.c.l.b16 %v2654
            %v2689 = vunpack.c.h.b16 %v2654
            %v2690 = vunpack.c.l.b16 %v2655
            %v2691 = vunpack.c.h.b16 %v2655
            %v2692 = vunpack.c.l.b16 %v2656
            %v2693 = vunpack.c.h.b16 %v2656
            %v2694 = vunpack.c.l.b16 %v2657
            %v2695 = vunpack.c.h.b16 %v2657
            %v2696 = vunpack.c.l.b16 %v2658
            %v2697 = vunpack.c.h.b16 %v2658
            %v2698 = vunpack.c.l.b16 %v2659
            %v2699 = vunpack.c.h.b16 %v2659
            %v2700 = vunpack.c.l.b16 %v2660
            %v2701 = vunpack.c.h.b16 %v2660
            %v2702 = vunpack.c.l.b16 %v2661
            %v2703 = vunpack.c.h.b16 %v2661
            %v2704 = vunpack.c.l.b16 %v2662
            %v2705 = vunpack.c.h.b16 %v2662
            %v2706 = vunpack.c.l.b16 %v2663
            %v2707 = vunpack.c.h.b16 %v2663
            %v2708 = vunpack.c.l.b16 %v2664
            %v2709 = vunpack.c.h.b16 %v2664
            %v2710 = vunpack.c.l.b16 %v2665
            %v2711 = vunpack.c.h.b16 %v2665
            %v2712 = vunpack.c.l.b16 %v2666
            %v2713 = vunpack.c.h.b16 %v2666
            %v2714 = vunpack.c.l.b16 %v2667
            %v2715 = vunpack.c.h.b16 %v2667
            %v2716 = vpack.c.b16 %v2684, %v2684
            %v2717 = vpack.c.b16 %v2685, %v2685
            %v2718 = vpack.c.b16 %v2686, %v2686
            %v2719 = vpack.c.b16 %v2687, %v2687
            %v2720 = vpack.c.b16 %v2688, %v2688
            %v2721 = vpack.c.b16 %v2689, %v2689
            %v2722 = vpack.c.b16 %v2690, %v2690
            %v2723 = vpack.c.b16 %v2691, %v2691
            %v2724 = vpack.c.b16 %v2692, %v2692
            %v2725 = vpack.c.b16 %v2693, %v2693
            %v2726 = vpack.c.b16 %v2694, %v2694
            %v2727 = vpack.c.b16 %v2695, %v2695
            %v2728 = vpack.c.b16 %v2696, %v2696
            %v2729 = vpack.c.b16 %v2697, %v2697
            %v2730 = vpack.c.b16 %v2698, %v2698
            %v2731 = vpack.c.b16 %v2699, %v2699
            %v2732 = vpack.c.b16 %v2700, %v2700
            %v2733 = vpack.c.b16 %v2701, %v2701
            %v2734 = vpack.c.b16 %v2702, %v2702
            %v2735 = vpack.c.b16 %v2703, %v2703
            %v2736 = vpack.c.b16 %v2704, %v2704
            %v2737 = vpack.c.b16 %v2705, %v2705
            %v2738 = vpack.c.b16 %v2706, %v2706
            %v2739 = vpack.c.b16 %v2707, %v2707
            %v2740 = vpack.c.b16 %v2708, %v2708
            %v2741 = vpack.c.b16 %v2709, %v2709
            %v2742 = vpack.c.b16 %v2710, %v2710
            %v2743 = vpack.c.b16 %v2711, %v2711
            %v2744 = vpack.c.b16 %v2712, %v2712
            %v2745 = vpack.c.b16 %v2713, %v2713
            %v2746 = vpack.c.b16 %v2714, %v2714
            %v2747 = vpack.c.b16 %v2715, %v2715
            %s2780 = sshra.s32 %s380, 3
            %s2781 = sand.u32 %s380, 7
            %s2782 = smul.addr %s2780, 4
            %s2783 = scalar_lea.vmem [#allocation2], %s2782
            %2784 = vst [vmem:[%s2783] sm:$0xf] %v2716
            %2785 = vst [vmem:[%s2783 + $0x4] sm:$0xf] %v2717
            %2786 = vst [vmem:[%s2783 + $0x8] sm:$0xf] %v2718
            %2787 = vst [vmem:[%s2783 + $0xc] sm:$0xf] %v2719
            %2788 = vst [vmem:[%s2783 + $0x10] sm:$0xf] %v2720
            %2789 = vst [vmem:[%s2783 + $0x14] sm:$0xf] %v2721
            %2790 = vst [vmem:[%s2783 + $0x18] sm:$0xf] %v2722
            %2791 = vst [vmem:[%s2783 + $0x1c] sm:$0xf] %v2723
            %2792 = vst [vmem:[%s2783 + $0x20] sm:$0xf] %v2724
            %2793 = vst [vmem:[%s2783 + $0x24] sm:$0xf] %v2725
            %2794 = vst [vmem:[%s2783 + $0x28] sm:$0xf] %v2726
            %2795 = vst [vmem:[%s2783 + $0x2c] sm:$0xf] %v2727
            %2796 = vst [vmem:[%s2783 + $0x30] sm:$0xf] %v2728
            %2797 = vst [vmem:[%s2783 + $0x34] sm:$0xf] %v2729
            %2798 = vst [vmem:[%s2783 + $0x38] sm:$0xf] %v2730
            %2799 = vst [vmem:[%s2783 + $0x3c] sm:$0xf] %v2731
            %2800 = vst [vmem:[%s2783 + $0x40] sm:$0xf] %v2732
            %2801 = vst [vmem:[%s2783 + $0x44] sm:$0xf] %v2733
            %2802 = vst [vmem:[%s2783 + $0x48] sm:$0xf] %v2734
            %2803 = vst [vmem:[%s2783 + $0x4c] sm:$0xf] %v2735
            %2804 = vst [vmem:[%s2783 + $0x50] sm:$0xf] %v2736
            %2805 = vst [vmem:[%s2783 + $0x54] sm:$0xf] %v2737
            %2806 = vst [vmem:[%s2783 + $0x58] sm:$0xf] %v2738
            %2807 = vst [vmem:[%s2783 + $0x5c] sm:$0xf] %v2739
            %2808 = vst [vmem:[%s2783 + $0x60] sm:$0xf] %v2740
            %2809 = vst [vmem:[%s2783 + $0x64] sm:$0xf] %v2741
            %2810 = vst [vmem:[%s2783 + $0x68] sm:$0xf] %v2742
            %2811 = vst [vmem:[%s2783 + $0x6c] sm:$0xf] %v2743
            %2812 = vst [vmem:[%s2783 + $0x70] sm:$0xf] %v2744
            %2813 = vst [vmem:[%s2783 + $0x74] sm:$0xf] %v2745
            %2814 = vst [vmem:[%s2783 + $0x78] sm:$0xf] %v2746
            %2815 = vst [vmem:[%s2783 + $0x7c] sm:$0xf] %v2747
          $region80: #{residual_gc_forward.1} parent=75 // pred_fallthru
            _
          %p2816 = scmp.eq.s32.totalorder %s2387, 3
          // Predicated region
          $region81: #{residual_gc_forward.1} parent=75 // pred_check
            %p2817 = pneg %p2816
          $region82: #{residual_gc_forward.1} parent=75 // pred_check_branch
            %2819 = sbr.rel (%p2817) target = $region84
          $region83: #{residual_gc_forward.1} parent=75 // pred_region
            %v2820 = vld [vmem:[%s6] sm:$0xf]
            %v2821 = vld [vmem:[%s6 + $0x4] sm:$0xf]
            %v2822 = vld [vmem:[%s6 + $0x8] sm:$0xf]
            %v2823 = vld [vmem:[%s6 + $0xc] sm:$0xf]
            %v2824 = vld [vmem:[%s6 + $0x10] sm:$0xf]
            %v2825 = vld [vmem:[%s6 + $0x14] sm:$0xf]
            %v2826 = vld [vmem:[%s6 + $0x18] sm:$0xf]
            %v2827 = vld [vmem:[%s6 + $0x1c] sm:$0xf]
            %v2828 = vld [vmem:[%s6 + $0x20] sm:$0xf]
            %v2829 = vld [vmem:[%s6 + $0x24] sm:$0xf]
            %v2830 = vld [vmem:[%s6 + $0x28] sm:$0xf]
            %v2831 = vld [vmem:[%s6 + $0x2c] sm:$0xf]
            %v2832 = vld [vmem:[%s6 + $0x30] sm:$0xf]
            %v2833 = vld [vmem:[%s6 + $0x34] sm:$0xf]
            %v2834 = vld [vmem:[%s6 + $0x38] sm:$0xf]
            %v2835 = vld [vmem:[%s6 + $0x3c] sm:$0xf]
            %s2836 = scalar_lea.vmem %s6, 64
            %v2837 = vld [vmem:[%s2836] sm:$0xf]
            %v2838 = vld [vmem:[%s2836 + $0x4] sm:$0xf]
            %v2839 = vld [vmem:[%s2836 + $0x8] sm:$0xf]
            %v2840 = vld [vmem:[%s2836 + $0xc] sm:$0xf]
            %v2841 = vld [vmem:[%s2836 + $0x10] sm:$0xf]
            %v2842 = vld [vmem:[%s2836 + $0x14] sm:$0xf]
            %v2843 = vld [vmem:[%s2836 + $0x18] sm:$0xf]
            %v2844 = vld [vmem:[%s2836 + $0x1c] sm:$0xf]
            %v2845 = vld [vmem:[%s2836 + $0x20] sm:$0xf]
            %v2846 = vld [vmem:[%s2836 + $0x24] sm:$0xf]
            %v2847 = vld [vmem:[%s2836 + $0x28] sm:$0xf]
            %v2848 = vld [vmem:[%s2836 + $0x2c] sm:$0xf]
            %v2849 = vld [vmem:[%s2836 + $0x30] sm:$0xf]
            %v2850 = vld [vmem:[%s2836 + $0x34] sm:$0xf]
            %v2851 = vld [vmem:[%s2836 + $0x38] sm:$0xf]
            %v2852 = vld [vmem:[%s2836 + $0x3c] sm:$0xf]
            %v2869 = vunpack.c.l.b16 %v2837
            %v2870 = vunpack.c.l.b16 %v2838
            %v2871 = vunpack.c.l.b16 %v2839
            %v2872 = vunpack.c.l.b16 %v2840
            %v2873 = vunpack.c.l.b16 %v2841
            %v2874 = vunpack.c.l.b16 %v2842
            %v2875 = vunpack.c.l.b16 %v2843
            %v2876 = vunpack.c.l.b16 %v2844
            %v2877 = vunpack.c.l.b16 %v2845
            %v2878 = vunpack.c.l.b16 %v2846
            %v2879 = vunpack.c.l.b16 %v2847
            %v2880 = vunpack.c.l.b16 %v2848
            %v2881 = vunpack.c.l.b16 %v2849
            %v2882 = vunpack.c.l.b16 %v2850
            %v2883 = vunpack.c.l.b16 %v2851
            %v2884 = vunpack.c.l.b16 %v2852
            %v2885 = vpack.c.b16 %v2870, %v2869
            %v2886 = vpack.c.b16 %v2872, %v2871
            %v2887 = vpack.c.b16 %v2874, %v2873
            %v2888 = vpack.c.b16 %v2876, %v2875
            %v2889 = vpack.c.b16 %v2878, %v2877
            %v2890 = vpack.c.b16 %v2880, %v2879
            %v2891 = vpack.c.b16 %v2882, %v2881
            %v2892 = vpack.c.b16 %v2884, %v2883
            %2901 = vmatprep.subr.bf16.mxu0 0
            %2902 = vmatpush1.bf16.msra.mxu0 %v2892
            %2903 = vmatprep.subr.bf16.mxu0 0
            %2904 = vmatpush1.bf16.msra.mxu0 %v2891
            %2905 = vmatprep.subr.bf16.mxu0 0
            %2906 = vmatpush1.bf16.msra.mxu0 %v2890
            %2907 = vmatprep.subr.bf16.mxu0 0
            %2908 = vmatpush1.bf16.msra.mxu0 %v2889
            %2909 = vmatprep.subr.bf16.mxu0 0
            %2910 = vmatpush1.bf16.msra.mxu0 %v2888
            %2911 = vmatprep.subr.bf16.mxu0 0
            %2912 = vmatpush1.bf16.msra.mxu0 %v2887
            %2913 = vmatprep.subr.bf16.mxu0 0
            %2914 = vmatpush1.bf16.msra.mxu0 %v2886
            %2915 = vmatprep.subr.bf16.mxu0 0
            %2916 = vmatpush1.bf16.msra.mxu0 %v2885
            %2917 = vmatprep.subr.bf16.mxu0 0
            %2918 = vmatpush2.bf16.msra.mxu0 0
            %2919 = vmatprep.subr.bf16.mxu0 0
            %2920 = vmatpush2.bf16.msra.mxu0 0
            %2921 = vmatprep.subr.bf16.mxu0 0
            %2922 = vmatpush2.bf16.msra.mxu0 0
            %2923 = vmatprep.subr.bf16.mxu0 0
            %2924 = vmatpush2.bf16.msra.mxu0 0
            %2925 = vmatprep.subr.bf16.mxu0 0
            %2926 = vmatpush2.bf16.msra.mxu0 0
            %2927 = vmatprep.subr.bf16.mxu0 0
            %2928 = vmatpush2.bf16.msra.mxu0 0
            %2929 = vmatprep.subr.bf16.mxu0 0
            %2930 = vmatpush2.bf16.msra.mxu0 0
            %2931 = vmatprep.subr.bf16.mxu0 0
            %2932 = vmatpush2.bf16.msra.mxu0 0
            %2933 = vmatprep.mubr.bf16.mxu0 0
            %2934 = vmatmul.mubr.bf16.gmra.mxu0 %v2225
            %v2935 = vpop.f32.mrf.mxu0
            %v2936 = vadd.f32 0.0, %v2935
            %v2937 = vpop.f32.mrf.mxu0
            %v2938 = vpop.f32.mrf.mxu0
            %v2939 = vadd.f32 0.0, %v2938
            %v2940 = vpop.f32.mrf.mxu0
            %2941 = vmatprep.mubr.bf16.mxu0 0
            %2942 = vmatmul.mubr.bf16.gmra.mxu0 %v2226
            %v2943 = vpop.f32.mrf.mxu0
            %v2944 = vadd.f32 0.0, %v2943
            %v2945 = vpop.f32.mrf.mxu0
            %v2946 = vpop.f32.mrf.mxu0
            %v2947 = vadd.f32 0.0, %v2946
            %v2948 = vpop.f32.mrf.mxu0
            %2949 = vmatprep.mubr.bf16.mxu0 0
            %2950 = vmatmul.mubr.bf16.gmra.mxu0 %v2227
            %v2951 = vpop.f32.mrf.mxu0
            %v2952 = vadd.f32 0.0, %v2951
            %v2953 = vpop.f32.mrf.mxu0
            %v2954 = vpop.f32.mrf.mxu0
            %v2955 = vadd.f32 0.0, %v2954
            %v2956 = vpop.f32.mrf.mxu0
            %2957 = vmatprep.mubr.bf16.mxu0 0
            %2958 = vmatmul.mubr.bf16.gmra.mxu0 %v2228
            %v2959 = vpop.f32.mrf.mxu0
            %v2960 = vadd.f32 0.0, %v2959
            %v2961 = vpop.f32.mrf.mxu0
            %v2962 = vpop.f32.mrf.mxu0
            %v2963 = vadd.f32 0.0, %v2962
            %v2964 = vpop.f32.mrf.mxu0
            %2965 = vmatprep.mubr.bf16.mxu0 0
            %2966 = vmatmul.mubr.bf16.gmra.mxu0 %v2229
            %v2967 = vpop.f32.mrf.mxu0
            %v2968 = vadd.f32 0.0, %v2967
            %v2969 = vpop.f32.mrf.mxu0
            %v2970 = vpop.f32.mrf.mxu0
            %v2971 = vadd.f32 0.0, %v2970
            %v2972 = vpop.f32.mrf.mxu0
            %2973 = vmatprep.mubr.bf16.mxu0 0
            %2974 = vmatmul.mubr.bf16.gmra.mxu0 %v2230
            %v2975 = vpop.f32.mrf.mxu0
            %v2976 = vadd.f32 0.0, %v2975
            %v2977 = vpop.f32.mrf.mxu0
            %v2978 = vpop.f32.mrf.mxu0
            %v2979 = vadd.f32 0.0, %v2978
            %v2980 = vpop.f32.mrf.mxu0
            %2981 = vmatprep.mubr.bf16.mxu0 0
            %2982 = vmatmul.mubr.bf16.gmra.mxu0 %v2231
            %v2983 = vpop.f32.mrf.mxu0
            %v2984 = vadd.f32 0.0, %v2983
            %v2985 = vpop.f32.mrf.mxu0
            %v2986 = vpop.f32.mrf.mxu0
            %v2987 = vadd.f32 0.0, %v2986
            %v2988 = vpop.f32.mrf.mxu0
            %2989 = vmatprep.mubr.bf16.mxu0 0
            %2990 = vmatmul.mubr.bf16.gmra.mxu0 %v2232
            %v2991 = vpop.f32.mrf.mxu0
            %v2992 = vadd.f32 0.0, %v2991
            %v2993 = vpop.f32.mrf.mxu0
            %v2994 = vpop.f32.mrf.mxu0
            %v2995 = vadd.f32 0.0, %v2994
            %v2996 = vpop.f32.mrf.mxu0
            %2997 = vmatprep.mubr.bf16.mxu0 0
            %2998 = vmatmul.mubr.bf16.gmra.mxu0 %v2233
            %v2999 = vpop.f32.mrf.mxu0
            %v3000 = vadd.f32 0.0, %v2999
            %v3001 = vpop.f32.mrf.mxu0
            %v3002 = vpop.f32.mrf.mxu0
            %v3003 = vadd.f32 0.0, %v3002
            %v3004 = vpop.f32.mrf.mxu0
            %3005 = vmatprep.mubr.bf16.mxu0 0
            %3006 = vmatmul.mubr.bf16.gmra.mxu0 %v2234
            %v3007 = vpop.f32.mrf.mxu0
            %v3008 = vadd.f32 0.0, %v3007
            %v3009 = vpop.f32.mrf.mxu0
            %v3010 = vpop.f32.mrf.mxu0
            %v3011 = vadd.f32 0.0, %v3010
            %v3012 = vpop.f32.mrf.mxu0
            %3013 = vmatprep.mubr.bf16.mxu0 0
            %3014 = vmatmul.mubr.bf16.gmra.mxu0 %v2235
            %v3015 = vpop.f32.mrf.mxu0
            %v3016 = vadd.f32 0.0, %v3015
            %v3017 = vpop.f32.mrf.mxu0
            %v3018 = vpop.f32.mrf.mxu0
            %v3019 = vadd.f32 0.0, %v3018
            %v3020 = vpop.f32.mrf.mxu0
            %3021 = vmatprep.mubr.bf16.mxu0 0
            %3022 = vmatmul.mubr.bf16.gmra.mxu0 %v2236
            %v3023 = vpop.f32.mrf.mxu0
            %v3024 = vadd.f32 0.0, %v3023
            %v3025 = vpop.f32.mrf.mxu0
            %v3026 = vpop.f32.mrf.mxu0
            %v3027 = vadd.f32 0.0, %v3026
            %v3028 = vpop.f32.mrf.mxu0
            %3029 = vmatprep.mubr.bf16.mxu0 0
            %3030 = vmatmul.mubr.bf16.gmra.mxu0 %v2237
            %v3031 = vpop.f32.mrf.mxu0
            %v3032 = vadd.f32 0.0, %v3031
            %v3033 = vpop.f32.mrf.mxu0
            %v3034 = vpop.f32.mrf.mxu0
            %v3035 = vadd.f32 0.0, %v3034
            %v3036 = vpop.f32.mrf.mxu0
            %3037 = vmatprep.mubr.bf16.mxu0 0
            %3038 = vmatmul.mubr.bf16.gmra.mxu0 %v2238
            %v3039 = vpop.f32.mrf.mxu0
            %v3040 = vadd.f32 0.0, %v3039
            %v3041 = vpop.f32.mrf.mxu0
            %v3042 = vpop.f32.mrf.mxu0
            %v3043 = vadd.f32 0.0, %v3042
            %v3044 = vpop.f32.mrf.mxu0
            %3045 = vmatprep.mubr.bf16.mxu0 0
            %3046 = vmatmul.mubr.bf16.gmra.mxu0 %v2239
            %v3047 = vpop.f32.mrf.mxu0
            %v3048 = vadd.f32 0.0, %v3047
            %v3049 = vpop.f32.mrf.mxu0
            %v3050 = vpop.f32.mrf.mxu0
            %v3051 = vadd.f32 0.0, %v3050
            %v3052 = vpop.f32.mrf.mxu0
            %3053 = vmatprep.mubr.bf16.mxu0 0
            %3054 = vmatmul.mubr.bf16.gmra.mxu0 %v2240
            %v3055 = vpop.f32.mrf.mxu0
            %v3056 = vadd.f32 0.0, %v3055
            %v3057 = vpop.f32.mrf.mxu0
            %v3058 = vpop.f32.mrf.mxu0
            %v3059 = vadd.f32 0.0, %v3058
            %v3060 = vpop.f32.mrf.mxu0
            %3061 = vdwg.mxu0
            %v3094 = vunpack.c.l.b16 %v1825
            %v3095 = vunpack.c.l.b16 %v1826
            %v3096 = vunpack.c.l.b16 %v1827
            %v3097 = vunpack.c.l.b16 %v1828
            %v3098 = vunpack.c.l.b16 %v1829
            %v3099 = vunpack.c.l.b16 %v1830
            %v3100 = vunpack.c.l.b16 %v1831
            %v3101 = vunpack.c.l.b16 %v1832
            %v3102 = vunpack.c.l.b16 %v1833
            %v3103 = vunpack.c.l.b16 %v1834
            %v3104 = vunpack.c.l.b16 %v1835
            %v3105 = vunpack.c.l.b16 %v1836
            %v3106 = vunpack.c.l.b16 %v1837
            %v3107 = vunpack.c.l.b16 %v1838
            %v3108 = vunpack.c.l.b16 %v1839
            %v3109 = vunpack.c.l.b16 %v1840
            %v3110 = vunpack.c.l.b16 %v1841
            %v3111 = vunpack.c.l.b16 %v1842
            %v3112 = vunpack.c.l.b16 %v1843
            %v3113 = vunpack.c.l.b16 %v1844
            %v3114 = vunpack.c.l.b16 %v1845
            %v3115 = vunpack.c.l.b16 %v1846
            %v3116 = vunpack.c.l.b16 %v1847
            %v3117 = vunpack.c.l.b16 %v1848
            %v3118 = vunpack.c.l.b16 %v1849
            %v3119 = vunpack.c.l.b16 %v1850
            %v3120 = vunpack.c.l.b16 %v1851
            %v3121 = vunpack.c.l.b16 %v1852
            %v3122 = vunpack.c.l.b16 %v1853
            %v3123 = vunpack.c.l.b16 %v1854
            %v3124 = vunpack.c.l.b16 %v1855
            %v3125 = vunpack.c.l.b16 %v1856
            %v3126 = vpack.c.b16 %v3095, %v3094
            %v3127 = vpack.c.b16 %v3097, %v3096
            %v3128 = vpack.c.b16 %v3099, %v3098
            %v3129 = vpack.c.b16 %v3101, %v3100
            %v3130 = vpack.c.b16 %v3103, %v3102
            %v3131 = vpack.c.b16 %v3105, %v3104
            %v3132 = vpack.c.b16 %v3107, %v3106
            %v3133 = vpack.c.b16 %v3109, %v3108
            %v3134 = vpack.c.b16 %v3111, %v3110
            %v3135 = vpack.c.b16 %v3113, %v3112
            %v3136 = vpack.c.b16 %v3115, %v3114
            %v3137 = vpack.c.b16 %v3117, %v3116
            %v3138 = vpack.c.b16 %v3119, %v3118
            %v3139 = vpack.c.b16 %v3121, %v3120
            %v3140 = vpack.c.b16 %v3123, %v3122
            %v3141 = vpack.c.b16 %v3125, %v3124
            %v3174 = vunpack.c.l.b16 %v2820
            %v3175 = vunpack.c.l.b16 %v2821
            %v3176 = vunpack.c.l.b16 %v2822
            %v3177 = vunpack.c.l.b16 %v2823
            %v3178 = vunpack.c.l.b16 %v2824
            %v3179 = vunpack.c.l.b16 %v2825
            %v3180 = vunpack.c.l.b16 %v2826
            %v3181 = vunpack.c.l.b16 %v2827
            %v3182 = vunpack.c.l.b16 %v2828
            %v3183 = vunpack.c.l.b16 %v2829
            %v3184 = vunpack.c.l.b16 %v2830
            %v3185 = vunpack.c.l.b16 %v2831
            %v3186 = vunpack.c.l.b16 %v2832
            %v3187 = vunpack.c.l.b16 %v2833
            %v3188 = vunpack.c.l.b16 %v2834
            %v3189 = vunpack.c.l.b16 %v2835
            %v3190 = vpack.c.b16 %v3175, %v3174
            %v3191 = vpack.c.b16 %v3177, %v3176
            %v3192 = vpack.c.b16 %v3179, %v3178
            %v3193 = vpack.c.b16 %v3181, %v3180
            %v3194 = vpack.c.b16 %v3183, %v3182
            %v3195 = vpack.c.b16 %v3185, %v3184
            %v3196 = vpack.c.b16 %v3187, %v3186
            %v3197 = vpack.c.b16 %v3189, %v3188
            %3206 = vmatprep.subr.bf16.mxu0 0
            %3207 = vmatpush1.bf16.msra.mxu0 %v3197
            %3208 = vmatprep.subr.bf16.mxu0 0
            %3209 = vmatpush1.bf16.msra.mxu0 %v3196
            %3210 = vmatprep.subr.bf16.mxu0 0
            %3211 = vmatpush1.bf16.msra.mxu0 %v3195
            %3212 = vmatprep.subr.bf16.mxu0 0
            %3213 = vmatpush1.bf16.msra.mxu0 %v3194
            %3214 = vmatprep.subr.bf16.mxu0 0
            %3215 = vmatpush1.bf16.msra.mxu0 %v3193
            %3216 = vmatprep.subr.bf16.mxu0 0
            %3217 = vmatpush1.bf16.msra.mxu0 %v3192
            %3218 = vmatprep.subr.bf16.mxu0 0
            %3219 = vmatpush1.bf16.msra.mxu0 %v3191
            %3220 = vmatprep.subr.bf16.mxu0 0
            %3221 = vmatpush1.bf16.msra.mxu0 %v3190
            %3222 = vmatprep.subr.bf16.mxu0 0
            %3223 = vmatpush2.bf16.msra.mxu0 0
            %3224 = vmatprep.subr.bf16.mxu0 0
            %3225 = vmatpush2.bf16.msra.mxu0 0
            %3226 = vmatprep.subr.bf16.mxu0 0
            %3227 = vmatpush2.bf16.msra.mxu0 0
            %3228 = vmatprep.subr.bf16.mxu0 0
            %3229 = vmatpush2.bf16.msra.mxu0 0
            %3230 = vmatprep.subr.bf16.mxu0 0
            %3231 = vmatpush2.bf16.msra.mxu0 0
            %3232 = vmatprep.subr.bf16.mxu0 0
            %3233 = vmatpush2.bf16.msra.mxu0 0
            %3234 = vmatprep.subr.bf16.mxu0 0
            %3235 = vmatpush2.bf16.msra.mxu0 0
            %3236 = vmatprep.subr.bf16.mxu0 0
            %3237 = vmatpush2.bf16.msra.mxu0 0
            %3238 = vmatprep.mubr.bf16.mxu0 0
            %3239 = vmatmul.mubr.bf16.gmra.mxu0 %v3126
            %v3240 = vpop.f32.mrf.mxu0
            %v3241 = vadd.f32 %v2936, %v3240
            %v3242 = vpop.f32.mrf.mxu0
            %v3243 = vpop.f32.mrf.mxu0
            %v3244 = vadd.f32 %v2939, %v3243
            %v3245 = vpop.f32.mrf.mxu0
            %3246 = vmatprep.mubr.bf16.mxu0 0
            %3247 = vmatmul.mubr.bf16.gmra.mxu0 %v3127
            %v3248 = vpop.f32.mrf.mxu0
            %v3249 = vadd.f32 %v2944, %v3248
            %v3250 = vpop.f32.mrf.mxu0
            %v3251 = vpop.f32.mrf.mxu0
            %v3252 = vadd.f32 %v2947, %v3251
            %v3253 = vpop.f32.mrf.mxu0
            %3254 = vmatprep.mubr.bf16.mxu0 0
            %3255 = vmatmul.mubr.bf16.gmra.mxu0 %v3128
            %v3256 = vpop.f32.mrf.mxu0
            %v3257 = vadd.f32 %v2952, %v3256
            %v3258 = vpop.f32.mrf.mxu0
            %v3259 = vpop.f32.mrf.mxu0
            %v3260 = vadd.f32 %v2955, %v3259
            %v3261 = vpop.f32.mrf.mxu0
            %3262 = vmatprep.mubr.bf16.mxu0 0
            %3263 = vmatmul.mubr.bf16.gmra.mxu0 %v3129
            %v3264 = vpop.f32.mrf.mxu0
            %v3265 = vadd.f32 %v2960, %v3264
            %v3266 = vpop.f32.mrf.mxu0
            %v3267 = vpop.f32.mrf.mxu0
            %v3268 = vadd.f32 %v2963, %v3267
            %v3269 = vpop.f32.mrf.mxu0
            %3270 = vmatprep.mubr.bf16.mxu0 0
            %3271 = vmatmul.mubr.bf16.gmra.mxu0 %v3130
            %v3272 = vpop.f32.mrf.mxu0
            %v3273 = vadd.f32 %v2968, %v3272
            %v3274 = vpop.f32.mrf.mxu0
            %v3275 = vpop.f32.mrf.mxu0
            %v3276 = vadd.f32 %v2971, %v3275
            %v3277 = vpop.f32.mrf.mxu0
            %3278 = vmatprep.mubr.bf16.mxu0 0
            %3279 = vmatmul.mubr.bf16.gmra.mxu0 %v3131
            %v3280 = vpop.f32.mrf.mxu0
            %v3281 = vadd.f32 %v2976, %v3280
            %v3282 = vpop.f32.mrf.mxu0
            %v3283 = vpop.f32.mrf.mxu0
            %v3284 = vadd.f32 %v2979, %v3283
            %v3285 = vpop.f32.mrf.mxu0
            %3286 = vmatprep.mubr.bf16.mxu0 0
            %3287 = vmatmul.mubr.bf16.gmra.mxu0 %v3132
            %v3288 = vpop.f32.mrf.mxu0
            %v3289 = vadd.f32 %v2984, %v3288
            %v3290 = vpop.f32.mrf.mxu0
            %v3291 = vpop.f32.mrf.mxu0
            %v3292 = vadd.f32 %v2987, %v3291
            %v3293 = vpop.f32.mrf.mxu0
            %3294 = vmatprep.mubr.bf16.mxu0 0
            %3295 = vmatmul.mubr.bf16.gmra.mxu0 %v3133
            %v3296 = vpop.f32.mrf.mxu0
            %v3297 = vadd.f32 %v2992, %v3296
            %v3298 = vpop.f32.mrf.mxu0
            %v3299 = vpop.f32.mrf.mxu0
            %v3300 = vadd.f32 %v2995, %v3299
            %v3301 = vpop.f32.mrf.mxu0
            %3302 = vmatprep.mubr.bf16.mxu0 0
            %3303 = vmatmul.mubr.bf16.gmra.mxu0 %v3134
            %v3304 = vpop.f32.mrf.mxu0
            %v3305 = vadd.f32 %v3000, %v3304
            %v3306 = vpop.f32.mrf.mxu0
            %v3307 = vpop.f32.mrf.mxu0
            %v3308 = vadd.f32 %v3003, %v3307
            %v3309 = vpop.f32.mrf.mxu0
            %3310 = vmatprep.mubr.bf16.mxu0 0
            %3311 = vmatmul.mubr.bf16.gmra.mxu0 %v3135
            %v3312 = vpop.f32.mrf.mxu0
            %v3313 = vadd.f32 %v3008, %v3312
            %v3314 = vpop.f32.mrf.mxu0
            %v3315 = vpop.f32.mrf.mxu0
            %v3316 = vadd.f32 %v3011, %v3315
            %v3317 = vpop.f32.mrf.mxu0
            %3318 = vmatprep.mubr.bf16.mxu0 0
            %3319 = vmatmul.mubr.bf16.gmra.mxu0 %v3136
            %v3320 = vpop.f32.mrf.mxu0
            %v3321 = vadd.f32 %v3016, %v3320
            %v3322 = vpop.f32.mrf.mxu0
            %v3323 = vpop.f32.mrf.mxu0
            %v3324 = vadd.f32 %v3019, %v3323
            %v3325 = vpop.f32.mrf.mxu0
            %3326 = vmatprep.mubr.bf16.mxu0 0
            %3327 = vmatmul.mubr.bf16.gmra.mxu0 %v3137
            %v3328 = vpop.f32.mrf.mxu0
            %v3329 = vadd.f32 %v3024, %v3328
            %v3330 = vpop.f32.mrf.mxu0
            %v3331 = vpop.f32.mrf.mxu0
            %v3332 = vadd.f32 %v3027, %v3331
            %v3333 = vpop.f32.mrf.mxu0
            %3334 = vmatprep.mubr.bf16.mxu0 0
            %3335 = vmatmul.mubr.bf16.gmra.mxu0 %v3138
            %v3336 = vpop.f32.mrf.mxu0
            %v3337 = vadd.f32 %v3032, %v3336
            %v3338 = vpop.f32.mrf.mxu0
            %v3339 = vpop.f32.mrf.mxu0
            %v3340 = vadd.f32 %v3035, %v3339
            %v3341 = vpop.f32.mrf.mxu0
            %3342 = vmatprep.mubr.bf16.mxu0 0
            %3343 = vmatmul.mubr.bf16.gmra.mxu0 %v3139
            %v3344 = vpop.f32.mrf.mxu0
            %v3345 = vadd.f32 %v3040, %v3344
            %v3346 = vpop.f32.mrf.mxu0
            %v3347 = vpop.f32.mrf.mxu0
            %v3348 = vadd.f32 %v3043, %v3347
            %v3349 = vpop.f32.mrf.mxu0
            %3350 = vmatprep.mubr.bf16.mxu0 0
            %3351 = vmatmul.mubr.bf16.gmra.mxu0 %v3140
            %v3352 = vpop.f32.mrf.mxu0
            %v3353 = vadd.f32 %v3048, %v3352
            %v3354 = vpop.f32.mrf.mxu0
            %v3355 = vpop.f32.mrf.mxu0
            %v3356 = vadd.f32 %v3051, %v3355
            %v3357 = vpop.f32.mrf.mxu0
            %3358 = vmatprep.mubr.bf16.mxu0 0
            %3359 = vmatmul.mubr.bf16.gmra.mxu0 %v3141
            %v3360 = vpop.f32.mrf.mxu0
            %v3361 = vadd.f32 %v3056, %v3360
            %v3362 = vpop.f32.mrf.mxu0
            %v3363 = vpop.f32.mrf.mxu0
            %v3364 = vadd.f32 %v3059, %v3363
            %v3365 = vpop.f32.mrf.mxu0
            %3366 = vdwg.mxu0
            %v3367 = vpack.c.bf16 %v3244, %v3241
            %v3368 = vpack.c.bf16 %v3252, %v3249
            %v3369 = vpack.c.bf16 %v3260, %v3257
            %v3370 = vpack.c.bf16 %v3268, %v3265
            %v3371 = vpack.c.bf16 %v3276, %v3273
            %v3372 = vpack.c.bf16 %v3284, %v3281
            %v3373 = vpack.c.bf16 %v3292, %v3289
            %v3374 = vpack.c.bf16 %v3300, %v3297
            %v3375 = vpack.c.bf16 %v3308, %v3305
            %v3376 = vpack.c.bf16 %v3316, %v3313
            %v3377 = vpack.c.bf16 %v3324, %v3321
            %v3378 = vpack.c.bf16 %v3332, %v3329
            %v3379 = vpack.c.bf16 %v3340, %v3337
            %v3380 = vpack.c.bf16 %v3348, %v3345
            %v3381 = vpack.c.bf16 %v3356, %v3353
            %v3382 = vpack.c.bf16 %v3364, %v3361
            %v3399 = vunpack.c.l.b16 %v3367
            %v3400 = vunpack.c.h.b16 %v3367
            %v3401 = vunpack.c.l.b16 %v3368
            %v3402 = vunpack.c.h.b16 %v3368
            %v3403 = vunpack.c.l.b16 %v3369
            %v3404 = vunpack.c.h.b16 %v3369
            %v3405 = vunpack.c.l.b16 %v3370
            %v3406 = vunpack.c.h.b16 %v3370
            %v3407 = vunpack.c.l.b16 %v3371
            %v3408 = vunpack.c.h.b16 %v3371
            %v3409 = vunpack.c.l.b16 %v3372
            %v3410 = vunpack.c.h.b16 %v3372
            %v3411 = vunpack.c.l.b16 %v3373
            %v3412 = vunpack.c.h.b16 %v3373
            %v3413 = vunpack.c.l.b16 %v3374
            %v3414 = vunpack.c.h.b16 %v3374
            %v3415 = vunpack.c.l.b16 %v3375
            %v3416 = vunpack.c.h.b16 %v3375
            %v3417 = vunpack.c.l.b16 %v3376
            %v3418 = vunpack.c.h.b16 %v3376
            %v3419 = vunpack.c.l.b16 %v3377
            %v3420 = vunpack.c.h.b16 %v3377
            %v3421 = vunpack.c.l.b16 %v3378
            %v3422 = vunpack.c.h.b16 %v3378
            %v3423 = vunpack.c.l.b16 %v3379
            %v3424 = vunpack.c.h.b16 %v3379
            %v3425 = vunpack.c.l.b16 %v3380
            %v3426 = vunpack.c.h.b16 %v3380
            %v3427 = vunpack.c.l.b16 %v3381
            %v3428 = vunpack.c.h.b16 %v3381
            %v3429 = vunpack.c.l.b16 %v3382
            %v3430 = vunpack.c.h.b16 %v3382
            %v3431 = vpack.c.b16 %v3399, %v3399
            %v3432 = vpack.c.b16 %v3400, %v3400
            %v3433 = vpack.c.b16 %v3401, %v3401
            %v3434 = vpack.c.b16 %v3402, %v3402
            %v3435 = vpack.c.b16 %v3403, %v3403
            %v3436 = vpack.c.b16 %v3404, %v3404
            %v3437 = vpack.c.b16 %v3405, %v3405
            %v3438 = vpack.c.b16 %v3406, %v3406
            %v3439 = vpack.c.b16 %v3407, %v3407
            %v3440 = vpack.c.b16 %v3408, %v3408
            %v3441 = vpack.c.b16 %v3409, %v3409
            %v3442 = vpack.c.b16 %v3410, %v3410
            %v3443 = vpack.c.b16 %v3411, %v3411
            %v3444 = vpack.c.b16 %v3412, %v3412
            %v3445 = vpack.c.b16 %v3413, %v3413
            %v3446 = vpack.c.b16 %v3414, %v3414
            %v3447 = vpack.c.b16 %v3415, %v3415
            %v3448 = vpack.c.b16 %v3416, %v3416
            %v3449 = vpack.c.b16 %v3417, %v3417
            %v3450 = vpack.c.b16 %v3418, %v3418
            %v3451 = vpack.c.b16 %v3419, %v3419
            %v3452 = vpack.c.b16 %v3420, %v3420
            %v3453 = vpack.c.b16 %v3421, %v3421
            %v3454 = vpack.c.b16 %v3422, %v3422
            %v3455 = vpack.c.b16 %v3423, %v3423
            %v3456 = vpack.c.b16 %v3424, %v3424
            %v3457 = vpack.c.b16 %v3425, %v3425
            %v3458 = vpack.c.b16 %v3426, %v3426
            %v3459 = vpack.c.b16 %v3427, %v3427
            %v3460 = vpack.c.b16 %v3428, %v3428
            %v3461 = vpack.c.b16 %v3429, %v3429
            %v3462 = vpack.c.b16 %v3430, %v3430
            %s3495 = sshra.s32 %s380, 3
            %s3496 = sand.u32 %s380, 7
            %s3497 = smul.addr %s3495, 4
            %s3498 = scalar_lea.vmem [#allocation2], %s3497
            %3499 = vst [vmem:[%s3498] sm:$0xf] %v3431
            %3500 = vst [vmem:[%s3498 + $0x4] sm:$0xf] %v3432
            %3501 = vst [vmem:[%s3498 + $0x8] sm:$0xf] %v3433
            %3502 = vst [vmem:[%s3498 + $0xc] sm:$0xf] %v3434
            %3503 = vst [vmem:[%s3498 + $0x10] sm:$0xf] %v3435
            %3504 = vst [vmem:[%s3498 + $0x14] sm:$0xf] %v3436
            %3505 = vst [vmem:[%s3498 + $0x18] sm:$0xf] %v3437
            %3506 = vst [vmem:[%s3498 + $0x1c] sm:$0xf] %v3438
            %3507 = vst [vmem:[%s3498 + $0x20] sm:$0xf] %v3439
            %3508 = vst [vmem:[%s3498 + $0x24] sm:$0xf] %v3440
            %3509 = vst [vmem:[%s3498 + $0x28] sm:$0xf] %v3441
            %3510 = vst [vmem:[%s3498 + $0x2c] sm:$0xf] %v3442
            %3511 = vst [vmem:[%s3498 + $0x30] sm:$0xf] %v3443
            %3512 = vst [vmem:[%s3498 + $0x34] sm:$0xf] %v3444
            %3513 = vst [vmem:[%s3498 + $0x38] sm:$0xf] %v3445
            %3514 = vst [vmem:[%s3498 + $0x3c] sm:$0xf] %v3446
            %3515 = vst [vmem:[%s3498 + $0x40] sm:$0xf] %v3447
            %3516 = vst [vmem:[%s3498 + $0x44] sm:$0xf] %v3448
            %3517 = vst [vmem:[%s3498 + $0x48] sm:$0xf] %v3449
            %3518 = vst [vmem:[%s3498 + $0x4c] sm:$0xf] %v3450
            %3519 = vst [vmem:[%s3498 + $0x50] sm:$0xf] %v3451
            %3520 = vst [vmem:[%s3498 + $0x54] sm:$0xf] %v3452
            %3521 = vst [vmem:[%s3498 + $0x58] sm:$0xf] %v3453
            %3522 = vst [vmem:[%s3498 + $0x5c] sm:$0xf] %v3454
            %3523 = vst [vmem:[%s3498 + $0x60] sm:$0xf] %v3455
            %3524 = vst [vmem:[%s3498 + $0x64] sm:$0xf] %v3456
            %3525 = vst [vmem:[%s3498 + $0x68] sm:$0xf] %v3457
            %3526 = vst [vmem:[%s3498 + $0x6c] sm:$0xf] %v3458
            %3527 = vst [vmem:[%s3498 + $0x70] sm:$0xf] %v3459
            %3528 = vst [vmem:[%s3498 + $0x74] sm:$0xf] %v3460
            %3529 = vst [vmem:[%s3498 + $0x78] sm:$0xf] %v3461
            %3530 = vst [vmem:[%s3498 + $0x7c] sm:$0xf] %v3462
          $region84: #{residual_gc_forward.1} parent=75 // pred_fallthru
            _
        $region76: #{residual_gc_forward.1} parent=71 // pred_fallthru
          _
        %p3531 = scmp.eq.s32.totalorder %s26, 3
        // Predicated region
        $region85: #{residual_gc_forward.1} parent=71 // pred_check
          %p3532 = pneg %p3531
        $region86: #{residual_gc_forward.1} parent=71 // pred_check_branch
          %3534 = sbr.rel (%p3532) target = $region88
        $region87: #{residual_gc_forward.1} parent=71 // pred_region
          %s3535 = scalar_lea.vmem %s3, %s374
          %v3536 = vld [vmem:[%s3535] sm:$0xff]
          %v3537 = vld [vmem:[%s3535 + $0x8] sm:$0xff]
          %v3538 = vld [vmem:[%s3535 + $0x10] sm:$0xff]
          %v3539 = vld [vmem:[%s3535 + $0x18] sm:$0xff]
          %v3540 = vld [vmem:[%s3535 + $0x20] sm:$0xff]
          %v3541 = vld [vmem:[%s3535 + $0x28] sm:$0xff]
          %v3542 = vld [vmem:[%s3535 + $0x30] sm:$0xff]
          %v3543 = vld [vmem:[%s3535 + $0x38] sm:$0xff]
          %v3544 = vld [vmem:[%s3535 + $0x40] sm:$0xff]
          %v3545 = vld [vmem:[%s3535 + $0x48] sm:$0xff]
          %v3546 = vld [vmem:[%s3535 + $0x50] sm:$0xff]
          %v3547 = vld [vmem:[%s3535 + $0x58] sm:$0xff]
          %v3548 = vld [vmem:[%s3535 + $0x60] sm:$0xff]
          %v3549 = vld [vmem:[%s3535 + $0x68] sm:$0xff]
          %v3550 = vld [vmem:[%s3535 + $0x70] sm:$0xff]
          %v3551 = vld [vmem:[%s3535 + $0x78] sm:$0xff]
          %v3552 = vld [vmem:[%s3535 + $0x80] sm:$0xff]
          %v3553 = vld [vmem:[%s3535 + $0x88] sm:$0xff]
          %v3554 = vld [vmem:[%s3535 + $0x90] sm:$0xff]
          %v3555 = vld [vmem:[%s3535 + $0x98] sm:$0xff]
          %v3556 = vld [vmem:[%s3535 + $0xa0] sm:$0xff]
          %v3557 = vld [vmem:[%s3535 + $0xa8] sm:$0xff]
          %v3558 = vld [vmem:[%s3535 + $0xb0] sm:$0xff]
          %v3559 = vld [vmem:[%s3535 + $0xb8] sm:$0xff]
          %v3560 = vld [vmem:[%s3535 + $0xc0] sm:$0xff]
          %v3561 = vld [vmem:[%s3535 + $0xc8] sm:$0xff]
          %v3562 = vld [vmem:[%s3535 + $0xd0] sm:$0xff]
          %v3563 = vld [vmem:[%s3535 + $0xd8] sm:$0xff]
          %v3564 = vld [vmem:[%s3535 + $0xe0] sm:$0xff]
          %v3565 = vld [vmem:[%s3535 + $0xe8] sm:$0xff]
          %v3566 = vld [vmem:[%s3535 + $0xf0] sm:$0xff]
          %v3567 = vld [vmem:[%s3535 + $0xf8] sm:$0xff]
          %s3568 = scalar_lea.vmem %s6, 128
          %v3569 = vld [vmem:[%s3568] sm:$0xf]
          %v3570 = vld [vmem:[%s3568 + $0x4] sm:$0xf]
          %v3571 = vld [vmem:[%s3568 + $0x8] sm:$0xf]
          %v3572 = vld [vmem:[%s3568 + $0xc] sm:$0xf]
          %v3573 = vld [vmem:[%s3568 + $0x10] sm:$0xf]
          %v3574 = vld [vmem:[%s3568 + $0x14] sm:$0xf]
          %v3575 = vld [vmem:[%s3568 + $0x18] sm:$0xf]
          %v3576 = vld [vmem:[%s3568 + $0x1c] sm:$0xf]
          %v3577 = vld [vmem:[%s3568 + $0x20] sm:$0xf]
          %v3578 = vld [vmem:[%s3568 + $0x24] sm:$0xf]
          %v3579 = vld [vmem:[%s3568 + $0x28] sm:$0xf]
          %v3580 = vld [vmem:[%s3568 + $0x2c] sm:$0xf]
          %v3581 = vld [vmem:[%s3568 + $0x30] sm:$0xf]
          %v3582 = vld [vmem:[%s3568 + $0x34] sm:$0xf]
          %v3583 = vld [vmem:[%s3568 + $0x38] sm:$0xf]
          %v3584 = vld [vmem:[%s3568 + $0x3c] sm:$0xf]
          %s3585 = smul.addr %s1169, 4
          %s3586 = scalar_lea.vmem [#allocation3], %s3585
          %v3587 = vld [vmem:[%s3586] sm:$0xf]
          %v3588 = vld [vmem:[%s3586 + $0x4] sm:$0xf]
          %v3589 = vld [vmem:[%s3586 + $0x8] sm:$0xf]
          %v3590 = vld [vmem:[%s3586 + $0xc] sm:$0xf]
          %v3591 = vld [vmem:[%s3586 + $0x10] sm:$0xf]
          %v3592 = vld [vmem:[%s3586 + $0x14] sm:$0xf]
          %v3593 = vld [vmem:[%s3586 + $0x18] sm:$0xf]
          %v3594 = vld [vmem:[%s3586 + $0x1c] sm:$0xf]
          %v3595 = vld [vmem:[%s3586 + $0x20] sm:$0xf]
          %v3596 = vld [vmem:[%s3586 + $0x24] sm:$0xf]
          %v3597 = vld [vmem:[%s3586 + $0x28] sm:$0xf]
          %v3598 = vld [vmem:[%s3586 + $0x2c] sm:$0xf]
          %v3599 = vld [vmem:[%s3586 + $0x30] sm:$0xf]
          %v3600 = vld [vmem:[%s3586 + $0x34] sm:$0xf]
          %v3601 = vld [vmem:[%s3586 + $0x38] sm:$0xf]
          %v3602 = vld [vmem:[%s3586 + $0x3c] sm:$0xf]
          %v3603 = vld [vmem:[%s3586 + $0x40] sm:$0xf]
          %v3604 = vld [vmem:[%s3586 + $0x44] sm:$0xf]
          %v3605 = vld [vmem:[%s3586 + $0x48] sm:$0xf]
          %v3606 = vld [vmem:[%s3586 + $0x4c] sm:$0xf]
          %v3607 = vld [vmem:[%s3586 + $0x50] sm:$0xf]
          %v3608 = vld [vmem:[%s3586 + $0x54] sm:$0xf]
          %v3609 = vld [vmem:[%s3586 + $0x58] sm:$0xf]
          %v3610 = vld [vmem:[%s3586 + $0x5c] sm:$0xf]
          %v3611 = vld [vmem:[%s3586 + $0x60] sm:$0xf]
          %v3612 = vld [vmem:[%s3586 + $0x64] sm:$0xf]
          %v3613 = vld [vmem:[%s3586 + $0x68] sm:$0xf]
          %v3614 = vld [vmem:[%s3586 + $0x6c] sm:$0xf]
          %v3615 = vld [vmem:[%s3586 + $0x70] sm:$0xf]
          %v3616 = vld [vmem:[%s3586 + $0x74] sm:$0xf]
          %v3617 = vld [vmem:[%s3586 + $0x78] sm:$0xf]
          %v3618 = vld [vmem:[%s3586 + $0x7c] sm:$0xf]
          %s3619 = scalar_lea.vmem %s6, 192
          %v3620 = vld [vmem:[%s3619] sm:$0xf]
          %v3621 = vld [vmem:[%s3619 + $0x4] sm:$0xf]
          %v3622 = vld [vmem:[%s3619 + $0x8] sm:$0xf]
          %v3623 = vld [vmem:[%s3619 + $0xc] sm:$0xf]
          %v3624 = vld [vmem:[%s3619 + $0x10] sm:$0xf]
          %v3625 = vld [vmem:[%s3619 + $0x14] sm:$0xf]
          %v3626 = vld [vmem:[%s3619 + $0x18] sm:$0xf]
          %v3627 = vld [vmem:[%s3619 + $0x1c] sm:$0xf]
          %v3628 = vld [vmem:[%s3619 + $0x20] sm:$0xf]
          %v3629 = vld [vmem:[%s3619 + $0x24] sm:$0xf]
          %v3630 = vld [vmem:[%s3619 + $0x28] sm:$0xf]
          %v3631 = vld [vmem:[%s3619 + $0x2c] sm:$0xf]
          %v3632 = vld [vmem:[%s3619 + $0x30] sm:$0xf]
          %v3633 = vld [vmem:[%s3619 + $0x34] sm:$0xf]
          %v3634 = vld [vmem:[%s3619 + $0x38] sm:$0xf]
          %v3635 = vld [vmem:[%s3619 + $0x3c] sm:$0xf]
          %v3668 = vunpack.c.l.b16 %v3587
          %v3669 = vunpack.c.l.b16 %v3588
          %v3670 = vunpack.c.l.b16 %v3589
          %v3671 = vunpack.c.l.b16 %v3590
          %v3672 = vunpack.c.l.b16 %v3591
          %v3673 = vunpack.c.l.b16 %v3592
          %v3674 = vunpack.c.l.b16 %v3593
          %v3675 = vunpack.c.l.b16 %v3594
          %v3676 = vunpack.c.l.b16 %v3595
          %v3677 = vunpack.c.l.b16 %v3596
          %v3678 = vunpack.c.l.b16 %v3597
          %v3679 = vunpack.c.l.b16 %v3598
          %v3680 = vunpack.c.l.b16 %v3599
          %v3681 = vunpack.c.l.b16 %v3600
          %v3682 = vunpack.c.l.b16 %v3601
          %v3683 = vunpack.c.l.b16 %v3602
          %v3684 = vunpack.c.l.b16 %v3603
          %v3685 = vunpack.c.l.b16 %v3604
          %v3686 = vunpack.c.l.b16 %v3605
          %v3687 = vunpack.c.l.b16 %v3606
          %v3688 = vunpack.c.l.b16 %v3607
          %v3689 = vunpack.c.l.b16 %v3608
          %v3690 = vunpack.c.l.b16 %v3609
          %v3691 = vunpack.c.l.b16 %v3610
          %v3692 = vunpack.c.l.b16 %v3611
          %v3693 = vunpack.c.l.b16 %v3612
          %v3694 = vunpack.c.l.b16 %v3613
          %v3695 = vunpack.c.l.b16 %v3614
          %v3696 = vunpack.c.l.b16 %v3615
          %v3697 = vunpack.c.l.b16 %v3616
          %v3698 = vunpack.c.l.b16 %v3617
          %v3699 = vunpack.c.l.b16 %v3618
          %v3700 = vpack.c.b16 %v3669, %v3668
          %v3701 = vpack.c.b16 %v3671, %v3670
          %v3702 = vpack.c.b16 %v3673, %v3672
          %v3703 = vpack.c.b16 %v3675, %v3674
          %v3704 = vpack.c.b16 %v3677, %v3676
          %v3705 = vpack.c.b16 %v3679, %v3678
          %v3706 = vpack.c.b16 %v3681, %v3680
          %v3707 = vpack.c.b16 %v3683, %v3682
          %v3708 = vpack.c.b16 %v3685, %v3684
          %v3709 = vpack.c.b16 %v3687, %v3686
          %v3710 = vpack.c.b16 %v3689, %v3688
          %v3711 = vpack.c.b16 %v3691, %v3690
          %v3712 = vpack.c.b16 %v3693, %v3692
          %v3713 = vpack.c.b16 %v3695, %v3694
          %v3714 = vpack.c.b16 %v3697, %v3696
          %v3715 = vpack.c.b16 %v3699, %v3698
          %v3748 = vunpack.c.l.b16 %v3620
          %v3749 = vunpack.c.l.b16 %v3621
          %v3750 = vunpack.c.l.b16 %v3622
          %v3751 = vunpack.c.l.b16 %v3623
          %v3752 = vunpack.c.l.b16 %v3624
          %v3753 = vunpack.c.l.b16 %v3625
          %v3754 = vunpack.c.l.b16 %v3626
          %v3755 = vunpack.c.l.b16 %v3627
          %v3756 = vunpack.c.l.b16 %v3628
          %v3757 = vunpack.c.l.b16 %v3629
          %v3758 = vunpack.c.l.b16 %v3630
          %v3759 = vunpack.c.l.b16 %v3631
          %v3760 = vunpack.c.l.b16 %v3632
          %v3761 = vunpack.c.l.b16 %v3633
          %v3762 = vunpack.c.l.b16 %v3634
          %v3763 = vunpack.c.l.b16 %v3635
          %v3764 = vpack.c.b16 %v3749, %v3748
          %v3765 = vpack.c.b16 %v3751, %v3750
          %v3766 = vpack.c.b16 %v3753, %v3752
          %v3767 = vpack.c.b16 %v3755, %v3754
          %v3768 = vpack.c.b16 %v3757, %v3756
          %v3769 = vpack.c.b16 %v3759, %v3758
          %v3770 = vpack.c.b16 %v3761, %v3760
          %v3771 = vpack.c.b16 %v3763, %v3762
          %3780 = vmatprep.subr.bf16.mxu0 0
          %3781 = vmatpush1.bf16.msra.mxu0 %v3771
          %3782 = vmatprep.subr.bf16.mxu0 0
          %3783 = vmatpush1.bf16.msra.mxu0 %v3770
          %3784 = vmatprep.subr.bf16.mxu0 0
          %3785 = vmatpush1.bf16.msra.mxu0 %v3769
          %3786 = vmatprep.subr.bf16.mxu0 0
          %3787 = vmatpush1.bf16.msra.mxu0 %v3768
          %3788 = vmatprep.subr.bf16.mxu0 0
          %3789 = vmatpush1.bf16.msra.mxu0 %v3767
          %3790 = vmatprep.subr.bf16.mxu0 0
          %3791 = vmatpush1.bf16.msra.mxu0 %v3766
          %3792 = vmatprep.subr.bf16.mxu0 0
          %3793 = vmatpush1.bf16.msra.mxu0 %v3765
          %3794 = vmatprep.subr.bf16.mxu0 0
          %3795 = vmatpush1.bf16.msra.mxu0 %v3764
          %3796 = vmatprep.subr.bf16.mxu0 0
          %3797 = vmatpush2.bf16.msra.mxu0 0
          %3798 = vmatprep.subr.bf16.mxu0 0
          %3799 = vmatpush2.bf16.msra.mxu0 0
          %3800 = vmatprep.subr.bf16.mxu0 0
          %3801 = vmatpush2.bf16.msra.mxu0 0
          %3802 = vmatprep.subr.bf16.mxu0 0
          %3803 = vmatpush2.bf16.msra.mxu0 0
          %3804 = vmatprep.subr.bf16.mxu0 0
          %3805 = vmatpush2.bf16.msra.mxu0 0
          %3806 = vmatprep.subr.bf16.mxu0 0
          %3807 = vmatpush2.bf16.msra.mxu0 0
          %3808 = vmatprep.subr.bf16.mxu0 0
          %3809 = vmatpush2.bf16.msra.mxu0 0
          %3810 = vmatprep.subr.bf16.mxu0 0
          %3811 = vmatpush2.bf16.msra.mxu0 0
          %3812 = vmatprep.mubr.bf16.mxu0 0
          %3813 = vmatmul.mubr.bf16.gmra.mxu0 %v3700
          %v3814 = vpop.f32.mrf.mxu0
          %v3815 = vadd.f32 0.0, %v3814
          %v3816 = vpop.f32.mrf.mxu0
          %v3817 = vpop.f32.mrf.mxu0
          %v3818 = vadd.f32 0.0, %v3817
          %v3819 = vpop.f32.mrf.mxu0
          %3820 = vmatprep.mubr.bf16.mxu0 0
          %3821 = vmatmul.mubr.bf16.gmra.mxu0 %v3701
          %v3822 = vpop.f32.mrf.mxu0
          %v3823 = vadd.f32 0.0, %v3822
          %v3824 = vpop.f32.mrf.mxu0
          %v3825 = vpop.f32.mrf.mxu0
          %v3826 = vadd.f32 0.0, %v3825
          %v3827 = vpop.f32.mrf.mxu0
          %3828 = vmatprep.mubr.bf16.mxu0 0
          %3829 = vmatmul.mubr.bf16.gmra.mxu0 %v3702
          %v3830 = vpop.f32.mrf.mxu0
          %v3831 = vadd.f32 0.0, %v3830
          %v3832 = vpop.f32.mrf.mxu0
          %v3833 = vpop.f32.mrf.mxu0
          %v3834 = vadd.f32 0.0, %v3833
          %v3835 = vpop.f32.mrf.mxu0
          %3836 = vmatprep.mubr.bf16.mxu0 0
          %3837 = vmatmul.mubr.bf16.gmra.mxu0 %v3703
          %v3838 = vpop.f32.mrf.mxu0
          %v3839 = vadd.f32 0.0, %v3838
          %v3840 = vpop.f32.mrf.mxu0
          %v3841 = vpop.f32.mrf.mxu0
          %v3842 = vadd.f32 0.0, %v3841
          %v3843 = vpop.f32.mrf.mxu0
          %3844 = vmatprep.mubr.bf16.mxu0 0
          %3845 = vmatmul.mubr.bf16.gmra.mxu0 %v3704
          %v3846 = vpop.f32.mrf.mxu0
          %v3847 = vadd.f32 0.0, %v3846
          %v3848 = vpop.f32.mrf.mxu0
          %v3849 = vpop.f32.mrf.mxu0
          %v3850 = vadd.f32 0.0, %v3849
          %v3851 = vpop.f32.mrf.mxu0
          %3852 = vmatprep.mubr.bf16.mxu0 0
          %3853 = vmatmul.mubr.bf16.gmra.mxu0 %v3705
          %v3854 = vpop.f32.mrf.mxu0
          %v3855 = vadd.f32 0.0, %v3854
          %v3856 = vpop.f32.mrf.mxu0
          %v3857 = vpop.f32.mrf.mxu0
          %v3858 = vadd.f32 0.0, %v3857
          %v3859 = vpop.f32.mrf.mxu0
          %3860 = vmatprep.mubr.bf16.mxu0 0
          %3861 = vmatmul.mubr.bf16.gmra.mxu0 %v3706
          %v3862 = vpop.f32.mrf.mxu0
          %v3863 = vadd.f32 0.0, %v3862
          %v3864 = vpop.f32.mrf.mxu0
          %v3865 = vpop.f32.mrf.mxu0
          %v3866 = vadd.f32 0.0, %v3865
          %v3867 = vpop.f32.mrf.mxu0
          %3868 = vmatprep.mubr.bf16.mxu0 0
          %3869 = vmatmul.mubr.bf16.gmra.mxu0 %v3707
          %v3870 = vpop.f32.mrf.mxu0
          %v3871 = vadd.f32 0.0, %v3870
          %v3872 = vpop.f32.mrf.mxu0
          %v3873 = vpop.f32.mrf.mxu0
          %v3874 = vadd.f32 0.0, %v3873
          %v3875 = vpop.f32.mrf.mxu0
          %3876 = vmatprep.mubr.bf16.mxu0 0
          %3877 = vmatmul.mubr.bf16.gmra.mxu0 %v3708
          %v3878 = vpop.f32.mrf.mxu0
          %v3879 = vadd.f32 0.0, %v3878
          %v3880 = vpop.f32.mrf.mxu0
          %v3881 = vpop.f32.mrf.mxu0
          %v3882 = vadd.f32 0.0, %v3881
          %v3883 = vpop.f32.mrf.mxu0
          %3884 = vmatprep.mubr.bf16.mxu0 0
          %3885 = vmatmul.mubr.bf16.gmra.mxu0 %v3709
          %v3886 = vpop.f32.mrf.mxu0
          %v3887 = vadd.f32 0.0, %v3886
          %v3888 = vpop.f32.mrf.mxu0
          %v3889 = vpop.f32.mrf.mxu0
          %v3890 = vadd.f32 0.0, %v3889
          %v3891 = vpop.f32.mrf.mxu0
          %3892 = vmatprep.mubr.bf16.mxu0 0
          %3893 = vmatmul.mubr.bf16.gmra.mxu0 %v3710
          %v3894 = vpop.f32.mrf.mxu0
          %v3895 = vadd.f32 0.0, %v3894
          %v3896 = vpop.f32.mrf.mxu0
          %v3897 = vpop.f32.mrf.mxu0
          %v3898 = vadd.f32 0.0, %v3897
          %v3899 = vpop.f32.mrf.mxu0
          %3900 = vmatprep.mubr.bf16.mxu0 0
          %3901 = vmatmul.mubr.bf16.gmra.mxu0 %v3711
          %v3902 = vpop.f32.mrf.mxu0
          %v3903 = vadd.f32 0.0, %v3902
          %v3904 = vpop.f32.mrf.mxu0
          %v3905 = vpop.f32.mrf.mxu0
          %v3906 = vadd.f32 0.0, %v3905
          %v3907 = vpop.f32.mrf.mxu0
          %3908 = vmatprep.mubr.bf16.mxu0 0
          %3909 = vmatmul.mubr.bf16.gmra.mxu0 %v3712
          %v3910 = vpop.f32.mrf.mxu0
          %v3911 = vadd.f32 0.0, %v3910
          %v3912 = vpop.f32.mrf.mxu0
          %v3913 = vpop.f32.mrf.mxu0
          %v3914 = vadd.f32 0.0, %v3913
          %v3915 = vpop.f32.mrf.mxu0
          %3916 = vmatprep.mubr.bf16.mxu0 0
          %3917 = vmatmul.mubr.bf16.gmra.mxu0 %v3713
          %v3918 = vpop.f32.mrf.mxu0
          %v3919 = vadd.f32 0.0, %v3918
          %v3920 = vpop.f32.mrf.mxu0
          %v3921 = vpop.f32.mrf.mxu0
          %v3922 = vadd.f32 0.0, %v3921
          %v3923 = vpop.f32.mrf.mxu0
          %3924 = vmatprep.mubr.bf16.mxu0 0
          %3925 = vmatmul.mubr.bf16.gmra.mxu0 %v3714
          %v3926 = vpop.f32.mrf.mxu0
          %v3927 = vadd.f32 0.0, %v3926
          %v3928 = vpop.f32.mrf.mxu0
          %v3929 = vpop.f32.mrf.mxu0
          %v3930 = vadd.f32 0.0, %v3929
          %v3931 = vpop.f32.mrf.mxu0
          %3932 = vmatprep.mubr.bf16.mxu0 0
          %3933 = vmatmul.mubr.bf16.gmra.mxu0 %v3715
          %v3934 = vpop.f32.mrf.mxu0
          %v3935 = vadd.f32 0.0, %v3934
          %v3936 = vpop.f32.mrf.mxu0
          %v3937 = vpop.f32.mrf.mxu0
          %v3938 = vadd.f32 0.0, %v3937
          %v3939 = vpop.f32.mrf.mxu0
          %3940 = vdwg.mxu0
          %v3973 = vunpack.c.l.b16 %v1825
          %v3974 = vunpack.c.l.b16 %v1826
          %v3975 = vunpack.c.l.b16 %v1827
          %v3976 = vunpack.c.l.b16 %v1828
          %v3977 = vunpack.c.l.b16 %v1829
          %v3978 = vunpack.c.l.b16 %v1830
          %v3979 = vunpack.c.l.b16 %v1831
          %v3980 = vunpack.c.l.b16 %v1832
          %v3981 = vunpack.c.l.b16 %v1833
          %v3982 = vunpack.c.l.b16 %v1834
          %v3983 = vunpack.c.l.b16 %v1835
          %v3984 = vunpack.c.l.b16 %v1836
          %v3985 = vunpack.c.l.b16 %v1837
          %v3986 = vunpack.c.l.b16 %v1838
          %v3987 = vunpack.c.l.b16 %v1839
          %v3988 = vunpack.c.l.b16 %v1840
          %v3989 = vunpack.c.l.b16 %v1841
          %v3990 = vunpack.c.l.b16 %v1842
          %v3991 = vunpack.c.l.b16 %v1843
          %v3992 = vunpack.c.l.b16 %v1844
          %v3993 = vunpack.c.l.b16 %v1845
          %v3994 = vunpack.c.l.b16 %v1846
          %v3995 = vunpack.c.l.b16 %v1847
          %v3996 = vunpack.c.l.b16 %v1848
          %v3997 = vunpack.c.l.b16 %v1849
          %v3998 = vunpack.c.l.b16 %v1850
          %v3999 = vunpack.c.l.b16 %v1851
          %v4000 = vunpack.c.l.b16 %v1852
          %v4001 = vunpack.c.l.b16 %v1853
          %v4002 = vunpack.c.l.b16 %v1854
          %v4003 = vunpack.c.l.b16 %v1855
          %v4004 = vunpack.c.l.b16 %v1856
          %v4005 = vpack.c.b16 %v3974, %v3973
          %v4006 = vpack.c.b16 %v3976, %v3975
          %v4007 = vpack.c.b16 %v3978, %v3977
          %v4008 = vpack.c.b16 %v3980, %v3979
          %v4009 = vpack.c.b16 %v3982, %v3981
          %v4010 = vpack.c.b16 %v3984, %v3983
          %v4011 = vpack.c.b16 %v3986, %v3985
          %v4012 = vpack.c.b16 %v3988, %v3987
          %v4013 = vpack.c.b16 %v3990, %v3989
          %v4014 = vpack.c.b16 %v3992, %v3991
          %v4015 = vpack.c.b16 %v3994, %v3993
          %v4016 = vpack.c.b16 %v3996, %v3995
          %v4017 = vpack.c.b16 %v3998, %v3997
          %v4018 = vpack.c.b16 %v4000, %v3999
          %v4019 = vpack.c.b16 %v4002, %v4001
          %v4020 = vpack.c.b16 %v4004, %v4003
          %v4053 = vunpack.c.l.b16 %v3569
          %v4054 = vunpack.c.l.b16 %v3570
          %v4055 = vunpack.c.l.b16 %v3571
          %v4056 = vunpack.c.l.b16 %v3572
          %v4057 = vunpack.c.l.b16 %v3573
          %v4058 = vunpack.c.l.b16 %v3574
          %v4059 = vunpack.c.l.b16 %v3575
          %v4060 = vunpack.c.l.b16 %v3576
          %v4061 = vunpack.c.l.b16 %v3577
          %v4062 = vunpack.c.l.b16 %v3578
          %v4063 = vunpack.c.l.b16 %v3579
          %v4064 = vunpack.c.l.b16 %v3580
          %v4065 = vunpack.c.l.b16 %v3581
          %v4066 = vunpack.c.l.b16 %v3582
          %v4067 = vunpack.c.l.b16 %v3583
          %v4068 = vunpack.c.l.b16 %v3584
          %v4069 = vpack.c.b16 %v4054, %v4053
          %v4070 = vpack.c.b16 %v4056, %v4055
          %v4071 = vpack.c.b16 %v4058, %v4057
          %v4072 = vpack.c.b16 %v4060, %v4059
          %v4073 = vpack.c.b16 %v4062, %v4061
          %v4074 = vpack.c.b16 %v4064, %v4063
          %v4075 = vpack.c.b16 %v4066, %v4065
          %v4076 = vpack.c.b16 %v4068, %v4067
          %4085 = vmatprep.subr.bf16.mxu0 0
          %4086 = vmatpush1.bf16.msra.mxu0 %v4076
          %4087 = vmatprep.subr.bf16.mxu0 0
          %4088 = vmatpush1.bf16.msra.mxu0 %v4075
          %4089 = vmatprep.subr.bf16.mxu0 0
          %4090 = vmatpush1.bf16.msra.mxu0 %v4074
          %4091 = vmatprep.subr.bf16.mxu0 0
          %4092 = vmatpush1.bf16.msra.mxu0 %v4073
          %4093 = vmatprep.subr.bf16.mxu0 0
          %4094 = vmatpush1.bf16.msra.mxu0 %v4072
          %4095 = vmatprep.subr.bf16.mxu0 0
          %4096 = vmatpush1.bf16.msra.mxu0 %v4071
          %4097 = vmatprep.subr.bf16.mxu0 0
          %4098 = vmatpush1.bf16.msra.mxu0 %v4070
          %4099 = vmatprep.subr.bf16.mxu0 0
          %4100 = vmatpush1.bf16.msra.mxu0 %v4069
          %4101 = vmatprep.subr.bf16.mxu0 0
          %4102 = vmatpush2.bf16.msra.mxu0 0
          %4103 = vmatprep.subr.bf16.mxu0 0
          %4104 = vmatpush2.bf16.msra.mxu0 0
          %4105 = vmatprep.subr.bf16.mxu0 0
          %4106 = vmatpush2.bf16.msra.mxu0 0
          %4107 = vmatprep.subr.bf16.mxu0 0
          %4108 = vmatpush2.bf16.msra.mxu0 0
          %4109 = vmatprep.subr.bf16.mxu0 0
          %4110 = vmatpush2.bf16.msra.mxu0 0
          %4111 = vmatprep.subr.bf16.mxu0 0
          %4112 = vmatpush2.bf16.msra.mxu0 0
          %4113 = vmatprep.subr.bf16.mxu0 0
          %4114 = vmatpush2.bf16.msra.mxu0 0
          %4115 = vmatprep.subr.bf16.mxu0 0
          %4116 = vmatpush2.bf16.msra.mxu0 0
          %4117 = vmatprep.mubr.bf16.mxu0 0
          %4118 = vmatmul.mubr.bf16.gmra.mxu0 %v4005
          %v4119 = vpop.f32.mrf.mxu0
          %v4120 = vadd.f32 %v3815, %v4119
          %v4121 = vpop.f32.mrf.mxu0
          %v4122 = vpop.f32.mrf.mxu0
          %v4123 = vadd.f32 %v3818, %v4122
          %v4124 = vpop.f32.mrf.mxu0
          %4125 = vmatprep.mubr.bf16.mxu0 0
          %4126 = vmatmul.mubr.bf16.gmra.mxu0 %v4006
          %v4127 = vpop.f32.mrf.mxu0
          %v4128 = vadd.f32 %v3823, %v4127
          %v4129 = vpop.f32.mrf.mxu0
          %v4130 = vpop.f32.mrf.mxu0
          %v4131 = vadd.f32 %v3826, %v4130
          %v4132 = vpop.f32.mrf.mxu0
          %4133 = vmatprep.mubr.bf16.mxu0 0
          %4134 = vmatmul.mubr.bf16.gmra.mxu0 %v4007
          %v4135 = vpop.f32.mrf.mxu0
          %v4136 = vadd.f32 %v3831, %v4135
          %v4137 = vpop.f32.mrf.mxu0
          %v4138 = vpop.f32.mrf.mxu0
          %v4139 = vadd.f32 %v3834, %v4138
          %v4140 = vpop.f32.mrf.mxu0
          %4141 = vmatprep.mubr.bf16.mxu0 0
          %4142 = vmatmul.mubr.bf16.gmra.mxu0 %v4008
          %v4143 = vpop.f32.mrf.mxu0
          %v4144 = vadd.f32 %v3839, %v4143
          %v4145 = vpop.f32.mrf.mxu0
          %v4146 = vpop.f32.mrf.mxu0
          %v4147 = vadd.f32 %v3842, %v4146
          %v4148 = vpop.f32.mrf.mxu0
          %4149 = vmatprep.mubr.bf16.mxu0 0
          %4150 = vmatmul.mubr.bf16.gmra.mxu0 %v4009
          %v4151 = vpop.f32.mrf.mxu0
          %v4152 = vadd.f32 %v3847, %v4151
          %v4153 = vpop.f32.mrf.mxu0
          %v4154 = vpop.f32.mrf.mxu0
          %v4155 = vadd.f32 %v3850, %v4154
          %v4156 = vpop.f32.mrf.mxu0
          %4157 = vmatprep.mubr.bf16.mxu0 0
          %4158 = vmatmul.mubr.bf16.gmra.mxu0 %v4010
          %v4159 = vpop.f32.mrf.mxu0
          %v4160 = vadd.f32 %v3855, %v4159
          %v4161 = vpop.f32.mrf.mxu0
          %v4162 = vpop.f32.mrf.mxu0
          %v4163 = vadd.f32 %v3858, %v4162
          %v4164 = vpop.f32.mrf.mxu0
          %4165 = vmatprep.mubr.bf16.mxu0 0
          %4166 = vmatmul.mubr.bf16.gmra.mxu0 %v4011
          %v4167 = vpop.f32.mrf.mxu0
          %v4168 = vadd.f32 %v3863, %v4167
          %v4169 = vpop.f32.mrf.mxu0
          %v4170 = vpop.f32.mrf.mxu0
          %v4171 = vadd.f32 %v3866, %v4170
          %v4172 = vpop.f32.mrf.mxu0
          %4173 = vmatprep.mubr.bf16.mxu0 0
          %4174 = vmatmul.mubr.bf16.gmra.mxu0 %v4012
          %v4175 = vpop.f32.mrf.mxu0
          %v4176 = vadd.f32 %v3871, %v4175
          %v4177 = vpop.f32.mrf.mxu0
          %v4178 = vpop.f32.mrf.mxu0
          %v4179 = vadd.f32 %v3874, %v4178
          %v4180 = vpop.f32.mrf.mxu0
          %4181 = vmatprep.mubr.bf16.mxu0 0
          %4182 = vmatmul.mubr.bf16.gmra.mxu0 %v4013
          %v4183 = vpop.f32.mrf.mxu0
          %v4184 = vadd.f32 %v3879, %v4183
          %v4185 = vpop.f32.mrf.mxu0
          %v4186 = vpop.f32.mrf.mxu0
          %v4187 = vadd.f32 %v3882, %v4186
          %v4188 = vpop.f32.mrf.mxu0
          %4189 = vmatprep.mubr.bf16.mxu0 0
          %4190 = vmatmul.mubr.bf16.gmra.mxu0 %v4014
          %v4191 = vpop.f32.mrf.mxu0
          %v4192 = vadd.f32 %v3887, %v4191
          %v4193 = vpop.f32.mrf.mxu0
          %v4194 = vpop.f32.mrf.mxu0
          %v4195 = vadd.f32 %v3890, %v4194
          %v4196 = vpop.f32.mrf.mxu0
          %4197 = vmatprep.mubr.bf16.mxu0 0
          %4198 = vmatmul.mubr.bf16.gmra.mxu0 %v4015
          %v4199 = vpop.f32.mrf.mxu0
          %v4200 = vadd.f32 %v3895, %v4199
          %v4201 = vpop.f32.mrf.mxu0
          %v4202 = vpop.f32.mrf.mxu0
          %v4203 = vadd.f32 %v3898, %v4202
          %v4204 = vpop.f32.mrf.mxu0
          %4205 = vmatprep.mubr.bf16.mxu0 0
          %4206 = vmatmul.mubr.bf16.gmra.mxu0 %v4016
          %v4207 = vpop.f32.mrf.mxu0
          %v4208 = vadd.f32 %v3903, %v4207
          %v4209 = vpop.f32.mrf.mxu0
          %v4210 = vpop.f32.mrf.mxu0
          %v4211 = vadd.f32 %v3906, %v4210
          %v4212 = vpop.f32.mrf.mxu0
          %4213 = vmatprep.mubr.bf16.mxu0 0
          %4214 = vmatmul.mubr.bf16.gmra.mxu0 %v4017
          %v4215 = vpop.f32.mrf.mxu0
          %v4216 = vadd.f32 %v3911, %v4215
          %v4217 = vpop.f32.mrf.mxu0
          %v4218 = vpop.f32.mrf.mxu0
          %v4219 = vadd.f32 %v3914, %v4218
          %v4220 = vpop.f32.mrf.mxu0
          %4221 = vmatprep.mubr.bf16.mxu0 0
          %4222 = vmatmul.mubr.bf16.gmra.mxu0 %v4018
          %v4223 = vpop.f32.mrf.mxu0
          %v4224 = vadd.f32 %v3919, %v4223
          %v4225 = vpop.f32.mrf.mxu0
          %v4226 = vpop.f32.mrf.mxu0
          %v4227 = vadd.f32 %v3922, %v4226
          %v4228 = vpop.f32.mrf.mxu0
          %4229 = vmatprep.mubr.bf16.mxu0 0
          %4230 = vmatmul.mubr.bf16.gmra.mxu0 %v4019
          %v4231 = vpop.f32.mrf.mxu0
          %v4232 = vadd.f32 %v3927, %v4231
          %v4233 = vpop.f32.mrf.mxu0
          %v4234 = vpop.f32.mrf.mxu0
          %v4235 = vadd.f32 %v3930, %v4234
          %v4236 = vpop.f32.mrf.mxu0
          %4237 = vmatprep.mubr.bf16.mxu0 0
          %4238 = vmatmul.mubr.bf16.gmra.mxu0 %v4020
          %v4239 = vpop.f32.mrf.mxu0
          %v4240 = vadd.f32 %v3935, %v4239
          %v4241 = vpop.f32.mrf.mxu0
          %v4242 = vpop.f32.mrf.mxu0
          %v4243 = vadd.f32 %v3938, %v4242
          %v4244 = vpop.f32.mrf.mxu0
          %4245 = vdwg.mxu0
          %4247 = vset.pattern.permute.xlu0 0
          %4248 = vperm.xlu0 %4247, %v3536
          %v4249 = vpop.permute.xlu0 %4248
          %4252 = vset.pattern.permute.xlu0 0
          %4253 = vperm.xlu0 %4252, %v3537
          %v4254 = vpop.permute.xlu0 %4253
          %4257 = vset.pattern.permute.xlu0 0
          %4258 = vperm.xlu0 %4257, %v3538
          %v4259 = vpop.permute.xlu0 %4258
          %4262 = vset.pattern.permute.xlu0 0
          %4263 = vperm.xlu0 %4262, %v3539
          %v4264 = vpop.permute.xlu0 %4263
          %4267 = vset.pattern.permute.xlu0 0
          %4268 = vperm.xlu0 %4267, %v3540
          %v4269 = vpop.permute.xlu0 %4268
          %4272 = vset.pattern.permute.xlu0 0
          %4273 = vperm.xlu0 %4272, %v3541
          %v4274 = vpop.permute.xlu0 %4273
          %4277 = vset.pattern.permute.xlu0 0
          %4278 = vperm.xlu0 %4277, %v3542
          %v4279 = vpop.permute.xlu0 %4278
          %4282 = vset.pattern.permute.xlu0 0
          %4283 = vperm.xlu0 %4282, %v3543
          %v4284 = vpop.permute.xlu0 %4283
          %4287 = vset.pattern.permute.xlu0 0
          %4288 = vperm.xlu0 %4287, %v3544
          %v4289 = vpop.permute.xlu0 %4288
          %4292 = vset.pattern.permute.xlu0 0
          %4293 = vperm.xlu0 %4292, %v3545
          %v4294 = vpop.permute.xlu0 %4293
          %4297 = vset.pattern.permute.xlu0 0
          %4298 = vperm.xlu0 %4297, %v3546
          %v4299 = vpop.permute.xlu0 %4298
          %4302 = vset.pattern.permute.xlu0 0
          %4303 = vperm.xlu0 %4302, %v3547
          %v4304 = vpop.permute.xlu0 %4303
          %4307 = vset.pattern.permute.xlu0 0
          %4308 = vperm.xlu0 %4307, %v3548
          %v4309 = vpop.permute.xlu0 %4308
          %4312 = vset.pattern.permute.xlu0 0
          %4313 = vperm.xlu0 %4312, %v3549
          %v4314 = vpop.permute.xlu0 %4313
          %4317 = vset.pattern.permute.xlu0 0
          %4318 = vperm.xlu0 %4317, %v3550
          %v4319 = vpop.permute.xlu0 %4318
          %4322 = vset.pattern.permute.xlu0 0
          %4323 = vperm.xlu0 %4322, %v3551
          %v4324 = vpop.permute.xlu0 %4323
          %4327 = vset.pattern.permute.xlu0 0
          %4328 = vperm.xlu0 %4327, %v3552
          %v4329 = vpop.permute.xlu0 %4328
          %4332 = vset.pattern.permute.xlu0 0
          %4333 = vperm.xlu0 %4332, %v3553
          %v4334 = vpop.permute.xlu0 %4333
          %4337 = vset.pattern.permute.xlu0 0
          %4338 = vperm.xlu0 %4337, %v3554
          %v4339 = vpop.permute.xlu0 %4338
          %4342 = vset.pattern.permute.xlu0 0
          %4343 = vperm.xlu0 %4342, %v3555
          %v4344 = vpop.permute.xlu0 %4343
          %4347 = vset.pattern.permute.xlu0 0
          %4348 = vperm.xlu0 %4347, %v3556
          %v4349 = vpop.permute.xlu0 %4348
          %4352 = vset.pattern.permute.xlu0 0
          %4353 = vperm.xlu0 %4352, %v3557
          %v4354 = vpop.permute.xlu0 %4353
          %4357 = vset.pattern.permute.xlu0 0
          %4358 = vperm.xlu0 %4357, %v3558
          %v4359 = vpop.permute.xlu0 %4358
          %4362 = vset.pattern.permute.xlu0 0
          %4363 = vperm.xlu0 %4362, %v3559
          %v4364 = vpop.permute.xlu0 %4363
          %4367 = vset.pattern.permute.xlu0 0
          %4368 = vperm.xlu0 %4367, %v3560
          %v4369 = vpop.permute.xlu0 %4368
          %4372 = vset.pattern.permute.xlu0 0
          %4373 = vperm.xlu0 %4372, %v3561
          %v4374 = vpop.permute.xlu0 %4373
          %4377 = vset.pattern.permute.xlu0 0
          %4378 = vperm.xlu0 %4377, %v3562
          %v4379 = vpop.permute.xlu0 %4378
          %4382 = vset.pattern.permute.xlu0 0
          %4383 = vperm.xlu0 %4382, %v3563
          %v4384 = vpop.permute.xlu0 %4383
          %4387 = vset.pattern.permute.xlu0 0
          %4388 = vperm.xlu0 %4387, %v3564
          %v4389 = vpop.permute.xlu0 %4388
          %4392 = vset.pattern.permute.xlu0 0
          %4393 = vperm.xlu0 %4392, %v3565
          %v4394 = vpop.permute.xlu0 %4393
          %4397 = vset.pattern.permute.xlu0 0
          %4398 = vperm.xlu0 %4397, %v3566
          %v4399 = vpop.permute.xlu0 %4398
          %4402 = vset.pattern.permute.xlu0 0
          %4403 = vperm.xlu0 %4402, %v3567
          %v4404 = vpop.permute.xlu0 %4403
          %v4406 = vmul.f32 %v4249, %v1758
          %v4407 = vmul.f32 %v4254, %v1759
          %v4408 = vmul.f32 %v4259, %v1760
          %v4409 = vmul.f32 %v4264, %v1761
          %v4410 = vmul.f32 %v4269, %v1762
          %v4411 = vmul.f32 %v4274, %v1763
          %v4412 = vmul.f32 %v4279, %v1764
          %v4413 = vmul.f32 %v4284, %v1765
          %v4414 = vmul.f32 %v4289, %v1766
          %v4415 = vmul.f32 %v4294, %v1767
          %v4416 = vmul.f32 %v4299, %v1768
          %v4417 = vmul.f32 %v4304, %v1769
          %v4418 = vmul.f32 %v4309, %v1770
          %v4419 = vmul.f32 %v4314, %v1771
          %v4420 = vmul.f32 %v4319, %v1772
          %v4421 = vmul.f32 %v4324, %v1773
          %v4422 = vmul.f32 %v4329, %v1774
          %v4423 = vmul.f32 %v4334, %v1775
          %v4424 = vmul.f32 %v4339, %v1776
          %v4425 = vmul.f32 %v4344, %v1777
          %v4426 = vmul.f32 %v4349, %v1778
          %v4427 = vmul.f32 %v4354, %v1779
          %v4428 = vmul.f32 %v4359, %v1780
          %v4429 = vmul.f32 %v4364, %v1781
          %v4430 = vmul.f32 %v4369, %v1782
          %v4431 = vmul.f32 %v4374, %v1783
          %v4432 = vmul.f32 %v4379, %v1784
          %v4433 = vmul.f32 %v4384, %v1785
          %v4434 = vmul.f32 %v4389, %v1786
          %v4435 = vmul.f32 %v4394, %v1787
          %v4436 = vmul.f32 %v4399, %v1788
          %v4437 = vmul.f32 %v4404, %v1789
          %v4438 = vadd.f32 %v4406, %v4120
          %v4439 = vadd.f32 %v4407, %v4123
          %v4440 = vadd.f32 %v4408, %v4128
          %v4441 = vadd.f32 %v4409, %v4131
          %v4442 = vadd.f32 %v4410, %v4136
          %v4443 = vadd.f32 %v4411, %v4139
          %v4444 = vadd.f32 %v4412, %v4144
          %v4445 = vadd.f32 %v4413, %v4147
          %v4446 = vadd.f32 %v4414, %v4152
          %v4447 = vadd.f32 %v4415, %v4155
          %v4448 = vadd.f32 %v4416, %v4160
          %v4449 = vadd.f32 %v4417, %v4163
          %v4450 = vadd.f32 %v4418, %v4168
          %v4451 = vadd.f32 %v4419, %v4171
          %v4452 = vadd.f32 %v4420, %v4176
          %v4453 = vadd.f32 %v4421, %v4179
          %v4454 = vadd.f32 %v4422, %v4184
          %v4455 = vadd.f32 %v4423, %v4187
          %v4456 = vadd.f32 %v4424, %v4192
          %v4457 = vadd.f32 %v4425, %v4195
          %v4458 = vadd.f32 %v4426, %v4200
          %v4459 = vadd.f32 %v4427, %v4203
          %v4460 = vadd.f32 %v4428, %v4208
          %v4461 = vadd.f32 %v4429, %v4211
          %v4462 = vadd.f32 %v4430, %v4216
          %v4463 = vadd.f32 %v4431, %v4219
          %v4464 = vadd.f32 %v4432, %v4224
          %v4465 = vadd.f32 %v4433, %v4227
          %v4466 = vadd.f32 %v4434, %v4232
          %v4467 = vadd.f32 %v4435, %v4235
          %v4468 = vadd.f32 %v4436, %v4240
          %v4469 = vadd.f32 %v4437, %v4243
          %v4470 = vld [vmem:[%s7] sm:$0x1]
          %v4472 = vlaneseq
          %v4473 = vshrl.u32 %v4472, 7
          %v4474 = vsub.s32 0, %v4473
          %v4475 = vrot.slane %v4470, %v4474
          %v4477 = vadd.f32 %v4438, %v4475
          %v4478 = vadd.f32 %v4439, %v4475
          %v4479 = vadd.f32 %v4440, %v4475
          %v4480 = vadd.f32 %v4441, %v4475
          %v4481 = vadd.f32 %v4442, %v4475
          %v4482 = vadd.f32 %v4443, %v4475
          %v4483 = vadd.f32 %v4444, %v4475
          %v4484 = vadd.f32 %v4445, %v4475
          %v4485 = vadd.f32 %v4446, %v4475
          %v4486 = vadd.f32 %v4447, %v4475
          %v4487 = vadd.f32 %v4448, %v4475
          %v4488 = vadd.f32 %v4449, %v4475
          %v4489 = vadd.f32 %v4450, %v4475
          %v4490 = vadd.f32 %v4451, %v4475
          %v4491 = vadd.f32 %v4452, %v4475
          %v4492 = vadd.f32 %v4453, %v4475
          %v4493 = vadd.f32 %v4454, %v4475
          %v4494 = vadd.f32 %v4455, %v4475
          %v4495 = vadd.f32 %v4456, %v4475
          %v4496 = vadd.f32 %v4457, %v4475
          %v4497 = vadd.f32 %v4458, %v4475
          %v4498 = vadd.f32 %v4459, %v4475
          %v4499 = vadd.f32 %v4460, %v4475
          %v4500 = vadd.f32 %v4461, %v4475
          %v4501 = vadd.f32 %v4462, %v4475
          %v4502 = vadd.f32 %v4463, %v4475
          %v4503 = vadd.f32 %v4464, %v4475
          %v4504 = vadd.f32 %v4465, %v4475
          %v4505 = vadd.f32 %v4466, %v4475
          %v4506 = vadd.f32 %v4467, %v4475
          %v4507 = vadd.f32 %v4468, %v4475
          %v4508 = vadd.f32 %v4469, %v4475
          %v4509 = vpack.c.bf16 %v4478, %v4477
          %v4510 = vpack.c.bf16 %v4480, %v4479
          %v4511 = vpack.c.bf16 %v4482, %v4481
          %v4512 = vpack.c.bf16 %v4484, %v4483
          %v4513 = vpack.c.bf16 %v4486, %v4485
          %v4514 = vpack.c.bf16 %v4488, %v4487
          %v4515 = vpack.c.bf16 %v4490, %v4489
          %v4516 = vpack.c.bf16 %v4492, %v4491
          %v4517 = vpack.c.bf16 %v4494, %v4493
          %v4518 = vpack.c.bf16 %v4496, %v4495
          %v4519 = vpack.c.bf16 %v4498, %v4497
          %v4520 = vpack.c.bf16 %v4500, %v4499
          %v4521 = vpack.c.bf16 %v4502, %v4501
          %v4522 = vpack.c.bf16 %v4504, %v4503
          %v4523 = vpack.c.bf16 %v4506, %v4505
          %v4524 = vpack.c.bf16 %v4508, %v4507
          %v4525 = vld [vmem:[%s8] sm:$0xf]
          %v4526 = vld [vmem:[%s8 + $0x4] sm:$0xf]
          %v4527 = vld [vmem:[%s8 + $0x8] sm:$0xf]
          %v4528 = vld [vmem:[%s8 + $0xc] sm:$0xf]
          %v4529 = vld [vmem:[%s8 + $0x10] sm:$0xf]
          %v4530 = vld [vmem:[%s8 + $0x14] sm:$0xf]
          %v4531 = vld [vmem:[%s8 + $0x18] sm:$0xf]
          %v4532 = vld [vmem:[%s8 + $0x1c] sm:$0xf]
          %v4533 = vld [vmem:[%s8 + $0x20] sm:$0xf]
          %v4534 = vld [vmem:[%s8 + $0x24] sm:$0xf]
          %v4535 = vld [vmem:[%s8 + $0x28] sm:$0xf]
          %v4536 = vld [vmem:[%s8 + $0x2c] sm:$0xf]
          %v4537 = vld [vmem:[%s8 + $0x30] sm:$0xf]
          %v4538 = vld [vmem:[%s8 + $0x34] sm:$0xf]
          %v4539 = vld [vmem:[%s8 + $0x38] sm:$0xf]
          %v4540 = vld [vmem:[%s8 + $0x3c] sm:$0xf]
          %v4557 = vunpack.c.l.b16 %v4525
          %v4558 = vunpack.c.l.b16 %v4526
          %v4559 = vunpack.c.l.b16 %v4527
          %v4560 = vunpack.c.l.b16 %v4528
          %v4561 = vunpack.c.l.b16 %v4529
          %v4562 = vunpack.c.l.b16 %v4530
          %v4563 = vunpack.c.l.b16 %v4531
          %v4564 = vunpack.c.l.b16 %v4532
          %v4565 = vunpack.c.l.b16 %v4533
          %v4566 = vunpack.c.l.b16 %v4534
          %v4567 = vunpack.c.l.b16 %v4535
          %v4568 = vunpack.c.l.b16 %v4536
          %v4569 = vunpack.c.l.b16 %v4537
          %v4570 = vunpack.c.l.b16 %v4538
          %v4571 = vunpack.c.l.b16 %v4539
          %v4572 = vunpack.c.l.b16 %v4540
          %v4573 = vpack.c.b16 %v4558, %v4557
          %v4574 = vpack.c.b16 %v4560, %v4559
          %v4575 = vpack.c.b16 %v4562, %v4561
          %v4576 = vpack.c.b16 %v4564, %v4563
          %v4577 = vpack.c.b16 %v4566, %v4565
          %v4578 = vpack.c.b16 %v4568, %v4567
          %v4579 = vpack.c.b16 %v4570, %v4569
          %v4580 = vpack.c.b16 %v4572, %v4571
          %4589 = vmatprep.subr.bf16.mxu0 0
          %4590 = vmatpush1.bf16.msra.mxu0 %v4580
          %4591 = vmatprep.subr.bf16.mxu0 0
          %4592 = vmatpush1.bf16.msra.mxu0 %v4579
          %4593 = vmatprep.subr.bf16.mxu0 0
          %4594 = vmatpush1.bf16.msra.mxu0 %v4578
          %4595 = vmatprep.subr.bf16.mxu0 0
          %4596 = vmatpush1.bf16.msra.mxu0 %v4577
          %4597 = vmatprep.subr.bf16.mxu0 0
          %4598 = vmatpush1.bf16.msra.mxu0 %v4576
          %4599 = vmatprep.subr.bf16.mxu0 0
          %4600 = vmatpush1.bf16.msra.mxu0 %v4575
          %4601 = vmatprep.subr.bf16.mxu0 0
          %4602 = vmatpush1.bf16.msra.mxu0 %v4574
          %4603 = vmatprep.subr.bf16.mxu0 0
          %4604 = vmatpush1.bf16.msra.mxu0 %v4573
          %4605 = vmatprep.subr.bf16.mxu0 0
          %4606 = vmatpush2.bf16.msra.mxu0 0
          %4607 = vmatprep.subr.bf16.mxu0 0
          %4608 = vmatpush2.bf16.msra.mxu0 0
          %4609 = vmatprep.subr.bf16.mxu0 0
          %4610 = vmatpush2.bf16.msra.mxu0 0
          %4611 = vmatprep.subr.bf16.mxu0 0
          %4612 = vmatpush2.bf16.msra.mxu0 0
          %4613 = vmatprep.subr.bf16.mxu0 0
          %4614 = vmatpush2.bf16.msra.mxu0 0
          %4615 = vmatprep.subr.bf16.mxu0 0
          %4616 = vmatpush2.bf16.msra.mxu0 0
          %4617 = vmatprep.subr.bf16.mxu0 0
          %4618 = vmatpush2.bf16.msra.mxu0 0
          %4619 = vmatprep.subr.bf16.mxu0 0
          %4620 = vmatpush2.bf16.msra.mxu0 0
          %4621 = vmatprep.mubr.bf16.mxu0 0
          %4622 = vmatmul.mubr.bf16.gmra.mxu0 %v4509
          %v4623 = vpop.f32.mrf.mxu0
          %v4624 = vadd.f32 0.0, %v4623
          %v4625 = vpop.f32.mrf.mxu0
          %v4626 = vpop.f32.mrf.mxu0
          %v4627 = vadd.f32 0.0, %v4626
          %v4628 = vpop.f32.mrf.mxu0
          %4629 = vmatprep.mubr.bf16.mxu0 0
          %4630 = vmatmul.mubr.bf16.gmra.mxu0 %v4510
          %v4631 = vpop.f32.mrf.mxu0
          %v4632 = vadd.f32 0.0, %v4631
          %v4633 = vpop.f32.mrf.mxu0
          %v4634 = vpop.f32.mrf.mxu0
          %v4635 = vadd.f32 0.0, %v4634
          %v4636 = vpop.f32.mrf.mxu0
          %4637 = vmatprep.mubr.bf16.mxu0 0
          %4638 = vmatmul.mubr.bf16.gmra.mxu0 %v4511
          %v4639 = vpop.f32.mrf.mxu0
          %v4640 = vadd.f32 0.0, %v4639
          %v4641 = vpop.f32.mrf.mxu0
          %v4642 = vpop.f32.mrf.mxu0
          %v4643 = vadd.f32 0.0, %v4642
          %v4644 = vpop.f32.mrf.mxu0
          %4645 = vmatprep.mubr.bf16.mxu0 0
          %4646 = vmatmul.mubr.bf16.gmra.mxu0 %v4512
          %v4647 = vpop.f32.mrf.mxu0
          %v4648 = vadd.f32 0.0, %v4647
          %v4649 = vpop.f32.mrf.mxu0
          %v4650 = vpop.f32.mrf.mxu0
          %v4651 = vadd.f32 0.0, %v4650
          %v4652 = vpop.f32.mrf.mxu0
          %4653 = vmatprep.mubr.bf16.mxu0 0
          %4654 = vmatmul.mubr.bf16.gmra.mxu0 %v4513
          %v4655 = vpop.f32.mrf.mxu0
          %v4656 = vadd.f32 0.0, %v4655
          %v4657 = vpop.f32.mrf.mxu0
          %v4658 = vpop.f32.mrf.mxu0
          %v4659 = vadd.f32 0.0, %v4658
          %v4660 = vpop.f32.mrf.mxu0
          %4661 = vmatprep.mubr.bf16.mxu0 0
          %4662 = vmatmul.mubr.bf16.gmra.mxu0 %v4514
          %v4663 = vpop.f32.mrf.mxu0
          %v4664 = vadd.f32 0.0, %v4663
          %v4665 = vpop.f32.mrf.mxu0
          %v4666 = vpop.f32.mrf.mxu0
          %v4667 = vadd.f32 0.0, %v4666
          %v4668 = vpop.f32.mrf.mxu0
          %4669 = vmatprep.mubr.bf16.mxu0 0
          %4670 = vmatmul.mubr.bf16.gmra.mxu0 %v4515
          %v4671 = vpop.f32.mrf.mxu0
          %v4672 = vadd.f32 0.0, %v4671
          %v4673 = vpop.f32.mrf.mxu0
          %v4674 = vpop.f32.mrf.mxu0
          %v4675 = vadd.f32 0.0, %v4674
          %v4676 = vpop.f32.mrf.mxu0
          %4677 = vmatprep.mubr.bf16.mxu0 0
          %4678 = vmatmul.mubr.bf16.gmra.mxu0 %v4516
          %v4679 = vpop.f32.mrf.mxu0
          %v4680 = vadd.f32 0.0, %v4679
          %v4681 = vpop.f32.mrf.mxu0
          %v4682 = vpop.f32.mrf.mxu0
          %v4683 = vadd.f32 0.0, %v4682
          %v4684 = vpop.f32.mrf.mxu0
          %4685 = vmatprep.mubr.bf16.mxu0 0
          %4686 = vmatmul.mubr.bf16.gmra.mxu0 %v4517
          %v4687 = vpop.f32.mrf.mxu0
          %v4688 = vadd.f32 0.0, %v4687
          %v4689 = vpop.f32.mrf.mxu0
          %v4690 = vpop.f32.mrf.mxu0
          %v4691 = vadd.f32 0.0, %v4690
          %v4692 = vpop.f32.mrf.mxu0
          %4693 = vmatprep.mubr.bf16.mxu0 0
          %4694 = vmatmul.mubr.bf16.gmra.mxu0 %v4518
          %v4695 = vpop.f32.mrf.mxu0
          %v4696 = vadd.f32 0.0, %v4695
          %v4697 = vpop.f32.mrf.mxu0
          %v4698 = vpop.f32.mrf.mxu0
          %v4699 = vadd.f32 0.0, %v4698
          %v4700 = vpop.f32.mrf.mxu0
          %4701 = vmatprep.mubr.bf16.mxu0 0
          %4702 = vmatmul.mubr.bf16.gmra.mxu0 %v4519
          %v4703 = vpop.f32.mrf.mxu0
          %v4704 = vadd.f32 0.0, %v4703
          %v4705 = vpop.f32.mrf.mxu0
          %v4706 = vpop.f32.mrf.mxu0
          %v4707 = vadd.f32 0.0, %v4706
          %v4708 = vpop.f32.mrf.mxu0
          %4709 = vmatprep.mubr.bf16.mxu0 0
          %4710 = vmatmul.mubr.bf16.gmra.mxu0 %v4520
          %v4711 = vpop.f32.mrf.mxu0
          %v4712 = vadd.f32 0.0, %v4711
          %v4713 = vpop.f32.mrf.mxu0
          %v4714 = vpop.f32.mrf.mxu0
          %v4715 = vadd.f32 0.0, %v4714
          %v4716 = vpop.f32.mrf.mxu0
          %4717 = vmatprep.mubr.bf16.mxu0 0
          %4718 = vmatmul.mubr.bf16.gmra.mxu0 %v4521
          %v4719 = vpop.f32.mrf.mxu0
          %v4720 = vadd.f32 0.0, %v4719
          %v4721 = vpop.f32.mrf.mxu0
          %v4722 = vpop.f32.mrf.mxu0
          %v4723 = vadd.f32 0.0, %v4722
          %v4724 = vpop.f32.mrf.mxu0
          %4725 = vmatprep.mubr.bf16.mxu0 0
          %4726 = vmatmul.mubr.bf16.gmra.mxu0 %v4522
          %v4727 = vpop.f32.mrf.mxu0
          %v4728 = vadd.f32 0.0, %v4727
          %v4729 = vpop.f32.mrf.mxu0
          %v4730 = vpop.f32.mrf.mxu0
          %v4731 = vadd.f32 0.0, %v4730
          %v4732 = vpop.f32.mrf.mxu0
          %4733 = vmatprep.mubr.bf16.mxu0 0
          %4734 = vmatmul.mubr.bf16.gmra.mxu0 %v4523
          %v4735 = vpop.f32.mrf.mxu0
          %v4736 = vadd.f32 0.0, %v4735
          %v4737 = vpop.f32.mrf.mxu0
          %v4738 = vpop.f32.mrf.mxu0
          %v4739 = vadd.f32 0.0, %v4738
          %v4740 = vpop.f32.mrf.mxu0
          %4741 = vmatprep.mubr.bf16.mxu0 0
          %4742 = vmatmul.mubr.bf16.gmra.mxu0 %v4524
          %v4743 = vpop.f32.mrf.mxu0
          %v4744 = vadd.f32 0.0, %v4743
          %v4745 = vpop.f32.mrf.mxu0
          %v4746 = vpop.f32.mrf.mxu0
          %v4747 = vadd.f32 0.0, %v4746
          %v4748 = vpop.f32.mrf.mxu0
          %4749 = vdwg.mxu0
          %4751 = vset.pattern.permute.xlu0 0
          %4752 = vperm.xlu0 %4751, %v1791
          %v4753 = vpop.permute.xlu0 %4752
          %4756 = vset.pattern.permute.xlu0 0
          %4757 = vperm.xlu0 %4756, %v1792
          %v4758 = vpop.permute.xlu0 %4757
          %4761 = vset.pattern.permute.xlu0 0
          %4762 = vperm.xlu0 %4761, %v1793
          %v4763 = vpop.permute.xlu0 %4762
          %4766 = vset.pattern.permute.xlu0 0
          %4767 = vperm.xlu0 %4766, %v1794
          %v4768 = vpop.permute.xlu0 %4767
          %4771 = vset.pattern.permute.xlu0 0
          %4772 = vperm.xlu0 %4771, %v1795
          %v4773 = vpop.permute.xlu0 %4772
          %4776 = vset.pattern.permute.xlu0 0
          %4777 = vperm.xlu0 %4776, %v1796
          %v4778 = vpop.permute.xlu0 %4777
          %4781 = vset.pattern.permute.xlu0 0
          %4782 = vperm.xlu0 %4781, %v1797
          %v4783 = vpop.permute.xlu0 %4782
          %4786 = vset.pattern.permute.xlu0 0
          %4787 = vperm.xlu0 %4786, %v1798
          %v4788 = vpop.permute.xlu0 %4787
          %4791 = vset.pattern.permute.xlu0 0
          %4792 = vperm.xlu0 %4791, %v1799
          %v4793 = vpop.permute.xlu0 %4792
          %4796 = vset.pattern.permute.xlu0 0
          %4797 = vperm.xlu0 %4796, %v1800
          %v4798 = vpop.permute.xlu0 %4797
          %4801 = vset.pattern.permute.xlu0 0
          %4802 = vperm.xlu0 %4801, %v1801
          %v4803 = vpop.permute.xlu0 %4802
          %4806 = vset.pattern.permute.xlu0 0
          %4807 = vperm.xlu0 %4806, %v1802
          %v4808 = vpop.permute.xlu0 %4807
          %4811 = vset.pattern.permute.xlu0 0
          %4812 = vperm.xlu0 %4811, %v1803
          %v4813 = vpop.permute.xlu0 %4812
          %4816 = vset.pattern.permute.xlu0 0
          %4817 = vperm.xlu0 %4816, %v1804
          %v4818 = vpop.permute.xlu0 %4817
          %4821 = vset.pattern.permute.xlu0 0
          %4822 = vperm.xlu0 %4821, %v1805
          %v4823 = vpop.permute.xlu0 %4822
          %4826 = vset.pattern.permute.xlu0 0
          %4827 = vperm.xlu0 %4826, %v1806
          %v4828 = vpop.permute.xlu0 %4827
          %4831 = vset.pattern.permute.xlu0 0
          %4832 = vperm.xlu0 %4831, %v1807
          %v4833 = vpop.permute.xlu0 %4832
          %4836 = vset.pattern.permute.xlu0 0
          %4837 = vperm.xlu0 %4836, %v1808
          %v4838 = vpop.permute.xlu0 %4837
          %4841 = vset.pattern.permute.xlu0 0
          %4842 = vperm.xlu0 %4841, %v1809
          %v4843 = vpop.permute.xlu0 %4842
          %4846 = vset.pattern.permute.xlu0 0
          %4847 = vperm.xlu0 %4846, %v1810
          %v4848 = vpop.permute.xlu0 %4847
          %4851 = vset.pattern.permute.xlu0 0
          %4852 = vperm.xlu0 %4851, %v1811
          %v4853 = vpop.permute.xlu0 %4852
          %4856 = vset.pattern.permute.xlu0 0
          %4857 = vperm.xlu0 %4856, %v1812
          %v4858 = vpop.permute.xlu0 %4857
          %4861 = vset.pattern.permute.xlu0 0
          %4862 = vperm.xlu0 %4861, %v1813
          %v4863 = vpop.permute.xlu0 %4862
          %4866 = vset.pattern.permute.xlu0 0
          %4867 = vperm.xlu0 %4866, %v1814
          %v4868 = vpop.permute.xlu0 %4867
          %4871 = vset.pattern.permute.xlu0 0
          %4872 = vperm.xlu0 %4871, %v1815
          %v4873 = vpop.permute.xlu0 %4872
          %4876 = vset.pattern.permute.xlu0 0
          %4877 = vperm.xlu0 %4876, %v1816
          %v4878 = vpop.permute.xlu0 %4877
          %4881 = vset.pattern.permute.xlu0 0
          %4882 = vperm.xlu0 %4881, %v1817
          %v4883 = vpop.permute.xlu0 %4882
          %4886 = vset.pattern.permute.xlu0 0
          %4887 = vperm.xlu0 %4886, %v1818
          %v4888 = vpop.permute.xlu0 %4887
          %4891 = vset.pattern.permute.xlu0 0
          %4892 = vperm.xlu0 %4891, %v1819
          %v4893 = vpop.permute.xlu0 %4892
          %4896 = vset.pattern.permute.xlu0 0
          %4897 = vperm.xlu0 %4896, %v1820
          %v4898 = vpop.permute.xlu0 %4897
          %4901 = vset.pattern.permute.xlu0 0
          %4902 = vperm.xlu0 %4901, %v1821
          %v4903 = vpop.permute.xlu0 %4902
          %4906 = vset.pattern.permute.xlu0 0
          %4907 = vperm.xlu0 %4906, %v1822
          %v4908 = vpop.permute.xlu0 %4907
          %v4910 = vmul.f32 %v4753, %v4624
          %v4911 = vmul.f32 %v4758, %v4627
          %v4912 = vmul.f32 %v4763, %v4632
          %v4913 = vmul.f32 %v4768, %v4635
          %v4914 = vmul.f32 %v4773, %v4640
          %v4915 = vmul.f32 %v4778, %v4643
          %v4916 = vmul.f32 %v4783, %v4648
          %v4917 = vmul.f32 %v4788, %v4651
          %v4918 = vmul.f32 %v4793, %v4656
          %v4919 = vmul.f32 %v4798, %v4659
          %v4920 = vmul.f32 %v4803, %v4664
          %v4921 = vmul.f32 %v4808, %v4667
          %v4922 = vmul.f32 %v4813, %v4672
          %v4923 = vmul.f32 %v4818, %v4675
          %v4924 = vmul.f32 %v4823, %v4680
          %v4925 = vmul.f32 %v4828, %v4683
          %v4926 = vmul.f32 %v4833, %v4688
          %v4927 = vmul.f32 %v4838, %v4691
          %v4928 = vmul.f32 %v4843, %v4696
          %v4929 = vmul.f32 %v4848, %v4699
          %v4930 = vmul.f32 %v4853, %v4704
          %v4931 = vmul.f32 %v4858, %v4707
          %v4932 = vmul.f32 %v4863, %v4712
          %v4933 = vmul.f32 %v4868, %v4715
          %v4934 = vmul.f32 %v4873, %v4720
          %v4935 = vmul.f32 %v4878, %v4723
          %v4936 = vmul.f32 %v4883, %v4728
          %v4937 = vmul.f32 %v4888, %v4731
          %v4938 = vmul.f32 %v4893, %v4736
          %v4939 = vmul.f32 %v4898, %v4739
          %v4940 = vmul.f32 %v4903, %v4744
          %v4941 = vmul.f32 %v4908, %v4747
          %v4942 = vpack.c.bf16 %v4911, %v4910
          %v4943 = vpack.c.bf16 %v4913, %v4912
          %v4944 = vpack.c.bf16 %v4915, %v4914
          %v4945 = vpack.c.bf16 %v4917, %v4916
          %v4946 = vpack.c.bf16 %v4919, %v4918
          %v4947 = vpack.c.bf16 %v4921, %v4920
          %v4948 = vpack.c.bf16 %v4923, %v4922
          %v4949 = vpack.c.bf16 %v4925, %v4924
          %v4950 = vpack.c.bf16 %v4927, %v4926
          %v4951 = vpack.c.bf16 %v4929, %v4928
          %v4952 = vpack.c.bf16 %v4931, %v4930
          %v4953 = vpack.c.bf16 %v4933, %v4932
          %v4954 = vpack.c.bf16 %v4935, %v4934
          %v4955 = vpack.c.bf16 %v4937, %v4936
          %v4956 = vpack.c.bf16 %v4939, %v4938
          %v4957 = vpack.c.bf16 %v4941, %v4940
          %v4974 = vunpack.c.l.b16 %v4942
          %v4975 = vunpack.c.h.b16 %v4942
          %v4976 = vunpack.c.l.b16 %v4943
          %v4977 = vunpack.c.h.b16 %v4943
          %v4978 = vunpack.c.l.b16 %v4944
          %v4979 = vunpack.c.h.b16 %v4944
          %v4980 = vunpack.c.l.b16 %v4945
          %v4981 = vunpack.c.h.b16 %v4945
          %v4982 = vunpack.c.l.b16 %v4946
          %v4983 = vunpack.c.h.b16 %v4946
          %v4984 = vunpack.c.l.b16 %v4947
          %v4985 = vunpack.c.h.b16 %v4947
          %v4986 = vunpack.c.l.b16 %v4948
          %v4987 = vunpack.c.h.b16 %v4948
          %v4988 = vunpack.c.l.b16 %v4949
          %v4989 = vunpack.c.h.b16 %v4949
          %v4990 = vunpack.c.l.b16 %v4950
          %v4991 = vunpack.c.h.b16 %v4950
          %v4992 = vunpack.c.l.b16 %v4951
          %v4993 = vunpack.c.h.b16 %v4951
          %v4994 = vunpack.c.l.b16 %v4952
          %v4995 = vunpack.c.h.b16 %v4952
          %v4996 = vunpack.c.l.b16 %v4953
          %v4997 = vunpack.c.h.b16 %v4953
          %v4998 = vunpack.c.l.b16 %v4954
          %v4999 = vunpack.c.h.b16 %v4954
          %v5000 = vunpack.c.l.b16 %v4955
          %v5001 = vunpack.c.h.b16 %v4955
          %v5002 = vunpack.c.l.b16 %v4956
          %v5003 = vunpack.c.h.b16 %v4956
          %v5004 = vunpack.c.l.b16 %v4957
          %v5005 = vunpack.c.h.b16 %v4957
          %v5006 = vpack.c.b16 %v4974, %v4974
          %v5007 = vpack.c.b16 %v4975, %v4975
          %v5008 = vpack.c.b16 %v4976, %v4976
          %v5009 = vpack.c.b16 %v4977, %v4977
          %v5010 = vpack.c.b16 %v4978, %v4978
          %v5011 = vpack.c.b16 %v4979, %v4979
          %v5012 = vpack.c.b16 %v4980, %v4980
          %v5013 = vpack.c.b16 %v4981, %v4981
          %v5014 = vpack.c.b16 %v4982, %v4982
          %v5015 = vpack.c.b16 %v4983, %v4983
          %v5016 = vpack.c.b16 %v4984, %v4984
          %v5017 = vpack.c.b16 %v4985, %v4985
          %v5018 = vpack.c.b16 %v4986, %v4986
          %v5019 = vpack.c.b16 %v4987, %v4987
          %v5020 = vpack.c.b16 %v4988, %v4988
          %v5021 = vpack.c.b16 %v4989, %v4989
          %v5022 = vpack.c.b16 %v4990, %v4990
          %v5023 = vpack.c.b16 %v4991, %v4991
          %v5024 = vpack.c.b16 %v4992, %v4992
          %v5025 = vpack.c.b16 %v4993, %v4993
          %v5026 = vpack.c.b16 %v4994, %v4994
          %v5027 = vpack.c.b16 %v4995, %v4995
          %v5028 = vpack.c.b16 %v4996, %v4996
          %v5029 = vpack.c.b16 %v4997, %v4997
          %v5030 = vpack.c.b16 %v4998, %v4998
          %v5031 = vpack.c.b16 %v4999, %v4999
          %v5032 = vpack.c.b16 %v5000, %v5000
          %v5033 = vpack.c.b16 %v5001, %v5001
          %v5034 = vpack.c.b16 %v5002, %v5002
          %v5035 = vpack.c.b16 %v5003, %v5003
          %v5036 = vpack.c.b16 %v5004, %v5004
          %v5037 = vpack.c.b16 %v5005, %v5005
          %s5070 = sshra.s32 %s380, 3
          %s5071 = sand.u32 %s380, 7
          %s5072 = smul.addr %s5070, 4
          %s5073 = scalar_lea.vmem [#allocation2], %s5072
          %5074 = vst [vmem:[%s5073] sm:$0xf] %v5006
          %5075 = vst [vmem:[%s5073 + $0x4] sm:$0xf] %v5007
          %5076 = vst [vmem:[%s5073 + $0x8] sm:$0xf] %v5008
          %5077 = vst [vmem:[%s5073 + $0xc] sm:$0xf] %v5009
          %5078 = vst [vmem:[%s5073 + $0x10] sm:$0xf] %v5010
          %5079 = vst [vmem:[%s5073 + $0x14] sm:$0xf] %v5011
          %5080 = vst [vmem:[%s5073 + $0x18] sm:$0xf] %v5012
          %5081 = vst [vmem:[%s5073 + $0x1c] sm:$0xf] %v5013
          %5082 = vst [vmem:[%s5073 + $0x20] sm:$0xf] %v5014
          %5083 = vst [vmem:[%s5073 + $0x24] sm:$0xf] %v5015
          %5084 = vst [vmem:[%s5073 + $0x28] sm:$0xf] %v5016
          %5085 = vst [vmem:[%s5073 + $0x2c] sm:$0xf] %v5017
          %5086 = vst [vmem:[%s5073 + $0x30] sm:$0xf] %v5018
          %5087 = vst [vmem:[%s5073 + $0x34] sm:$0xf] %v5019
          %5088 = vst [vmem:[%s5073 + $0x38] sm:$0xf] %v5020
          %5089 = vst [vmem:[%s5073 + $0x3c] sm:$0xf] %v5021
          %5090 = vst [vmem:[%s5073 + $0x40] sm:$0xf] %v5022
          %5091 = vst [vmem:[%s5073 + $0x44] sm:$0xf] %v5023
          %5092 = vst [vmem:[%s5073 + $0x48] sm:$0xf] %v5024
          %5093 = vst [vmem:[%s5073 + $0x4c] sm:$0xf] %v5025
          %5094 = vst [vmem:[%s5073 + $0x50] sm:$0xf] %v5026
          %5095 = vst [vmem:[%s5073 + $0x54] sm:$0xf] %v5027
          %5096 = vst [vmem:[%s5073 + $0x58] sm:$0xf] %v5028
          %5097 = vst [vmem:[%s5073 + $0x5c] sm:$0xf] %v5029
          %5098 = vst [vmem:[%s5073 + $0x60] sm:$0xf] %v5030
          %5099 = vst [vmem:[%s5073 + $0x64] sm:$0xf] %v5031
          %5100 = vst [vmem:[%s5073 + $0x68] sm:$0xf] %v5032
          %5101 = vst [vmem:[%s5073 + $0x6c] sm:$0xf] %v5033
          %5102 = vst [vmem:[%s5073 + $0x70] sm:$0xf] %v5034
          %5103 = vst [vmem:[%s5073 + $0x74] sm:$0xf] %v5035
          %5104 = vst [vmem:[%s5073 + $0x78] sm:$0xf] %v5036
          %5105 = vst [vmem:[%s5073 + $0x7c] sm:$0xf] %v5037
        $region88: #{residual_gc_forward.1} parent=71 // pred_fallthru
          _
        %p5106 = scmp.eq.s32.totalorder %s26, 4
        // Predicated region
        $region89: #{residual_gc_forward.1} parent=71 // pred_check
          %p5107 = pneg %p5106
        $region90: #{residual_gc_forward.1} parent=71 // pred_check_branch
          %5109 = sbr.rel (%p5107) target = $region92
        $region91: #{residual_gc_forward.1} parent=71 // pred_region
          %s5110 = sshra.s32 %s378, 3
          %s5111 = sand.u32 %s378, 7
          %s5112 = smul.addr %s5110, 4
          %s5113 = scalar_lea.vmem [#allocation2], %s5112
          %v5114 = vld [vmem:[%s5113] sm:$0xf]
          %v5115 = vld [vmem:[%s5113 + $0x4] sm:$0xf]
          %v5116 = vld [vmem:[%s5113 + $0x8] sm:$0xf]
          %v5117 = vld [vmem:[%s5113 + $0xc] sm:$0xf]
          %v5118 = vld [vmem:[%s5113 + $0x10] sm:$0xf]
          %v5119 = vld [vmem:[%s5113 + $0x14] sm:$0xf]
          %v5120 = vld [vmem:[%s5113 + $0x18] sm:$0xf]
          %v5121 = vld [vmem:[%s5113 + $0x1c] sm:$0xf]
          %v5122 = vld [vmem:[%s5113 + $0x20] sm:$0xf]
          %v5123 = vld [vmem:[%s5113 + $0x24] sm:$0xf]
          %v5124 = vld [vmem:[%s5113 + $0x28] sm:$0xf]
          %v5125 = vld [vmem:[%s5113 + $0x2c] sm:$0xf]
          %v5126 = vld [vmem:[%s5113 + $0x30] sm:$0xf]
          %v5127 = vld [vmem:[%s5113 + $0x34] sm:$0xf]
          %v5128 = vld [vmem:[%s5113 + $0x38] sm:$0xf]
          %v5129 = vld [vmem:[%s5113 + $0x3c] sm:$0xf]
          %v5130 = vld [vmem:[%s5113 + $0x40] sm:$0xf]
          %v5131 = vld [vmem:[%s5113 + $0x44] sm:$0xf]
          %v5132 = vld [vmem:[%s5113 + $0x48] sm:$0xf]
          %v5133 = vld [vmem:[%s5113 + $0x4c] sm:$0xf]
          %v5134 = vld [vmem:[%s5113 + $0x50] sm:$0xf]
          %v5135 = vld [vmem:[%s5113 + $0x54] sm:$0xf]
          %v5136 = vld [vmem:[%s5113 + $0x58] sm:$0xf]
          %v5137 = vld [vmem:[%s5113 + $0x5c] sm:$0xf]
          %v5138 = vld [vmem:[%s5113 + $0x60] sm:$0xf]
          %v5139 = vld [vmem:[%s5113 + $0x64] sm:$0xf]
          %v5140 = vld [vmem:[%s5113 + $0x68] sm:$0xf]
          %v5141 = vld [vmem:[%s5113 + $0x6c] sm:$0xf]
          %v5142 = vld [vmem:[%s5113 + $0x70] sm:$0xf]
          %v5143 = vld [vmem:[%s5113 + $0x74] sm:$0xf]
          %v5144 = vld [vmem:[%s5113 + $0x78] sm:$0xf]
          %v5145 = vld [vmem:[%s5113 + $0x7c] sm:$0xf]
          %v5146 = vunpack.c.l.bf16 %v5114
          %v5147 = vunpack.c.l.bf16 %v5115
          %v5148 = vunpack.c.l.bf16 %v5116
          %v5149 = vunpack.c.l.bf16 %v5117
          %v5150 = vunpack.c.l.bf16 %v5118
          %v5151 = vunpack.c.l.bf16 %v5119
          %v5152 = vunpack.c.l.bf16 %v5120
          %v5153 = vunpack.c.l.bf16 %v5121
          %v5154 = vunpack.c.l.bf16 %v5122
          %v5155 = vunpack.c.l.bf16 %v5123
          %v5156 = vunpack.c.l.bf16 %v5124
          %v5157 = vunpack.c.l.bf16 %v5125
          %v5158 = vunpack.c.l.bf16 %v5126
          %v5159 = vunpack.c.l.bf16 %v5127
          %v5160 = vunpack.c.l.bf16 %v5128
          %v5161 = vunpack.c.l.bf16 %v5129
          %v5162 = vunpack.c.l.bf16 %v5130
          %v5163 = vunpack.c.l.bf16 %v5131
          %v5164 = vunpack.c.l.bf16 %v5132
          %v5165 = vunpack.c.l.bf16 %v5133
          %v5166 = vunpack.c.l.bf16 %v5134
          %v5167 = vunpack.c.l.bf16 %v5135
          %v5168 = vunpack.c.l.bf16 %v5136
          %v5169 = vunpack.c.l.bf16 %v5137
          %v5170 = vunpack.c.l.bf16 %v5138
          %v5171 = vunpack.c.l.bf16 %v5139
          %v5172 = vunpack.c.l.bf16 %v5140
          %v5173 = vunpack.c.l.bf16 %v5141
          %v5174 = vunpack.c.l.bf16 %v5142
          %v5175 = vunpack.c.l.bf16 %v5143
          %v5176 = vunpack.c.l.bf16 %v5144
          %v5177 = vunpack.c.l.bf16 %v5145
          %v5178 = vadd.f32 %v1758, %v5146
          %v5179 = vadd.f32 %v1759, %v5147
          %v5180 = vadd.f32 %v1760, %v5148
          %v5181 = vadd.f32 %v1761, %v5149
          %v5182 = vadd.f32 %v1762, %v5150
          %v5183 = vadd.f32 %v1763, %v5151
          %v5184 = vadd.f32 %v1764, %v5152
          %v5185 = vadd.f32 %v1765, %v5153
          %v5186 = vadd.f32 %v1766, %v5154
          %v5187 = vadd.f32 %v1767, %v5155
          %v5188 = vadd.f32 %v1768, %v5156
          %v5189 = vadd.f32 %v1769, %v5157
          %v5190 = vadd.f32 %v1770, %v5158
          %v5191 = vadd.f32 %v1771, %v5159
          %v5192 = vadd.f32 %v1772, %v5160
          %v5193 = vadd.f32 %v1773, %v5161
          %v5194 = vadd.f32 %v1774, %v5162
          %v5195 = vadd.f32 %v1775, %v5163
          %v5196 = vadd.f32 %v1776, %v5164
          %v5197 = vadd.f32 %v1777, %v5165
          %v5198 = vadd.f32 %v1778, %v5166
          %v5199 = vadd.f32 %v1779, %v5167
          %v5200 = vadd.f32 %v1780, %v5168
          %v5201 = vadd.f32 %v1781, %v5169
          %v5202 = vadd.f32 %v1782, %v5170
          %v5203 = vadd.f32 %v1783, %v5171
          %v5204 = vadd.f32 %v1784, %v5172
          %v5205 = vadd.f32 %v1785, %v5173
          %v5206 = vadd.f32 %v1786, %v5174
          %v5207 = vadd.f32 %v1787, %v5175
          %v5208 = vadd.f32 %v1788, %v5176
          %v5209 = vadd.f32 %v1789, %v5177
          %5211 = vset.pattern.permute.xlu0 0
          %5212 = vperm.xlu0 %5211, %v1791
          %v5213 = vpop.permute.xlu0 %5212
          %5216 = vset.pattern.permute.xlu0 0
          %5217 = vperm.xlu0 %5216, %v1792
          %v5218 = vpop.permute.xlu0 %5217
          %5221 = vset.pattern.permute.xlu0 0
          %5222 = vperm.xlu0 %5221, %v1793
          %v5223 = vpop.permute.xlu0 %5222
          %5226 = vset.pattern.permute.xlu0 0
          %5227 = vperm.xlu0 %5226, %v1794
          %v5228 = vpop.permute.xlu0 %5227
          %5231 = vset.pattern.permute.xlu0 0
          %5232 = vperm.xlu0 %5231, %v1795
          %v5233 = vpop.permute.xlu0 %5232
          %5236 = vset.pattern.permute.xlu0 0
          %5237 = vperm.xlu0 %5236, %v1796
          %v5238 = vpop.permute.xlu0 %5237
          %5241 = vset.pattern.permute.xlu0 0
          %5242 = vperm.xlu0 %5241, %v1797
          %v5243 = vpop.permute.xlu0 %5242
          %5246 = vset.pattern.permute.xlu0 0
          %5247 = vperm.xlu0 %5246, %v1798
          %v5248 = vpop.permute.xlu0 %5247
          %5251 = vset.pattern.permute.xlu0 0
          %5252 = vperm.xlu0 %5251, %v1799
          %v5253 = vpop.permute.xlu0 %5252
          %5256 = vset.pattern.permute.xlu0 0
          %5257 = vperm.xlu0 %5256, %v1800
          %v5258 = vpop.permute.xlu0 %5257
          %5261 = vset.pattern.permute.xlu0 0
          %5262 = vperm.xlu0 %5261, %v1801
          %v5263 = vpop.permute.xlu0 %5262
          %5266 = vset.pattern.permute.xlu0 0
          %5267 = vperm.xlu0 %5266, %v1802
          %v5268 = vpop.permute.xlu0 %5267
          %5271 = vset.pattern.permute.xlu0 0
          %5272 = vperm.xlu0 %5271, %v1803
          %v5273 = vpop.permute.xlu0 %5272
          %5276 = vset.pattern.permute.xlu0 0
          %5277 = vperm.xlu0 %5276, %v1804
          %v5278 = vpop.permute.xlu0 %5277
          %5281 = vset.pattern.permute.xlu0 0
          %5282 = vperm.xlu0 %5281, %v1805
          %v5283 = vpop.permute.xlu0 %5282
          %5286 = vset.pattern.permute.xlu0 0
          %5287 = vperm.xlu0 %5286, %v1806
          %v5288 = vpop.permute.xlu0 %5287
          %5291 = vset.pattern.permute.xlu0 0
          %5292 = vperm.xlu0 %5291, %v1807
          %v5293 = vpop.permute.xlu0 %5292
          %5296 = vset.pattern.permute.xlu0 0
          %5297 = vperm.xlu0 %5296, %v1808
          %v5298 = vpop.permute.xlu0 %5297
          %5301 = vset.pattern.permute.xlu0 0
          %5302 = vperm.xlu0 %5301, %v1809
          %v5303 = vpop.permute.xlu0 %5302
          %5306 = vset.pattern.permute.xlu0 0
          %5307 = vperm.xlu0 %5306, %v1810
          %v5308 = vpop.permute.xlu0 %5307
          %5311 = vset.pattern.permute.xlu0 0
          %5312 = vperm.xlu0 %5311, %v1811
          %v5313 = vpop.permute.xlu0 %5312
          %5316 = vset.pattern.permute.xlu0 0
          %5317 = vperm.xlu0 %5316, %v1812
          %v5318 = vpop.permute.xlu0 %5317
          %5321 = vset.pattern.permute.xlu0 0
          %5322 = vperm.xlu0 %5321, %v1813
          %v5323 = vpop.permute.xlu0 %5322
          %5326 = vset.pattern.permute.xlu0 0
          %5327 = vperm.xlu0 %5326, %v1814
          %v5328 = vpop.permute.xlu0 %5327
          %5331 = vset.pattern.permute.xlu0 0
          %5332 = vperm.xlu0 %5331, %v1815
          %v5333 = vpop.permute.xlu0 %5332
          %5336 = vset.pattern.permute.xlu0 0
          %5337 = vperm.xlu0 %5336, %v1816
          %v5338 = vpop.permute.xlu0 %5337
          %5341 = vset.pattern.permute.xlu0 0
          %5342 = vperm.xlu0 %5341, %v1817
          %v5343 = vpop.permute.xlu0 %5342
          %5346 = vset.pattern.permute.xlu0 0
          %5347 = vperm.xlu0 %5346, %v1818
          %v5348 = vpop.permute.xlu0 %5347
          %5351 = vset.pattern.permute.xlu0 0
          %5352 = vperm.xlu0 %5351, %v1819
          %v5353 = vpop.permute.xlu0 %5352
          %5356 = vset.pattern.permute.xlu0 0
          %5357 = vperm.xlu0 %5356, %v1820
          %v5358 = vpop.permute.xlu0 %5357
          %5361 = vset.pattern.permute.xlu0 0
          %5362 = vperm.xlu0 %5361, %v1821
          %v5363 = vpop.permute.xlu0 %5362
          %5366 = vset.pattern.permute.xlu0 0
          %5367 = vperm.xlu0 %5366, %v1822
          %v5368 = vpop.permute.xlu0 %5367
          %v5370 = vmul.f32 %v5213, %v5178
          %v5371 = vmul.f32 %v5218, %v5179
          %v5372 = vmul.f32 %v5223, %v5180
          %v5373 = vmul.f32 %v5228, %v5181
          %v5374 = vmul.f32 %v5233, %v5182
          %v5375 = vmul.f32 %v5238, %v5183
          %v5376 = vmul.f32 %v5243, %v5184
          %v5377 = vmul.f32 %v5248, %v5185
          %v5378 = vmul.f32 %v5253, %v5186
          %v5379 = vmul.f32 %v5258, %v5187
          %v5380 = vmul.f32 %v5263, %v5188
          %v5381 = vmul.f32 %v5268, %v5189
          %v5382 = vmul.f32 %v5273, %v5190
          %v5383 = vmul.f32 %v5278, %v5191
          %v5384 = vmul.f32 %v5283, %v5192
          %v5385 = vmul.f32 %v5288, %v5193
          %v5386 = vmul.f32 %v5293, %v5194
          %v5387 = vmul.f32 %v5298, %v5195
          %v5388 = vmul.f32 %v5303, %v5196
          %v5389 = vmul.f32 %v5308, %v5197
          %v5390 = vmul.f32 %v5313, %v5198
          %v5391 = vmul.f32 %v5318, %v5199
          %v5392 = vmul.f32 %v5323, %v5200
          %v5393 = vmul.f32 %v5328, %v5201
          %v5394 = vmul.f32 %v5333, %v5202
          %v5395 = vmul.f32 %v5338, %v5203
          %v5396 = vmul.f32 %v5343, %v5204
          %v5397 = vmul.f32 %v5348, %v5205
          %v5398 = vmul.f32 %v5353, %v5206
          %v5399 = vmul.f32 %v5358, %v5207
          %v5400 = vmul.f32 %v5363, %v5208
          %v5401 = vmul.f32 %v5368, %v5209
          %v5402 = vld [vmem:[%s9] sm:$0x1]
          %v5404 = vlaneseq
          %v5405 = vshrl.u32 %v5404, 7
          %v5406 = vsub.s32 0, %v5405
          %v5407 = vrot.slane %v5402, %v5406
          %v5409 = vadd.f32 %v5370, %v5407
          %v5410 = vadd.f32 %v5371, %v5407
          %v5411 = vadd.f32 %v5372, %v5407
          %v5412 = vadd.f32 %v5373, %v5407
          %v5413 = vadd.f32 %v5374, %v5407
          %v5414 = vadd.f32 %v5375, %v5407
          %v5415 = vadd.f32 %v5376, %v5407
          %v5416 = vadd.f32 %v5377, %v5407
          %v5417 = vadd.f32 %v5378, %v5407
          %v5418 = vadd.f32 %v5379, %v5407
          %v5419 = vadd.f32 %v5380, %v5407
          %v5420 = vadd.f32 %v5381, %v5407
          %v5421 = vadd.f32 %v5382, %v5407
          %v5422 = vadd.f32 %v5383, %v5407
          %v5423 = vadd.f32 %v5384, %v5407
          %v5424 = vadd.f32 %v5385, %v5407
          %v5425 = vadd.f32 %v5386, %v5407
          %v5426 = vadd.f32 %v5387, %v5407
          %v5427 = vadd.f32 %v5388, %v5407
          %v5428 = vadd.f32 %v5389, %v5407
          %v5429 = vadd.f32 %v5390, %v5407
          %v5430 = vadd.f32 %v5391, %v5407
          %v5431 = vadd.f32 %v5392, %v5407
          %v5432 = vadd.f32 %v5393, %v5407
          %v5433 = vadd.f32 %v5394, %v5407
          %v5434 = vadd.f32 %v5395, %v5407
          %v5435 = vadd.f32 %v5396, %v5407
          %v5436 = vadd.f32 %v5397, %v5407
          %v5437 = vadd.f32 %v5398, %v5407
          %v5438 = vadd.f32 %v5399, %v5407
          %v5439 = vadd.f32 %v5400, %v5407
          %v5440 = vadd.f32 %v5401, %v5407
          %5441 = vst [vmem:[%s358] sm:$0xff] %v5409
          %5442 = vst [vmem:[%s358 + $0x8] sm:$0xff] %v5410
          %5443 = vst [vmem:[%s358 + $0x10] sm:$0xff] %v5411
          %5444 = vst [vmem:[%s358 + $0x18] sm:$0xff] %v5412
          %5445 = vst [vmem:[%s358 + $0x20] sm:$0xff] %v5413
          %5446 = vst [vmem:[%s358 + $0x28] sm:$0xff] %v5414
          %5447 = vst [vmem:[%s358 + $0x30] sm:$0xff] %v5415
          %5448 = vst [vmem:[%s358 + $0x38] sm:$0xff] %v5416
          %5449 = vst [vmem:[%s358 + $0x40] sm:$0xff] %v5417
          %5450 = vst [vmem:[%s358 + $0x48] sm:$0xff] %v5418
          %5451 = vst [vmem:[%s358 + $0x50] sm:$0xff] %v5419
          %5452 = vst [vmem:[%s358 + $0x58] sm:$0xff] %v5420
          %5453 = vst [vmem:[%s358 + $0x60] sm:$0xff] %v5421
          %5454 = vst [vmem:[%s358 + $0x68] sm:$0xff] %v5422
          %5455 = vst [vmem:[%s358 + $0x70] sm:$0xff] %v5423
          %5456 = vst [vmem:[%s358 + $0x78] sm:$0xff] %v5424
          %5457 = vst [vmem:[%s358 + $0x80] sm:$0xff] %v5425
          %5458 = vst [vmem:[%s358 + $0x88] sm:$0xff] %v5426
          %5459 = vst [vmem:[%s358 + $0x90] sm:$0xff] %v5427
          %5460 = vst [vmem:[%s358 + $0x98] sm:$0xff] %v5428
          %5461 = vst [vmem:[%s358 + $0xa0] sm:$0xff] %v5429
          %5462 = vst [vmem:[%s358 + $0xa8] sm:$0xff] %v5430
          %5463 = vst [vmem:[%s358 + $0xb0] sm:$0xff] %v5431
          %5464 = vst [vmem:[%s358 + $0xb8] sm:$0xff] %v5432
          %5465 = vst [vmem:[%s358 + $0xc0] sm:$0xff] %v5433
          %5466 = vst [vmem:[%s358 + $0xc8] sm:$0xff] %v5434
          %5467 = vst [vmem:[%s358 + $0xd0] sm:$0xff] %v5435
          %5468 = vst [vmem:[%s358 + $0xd8] sm:$0xff] %v5436
          %5469 = vst [vmem:[%s358 + $0xe0] sm:$0xff] %v5437
          %5470 = vst [vmem:[%s358 + $0xe8] sm:$0xff] %v5438
          %5471 = vst [vmem:[%s358 + $0xf0] sm:$0xff] %v5439
          %5472 = vst [vmem:[%s358 + $0xf8] sm:$0xff] %v5440
        $region92: #{residual_gc_forward.1} parent=71 // pred_fallthru
          _
      $region72: #{residual_gc_forward.1} parent=59 // pred_fallthru
        _
      %s5473 = smul.u32 32, %s27
      %p5474 = scmp.lt.s32.totalorder %s5473, 31
      %s5475 = scalar_select %p5474, %s5473, 31
      %s5476 = smul.addr %s5475, 8
      %s5477 = scalar_lea.vmem %s10, %s5476
      // Predicated region
      $region93: #{residual_gc_forward.1} parent=59 // pred_check
        %p5478 = pneg %p268
      $region94: #{residual_gc_forward.1} parent=59 // pred_check_branch
        %5480 = sbr.rel (%p5478) target = $region96
      $region95: #{residual_gc_forward.1} parent=59 // pred_region
        %s5481 = smul.u32 32, %s27
      $region96: #{residual_gc_forward.1} parent=59 // pred_fallthru
        _
      // Predicated region
      $region97: #{residual_gc_forward.1} parent=59 // pred_check
        %p5482 = pneg %p268
      $region98: #{residual_gc_forward.1} parent=59 // pred_check_branch
        %5484 = sbr.rel (%p5482) target = $region100
      $region99: #{residual_gc_forward.1} parent=59 // pred_region
        %s5485 = smul.u32 32, %s27
        %p5486 = scmp.lt.s32.totalorder %s5485, 31
        %s5487 = scalar_select %p5486, %s5485, 31
        %s5488 = smul.addr %s5487, 8
        %s5489 = scalar_lea.vmem %s10, %s5488
      $region100: #{residual_gc_forward.1} parent=59 // pred_fallthru
        _
    $region60: #{residual_gc_forward.1} parent=5 // pred_fallthru
      _
    %p5490 = scmp.le.s32.totalorder 2, %s16
    // Predicated region
    $region101: #{residual_gc_forward.1} parent=5 // pred_check
      %p5491 = pneg %p5490
    $region102: #{residual_gc_forward.1} parent=5 // pred_check_branch
      %5493 = sbr.rel (%p5491) target = $region104
    $region103: #{residual_gc_forward.1} parent=5 // pred_region
      %s5494 = ssub.s32 %s16, 2
    $region104: #{residual_gc_forward.1} parent=5 // pred_fallthru
      _
  $region6: #{residual_gc_forward.1} parent=0 // loop_footer
    %s20 = sadd.s32 1, %s16
  $region7: #{residual_gc_forward.1} parent=0 // loop_footer_branch
    %15 = sbr.rel target = $region3
  $region8: #{residual_gc_forward.1} parent=0 // loop_exit
    _

</llo_original>
